<compile_context>
chip_gen: v6e
topology: v6e:2x2x1
jax: 0.10.0
libtpu: 0.0.40
codegen_flags: <defaults>
</compile_context>

<pallas_src>
import jax
import jax.numpy as jnp
import numpy as np
from jax.experimental import pallas as pl
from jax.experimental.pallas import tpu as pltpu


# ----------------------------------------------------------------------------
# Pallas kernel (one batch block per grid step; full T recurrence inside)
# ----------------------------------------------------------------------------
def _dual_stage_kernel(
    x_ref, h0e_ref, h0d_ref,
    xw_ref, xb_ref,
    a3w_ref, a3b_ref,
    eiw_ref, eib_ref,
    ehw_ref, ehb_ref,
    dhw_ref, dhb_ref,
    m1_ref, l3w_ref,
    fcw_ref, fcb_ref,
    out_ref,
    enc_scr, w2_scr,
):
    TB, D = x_ref.shape
    B, H = h0e_ref.shape
    T = TB // B
    H2, H3, H6 = 2 * H, 3 * H, 6 * H
    # encoder fused-output lane layout: [gates r|z|n : 0..3H][layer2 : 3H..5H][pad H][attn1 : 6H..6H+D]
    EG, EL, EA = H3, H3 + H2, H6
    bf16 = jnp.bfloat16

    def dot(a, w):
        # bf16 MXU operands, f32 accumulate (native on v6e/v7x, single-pass on v5e).
        return jnp.dot(a.astype(bf16), w, preferred_element_type=jnp.float32)

    # ---- hoisted, state-independent x projections ------------------------------
    x2d = x_ref[...]                                        # (T*B, D), step-major rows
    # xpre[:, :6H] = x @ (W4_x @ W_ih_dec) + (b4 @ W_ih_dec + b_ih_dec)   (decoder gi x-part)
    # xpre[:, 6H:] = attn2(x) + b2                                         (encoder attention)
    xpre = dot(x2d, xw_ref[...]) + xb_ref[...]              # (T*B, 6H + D)

    # K == D == 3 weights stay on the VPU (broadcast-FMA), keeping MXU fill/drain
    # off the recurrent critical path.
    eiw_rows = [eiw_ref[k:k + 1, :] for k in range(D)]      # each (1, 3H)
    a3w_rows = [a3w_ref[k:k + 1, :] for k in range(D)]      # each (1, D)
    eib = eib_ref[...]
    a3b = a3b_ref[...]

    ehw = ehw_ref[...]                                      # (H, 6H + D) bf16
    ehb = ehb_ref[...]                                      # (1, 6H + D) f32

    # ------------------------------- Encoder ------------------------------------
    h = h0e_ref[...]                                        # (B, H) f32
    for s in range(T):
        # fused, gates-first: [W_hr|W_hz|W_hn | layer2 | pad | attn1]
        hcat = dot(h, ehw) + ehb                            # (B, 6H + D)
        if s > 0:  # layer2(h_{s-1}) is the w2 row for encoder output index s-1
            w2_scr[s - 1] = hcat[:, EG:EL]
        gh_r = hcat[:, 0:H]
        gh_z = hcat[:, H:H2]
        gh_n = hcat[:, H2:H3]
        w1 = hcat[:, EA:EA + D]                             # attn1(h), lane-aligned with attn2(x)

        r0 = s * B
        x_t = x2d[r0:r0 + B, :]                             # (B, D)
        w2_t = xpre[r0:r0 + B, H6:H6 + D]                   # attn2(x_t) + b2
        t_act = jnp.tanh(w1 + w2_t)
        v = a3b
        for k in range(D):                                  # attn3 (K=3): VPU broadcast-FMA
            v = v + t_act[:, k:k + 1] * a3w_rows[k]
        v_max = jnp.max(v, axis=1, keepdims=True)
        e = jnp.exp(v - v_max)
        alpha = e * pl.reciprocal(jnp.sum(e, axis=1, keepdims=True), approx=True)
        wx = x_t * alpha                                    # (B, D)

        gi = eib
        for k in range(D):                                  # encoder W_ih (K=3): VPU broadcast-FMA
            gi = gi + wx[:, k:k + 1] * eiw_rows[k]          # (B, 3H)
        r = jax.nn.sigmoid(gi[:, 0:H] + gh_r)
        z = jax.nn.sigmoid(gi[:, H:H2] + gh_z)
        n = jnp.tanh(gi[:, H2:H3] + r * gh_n)
        h = (1.0 - z) * n + z * h
        enc_scr[s] = h

    # layer2 row for the final encoder state (one extra fused dot)
    hcat = dot(h, ehw) + ehb
    w2_scr[T - 1] = hcat[:, EG:EL]

    # ------------------------------- Decoder ------------------------------------
    enc3 = enc_scr[...]                                     # (T, B, H)  encoder outputs
    w2_3d = w2_scr[...]                                     # (T, B, 2H) layer2(enc) + b2
    l3w_b = l3w_ref[...][None]                              # (1, 1, 2H)
    dhw = dhw_ref[...]                                      # (2H, 8H) bf16
    dhb = dhb_ref[...]
    m1 = m1_ref[...]                                        # (H, 6H) bf16 = W4_c @ W_ih_dec

    hd = h0d_ref[...]                                       # (B, 2H) f32
    for s in range(T):
        # fused, gates-first: [W_hr|W_hz|W_hn | layer1]  (exactly 128 lanes at H=16)
        hcat = dot(hd, dhw) + dhb                           # (B, 8H)
        gh_r = hcat[:, 0:H2]
        gh_z = hcat[:, H2:2 * H2]
        gh_n = hcat[:, 2 * H2:3 * H2]
        w1 = hcat[:, 3 * H2:]                               # layer1(hd), (B, 2H)

        # temporal attention over the T encoder states, vectorized over T.
        # layer3 bias omitted: softmax is shift-invariant, so it cancels exactly.
        S = jnp.tanh(w2_3d + w1[None, :, :])                # (T, B, 2H)
        sc = jnp.sum(S * l3w_b, axis=2, keepdims=True)      # (T, B, 1)
        smax = jnp.max(sc, axis=0, keepdims=True)           # (1, B, 1)
        e = jnp.exp(sc - smax)                              # (T, B, 1)
        inv = pl.reciprocal(jnp.sum(e, axis=0), approx=True)   # (B, 1)
        alpha = e * inv[None, :, :]                         # (T, B, 1)
        wc = jnp.sum(alpha * enc3, axis=0)                  # (B, H) weighted context

        r0 = s * B
        # gi = layer4(cat([wc, x_t])) @ W_ih + b_ih, with the x / bias part hoisted into xpre
        gi = dot(wc, m1) + xpre[r0:r0 + B, 0:H6]            # (B, 6H)
        r = jax.nn.sigmoid(gi[:, 0:H2] + gh_r)
        z = jax.nn.sigmoid(gi[:, H2:2 * H2] + gh_z)
        n = jnp.tanh(gi[:, 2 * H2:3 * H2] + r * gh_n)
        hd = (1.0 - z) * n + z * hd

    # fc(final_output[:, -1, :]); last-step GRU output == final hidden state.
    out_ref[...] = dot(hd, fcw_ref[...]) + fcb_ref[...]


# ----------------------------------------------------------------------------
# Parameter initialization (deterministic, PyTorch-like uniform bounds)
# ----------------------------------------------------------------------------
def init_params(key, B, T, D, H):
    H2 = 2 * H
    keys = list(jax.random.split(key, 40))
    kit = iter(keys)

    def unif(shape, fan_in):
        k = 1.0 / np.sqrt(fan_in)
        return jax.random.uniform(next(kit), shape, jnp.float32, -k, k)

    def normal(shape, std):
        return jax.random.normal(next(kit), shape, jnp.float32) * std

    P = {}
    # Deterministic stand-ins for the per-forward xavier_normal h_0 of the PyTorch module.
    P["h0_enc"] = normal((B, H), float(np.sqrt(2.0 / (B * H + H))))
    P["h0_dec"] = normal((B, H2), float(np.sqrt(2.0 / (B * H2 + H2))))

    # Encoder attention linears (stored already transposed: (in, out))
    P["a1w"] = unif((H, D), H); P["a1b"] = unif((1, D), H)          # attn1: H -> D
    P["a2w"] = unif((D, D), D); P["a2b"] = unif((1, D), D)          # attn2: D -> D
    P["a3w"] = unif((D, D), D); P["a3b"] = unif((1, D), D)          # attn3: D -> D
    # Encoder GRU, gates packed (r, z, n), weights transposed per gate
    P["ewih"] = unif((3, D, H), H); P["ewhh"] = unif((3, H, H), H)
    P["ebih"] = unif((3, 1, H), H); P["ebhh"] = unif((3, 1, H), H)

    # Decoder linears
    P["l1w"] = unif((H2, H2), H2); P["l1b"] = unif((1, H2), H2)     # layer1: 2H -> 2H
    P["l2w"] = unif((H, H2), H);  P["l2b"] = unif((1, H2), H)       # layer2: H  -> 2H
    P["l3w"] = unif((1, 1, H2), H2); P["l3b"] = unif((1, 1), H2)    # layer3: 2H -> 1
    # layer4: (H + 3) -> 2H, split into the weighted_c part and the x part
    P["l4aw"] = unif((H, H2), H + 3); P["l4bw"] = unif((D, H2), H + 3)
    P["l4b"] = unif((1, H2), H + 3)
    # Decoder GRU
    P["dwih"] = unif((3, H2, H2), H2); P["dwhh"] = unif((3, H2, H2), H2)
    P["dbih"] = unif((3, 1, H2), H2); P["dbhh"] = unif((3, 1, H2), H2)
    # fc: 2H -> 3
    P["fcw"] = unif((H2, 3), H2); P["fcb"] = unif((1, 3), H2)
    return P


# ----------------------------------------------------------------------------
# Wrapper: pack/fuse parameters (gates-first, lane-aligned) and call the kernel
# ----------------------------------------------------------------------------
def _pack_params(P):
    hp = jax.lax.Precision.HIGHEST
    f32, bf16 = jnp.float32, jnp.bfloat16
    H, D = P["a1w"].shape
    H2 = 2 * H
    cat = lambda arrs: jnp.concatenate(arrs, axis=1)

    # packed decoder GRU input weights (gate order r|z|n), shared by the fusions below
    diw = cat([P["dwih"][0], P["dwih"][1], P["dwih"][2]])           # (2H, 6H)
    dib = cat([P["dbih"][0], P["dbih"][1], P["dbih"][2]])           # (1, 6H)

    # x-only projections, fused & pre-composed:  [ x@(W4_x@W_ih_dec) | attn2(x) ]
    gi_x_w = jnp.dot(P["l4bw"], diw, precision=hp)                  # (D, 6H)
    gi_x_b = jnp.dot(P["l4b"], diw, precision=hp) + dib             # (1, 6H)
    xw = cat([gi_x_w, P["a2w"]]).astype(bf16)                       # (D, 6H + D)
    xb = cat([gi_x_b, P["a2b"]]).astype(f32)

    # encoder fused h-projection: gates-first + layer2 + pad(H) + attn1 (attn1 lane-aligned
    # with attn2 at offset 6H; gate slices aligned with gi at 0/H/2H)
    padw = jnp.zeros((H, H), f32)
    padb = jnp.zeros((1, H), f32)
    ehw = cat([P["ewhh"][0], P["ewhh"][1], P["ewhh"][2],
               P["l2w"], padw, P["a1w"]]).astype(bf16)              # (H, 6H + D)
    ehb = cat([P["ebhh"][0], P["ebhh"][1], P["ebhh"][2],
               P["l2b"], padb, P["a1b"]]).astype(f32)

    # encoder GRU input gates (VPU broadcast-FMA path; K = D = 3)
    eiw = cat([P["ewih"][0], P["ewih"][1], P["ewih"][2]]).astype(f32)   # (D, 3H)
    eib = cat([P["ebih"][0], P["ebih"][1], P["ebih"][2]]).astype(f32)

    # decoder fused h-projection: gates-first + layer1 (exactly 8H = 128 lanes at H=16)
    dhw = cat([P["dwhh"][0], P["dwhh"][1], P["dwhh"][2], P["l1w"]]).astype(bf16)
    dhb = cat([P["dbhh"][0], P["dbhh"][1], P["dbhh"][2], P["l1b"]]).astype(f32)

    # layer4 weighted-context part composed with the decoder GRU input weights
    m1 = jnp.dot(P["l4aw"], diw, precision=hp).astype(bf16)         # (H, 6H)

    return {
        "h0_enc": P["h0_enc"].astype(f32), "h0_dec": P["h0_dec"].astype(f32),
        "xw": xw, "xb": xb,
        "a3w": P["a3w"].astype(f32), "a3b": P["a3b"].astype(f32),
        "eiw": eiw, "eib": eib,
        "ehw": ehw, "ehb": ehb,
        "dhw": dhw, "dhb": dhb,
        "m1": m1,
        "l3w": P["l3w"].reshape(1, H2).astype(f32),
        "fcw": P["fcw"].astype(bf16), "fcb": P["fcb"].astype(f32),
    }


_ARG_ORDER = ["h0_enc", "h0_dec", "xw", "xb", "a3w", "a3b", "eiw", "eib",
              "ehw", "ehb", "dhw", "dhb", "m1", "l3w", "fcw", "fcb"]


def gru_dual_stage_attention_pallas(x_btd, params, out_size=3, b_blk=8):
    B, T, D = x_btd.shape
    assert b_blk % 8 == 0 and B % b_blk == 0, "b_blk must be a multiple of 8 dividing B"
    H = params["a1w"].shape[0]
    H2 = 2 * H
    nblk = B // b_blk

    # (B, T, D) -> (nblk, T*b_blk, D): per batch block, step-major rows (row t*b_blk + j)
    x_blocks = (x_btd.reshape(nblk, b_blk, T, D)
                     .transpose(0, 2, 1, 3)
                     .reshape(nblk, T * b_blk, D))

    packed = _pack_params(params)
    args = [x_blocks] + [packed[k] for k in _ARG_ORDER]

    def _full(shape):
        zeros = (0,) * len(shape)
        def imap(i):
            return zeros
        return pl.BlockSpec(shape, imap)

    in_specs = [
        pl.BlockSpec((None, T * b_blk, D), lambda i: (i, 0, 0)),   # x (leading dim squeezed)
        pl.BlockSpec((b_blk, H), lambda i: (i, 0)),                # h0_enc
        pl.BlockSpec((b_blk, H2), lambda i: (i, 0)),               # h0_dec
    ] + [_full(packed[k].shape) for k in _ARG_ORDER[2:]]

    grid_spec = pltpu.PrefetchScalarGridSpec(
        num_scalar_prefetch=0,
        grid=(nblk,),
        in_specs=in_specs,
        out_specs=pl.BlockSpec((b_blk, out_size), lambda i: (i, 0)),
        scratch_shapes=[
            pltpu.VMEM((T, b_blk, H), jnp.float32),    # encoder hidden states
            pltpu.VMEM((T, b_blk, H2), jnp.float32),   # layer2(encoder states)
        ],
    )

    return pl.pallas_call(
        _dual_stage_kernel,
        out_shape=jax.ShapeDtypeStruct((B, out_size), jnp.float32),
        grid_spec=grid_spec,
        compiler_params=pltpu.CompilerParams(
            dimension_semantics=("parallel",),   # batch blocks are independent (v7x megacore)
        ),
    )(*args)


# ----------------------------------------------------------------------------
# Pure-JAX reference (same math, raw per-gate params, HIGHEST precision)
# ----------------------------------------------------------------------------
def _ref_gru(x, h, wih, whh, bih, bhh):
    hp = jax.lax.Precision.HIGHEST
    def g(i):
        gi = jnp.dot(x, wih[i], precision=hp) + bih[i]
        gh = jnp.dot(h, whh[i], precision=hp) + bhh[i]
        return gi, gh
    i_r, h_r = g(0); i_z, h_z = g(1); i_n, h_n = g(2)
    r = jax.nn.sigmoid(i_r + h_r)
    z = jax.nn.sigmoid(i_z + h_z)
    n = jnp.tanh(i_n + r * h_n)
    return (1.0 - z) * n + z * h


def reference_forward(x_btd, P):
    hp = jax.lax.Precision.HIGHEST
    B, T, D = x_btd.shape
    # Encoder
    h = P["h0_enc"]
    enc = []
    for step in range(T):
        x_t = x_btd[:, step, :]
        w1 = jnp.dot(h, P["a1w"], precision=hp) + P["a1b"]
        w2 = jnp.dot(x_t, P["a2w"], precision=hp) + P["a2b"]
        v = jnp.dot(jnp.tanh(w1 + w2), P["a3w"], precision=hp) + P["a3b"]
        alpha = jax.nn.softmax(v, axis=1)
        h = _ref_gru(x_t * alpha, h, P["ewih"], P["ewhh"], P["ebih"], P["ebhh"])
        enc.append(h)
    enc = jnp.stack(enc, axis=1)                                   # (B, T, H)
    # Decoder
    hd = P["h0_dec"]
    w2_all = jnp.einsum("bth,hk->btk", enc, P["l2w"], precision=hp) + P["l2b"]
    for step in range(T):
        w1 = jnp.dot(hd, P["l1w"], precision=hp) + P["l1b"]
        s = jnp.tanh(w1[:, None, :] + w2_all)                      # (B, T, 2H)
        scores = jnp.sum(s * P["l3w"].reshape(1, 1, -1), axis=-1) + P["l3b"]
        alpha = jax.nn.softmax(scores, axis=1)                     # (B, T)
        wc = jnp.einsum("bt,bth->bh", alpha, enc, precision=hp)
        x_t = x_btd[:, step, :]
        y = (jnp.dot(wc, P["l4aw"], precision=hp)
             + jnp.dot(x_t, P["l4bw"], precision=hp) + P["l4b"])
        hd = _ref_gru(y, hd, P["dwih"], P["dwhh"], P["dbih"], P["dbhh"])
    return jnp.dot(hd, P["fcw"], precision=hp) + P["fcb"]


# ----------------------------------------------------------------------------
if __name__ == "__main__":
    # D must be 3 (Decoder.layer4 expects input_size + 3 raw-x features); H=16, T=8 match
    # the PyTorch module defaults.  B=16 with b_blk=8 gives a 2-wide "parallel" grid axis
    # (both v7x TensorCores); for real workloads scale B and b_blk toward 128.
    B, T, D, H = 16, 8, 3, 16
    key = jax.random.PRNGKey(0)
    kx, kp = jax.random.split(key)
    x = jax.random.normal(kx, (B, T, D), jnp.float32)
    params = init_params(kp, B, T, D, H)

    out = jax.block_until_ready(
        gru_dual_stage_attention_pallas(x, params, out_size=3, b_blk=8))
    ref = jax.block_until_ready(reference_forward(x, params))

    # bf16 MXU operands + approx reciprocals vs an f32 HIGHEST-precision reference.
    np.testing.assert_allclose(np.asarray(out), np.asarray(ref), rtol=5e-2, atol=5e-2)

    print("KERNEL_OK")
</pallas_src>

<mosaic_0001>
module attributes {stable_mosaic.version = 11 : i64} {
  func.func @_dual_stage_kernel(%arg0: i32, %arg1: memref<1x64x3xf32, #tpu.memory_space<vmem>>, %arg2: memref<8x16xf32, #tpu.memory_space<vmem>>, %arg3: memref<8x32xf32, #tpu.memory_space<vmem>>, %arg4: memref<3x99xbf16, #tpu.memory_space<vmem>>, %arg5: memref<1x99xf32, #tpu.memory_space<vmem>>, %arg6: memref<3x3xf32, #tpu.memory_space<vmem>>, %arg7: memref<1x3xf32, #tpu.memory_space<vmem>>, %arg8: memref<3x48xf32, #tpu.memory_space<vmem>>, %arg9: memref<1x48xf32, #tpu.memory_space<vmem>>, %arg10: memref<16x99xbf16, #tpu.memory_space<vmem>>, %arg11: memref<1x99xf32, #tpu.memory_space<vmem>>, %arg12: memref<32x128xbf16, #tpu.memory_space<vmem>>, %arg13: memref<1x128xf32, #tpu.memory_space<vmem>>, %arg14: memref<16x96xbf16, #tpu.memory_space<vmem>>, %arg15: memref<1x32xf32, #tpu.memory_space<vmem>>, %arg16: memref<32x3xbf16, #tpu.memory_space<vmem>>, %arg17: memref<1x3xf32, #tpu.memory_space<vmem>>, %arg18: memref<8x3xf32, #tpu.memory_space<vmem>>, %arg19: memref<8x8x16xf32, #tpu.memory_space<vmem>>, %arg20: memref<8x8x32xf32, #tpu.memory_space<vmem>>) attributes {dimension_semantics = [#tpu.dimension_semantics<parallel>], iteration_bounds = array<i64: 2>, scalar_prefetch = 0 : i64, scratch_operands = 2 : i64, tpu.core_type = #tpu.core_type<tc>, window_params = [{transform_indices = @transform_0, window_bounds = array<i64: 1, 64, 3>}, {transform_indices = @transform_1, window_bounds = array<i64: 8, 16>}, {transform_indices = @transform_2, window_bounds = array<i64: 8, 32>}, {pipeline_mode = #tpu.pipeline_mode<synchronous>, transform_indices = @transform_3, window_bounds = array<i64: 3, 99>}, {pipeline_mode = #tpu.pipeline_mode<synchronous>, transform_indices = @transform_4, window_bounds = array<i64: 1, 99>}, {pipeline_mode = #tpu.pipeline_mode<synchronous>, transform_indices = @transform_5, window_bounds = array<i64: 3, 3>}, {pipeline_mode = #tpu.pipeline_mode<synchronous>, transform_indices = @transform_6, window_bounds = array<i64: 1, 3>}, {pipeline_mode = #tpu.pipeline_mode<synchronous>, transform_indices = @transform_7, window_bounds = array<i64: 3, 48>}, {pipeline_mode = #tpu.pipeline_mode<synchronous>, transform_indices = @transform_8, window_bounds = array<i64: 1, 48>}, {pipeline_mode = #tpu.pipeline_mode<synchronous>, transform_indices = @transform_9, window_bounds = array<i64: 16, 99>}, {pipeline_mode = #tpu.pipeline_mode<synchronous>, transform_indices = @transform_10, window_bounds = array<i64: 1, 99>}, {pipeline_mode = #tpu.pipeline_mode<synchronous>, transform_indices = @transform_11, window_bounds = array<i64: 32, 128>}, {pipeline_mode = #tpu.pipeline_mode<synchronous>, transform_indices = @transform_12, window_bounds = array<i64: 1, 128>}, {pipeline_mode = #tpu.pipeline_mode<synchronous>, transform_indices = @transform_13, window_bounds = array<i64: 16, 96>}, {pipeline_mode = #tpu.pipeline_mode<synchronous>, transform_indices = @transform_14, window_bounds = array<i64: 1, 32>}, {pipeline_mode = #tpu.pipeline_mode<synchronous>, transform_indices = @transform_15, window_bounds = array<i64: 32, 3>}, {pipeline_mode = #tpu.pipeline_mode<synchronous>, transform_indices = @transform_16, window_bounds = array<i64: 1, 3>}, {transform_indices = @transform_17, window_bounds = array<i64: 8, 3>}]} {
    %c0 = arith.constant 0 : index
    %c0_0 = arith.constant 0 : index
    %c0_1 = arith.constant 0 : index
    %0 = vector.load %arg1[%c0, %c0_0, %c0_1] : memref<1x64x3xf32, #tpu.memory_space<vmem>>, vector<1x64x3xf32>
    %1 = vector.shape_cast %0 : vector<1x64x3xf32> to vector<64x3xf32>
    %c0_2 = arith.constant 0 : index
    %c0_3 = arith.constant 0 : index
    %2 = vector.load %arg4[%c0_2, %c0_3] : memref<3x99xbf16, #tpu.memory_space<vmem>>, vector<3x99xbf16>
    %3 = arith.truncf %1 : vector<64x3xf32> to vector<64x3xbf16>
    %cst = arith.constant dense<0.000000e+00> : vector<64x99xf32>
    %4 = tpu.matmul %3, %2, %cst {dimension_numbers = #tpu.dot_dimension_numbers<[1], [0], [0], [1], [0, 0, 1, 1], [], []>} : vector<64x3xbf16>, vector<3x99xbf16>, vector<64x99xf32> -> vector<64x99xf32>
    %c0_4 = arith.constant 0 : index
    %c0_5 = arith.constant 0 : index
    %5 = vector.load %arg5[%c0_4, %c0_5] : memref<1x99xf32, #tpu.memory_space<vmem>>, vector<1x99xf32>
    %6 = vector.broadcast %5 : vector<1x99xf32> to vector<64x99xf32>
    %7 = arith.addf %4, %6 : vector<64x99xf32>
    %c0_6 = arith.constant 0 : index
    %c0_7 = arith.constant 0 : index
    %8 = vector.load %arg8[%c0_6, %c0_7] : memref<3x48xf32, #tpu.memory_space<vmem>>, vector<1x48xf32>
    %c1 = arith.constant 1 : index
    %c0_8 = arith.constant 0 : index
    %9 = vector.load %arg8[%c1, %c0_8] : memref<3x48xf32, #tpu.memory_space<vmem>>, vector<1x48xf32>
    %c2 = arith.constant 2 : index
    %c0_9 = arith.constant 0 : index
    %10 = vector.load %arg8[%c2, %c0_9] : memref<3x48xf32, #tpu.memory_space<vmem>>, vector<1x48xf32>
    %c0_10 = arith.constant 0 : index
    %c0_11 = arith.constant 0 : index
    %11 = vector.load %arg6[%c0_10, %c0_11] : memref<3x3xf32, #tpu.memory_space<vmem>>, vector<1x3xf32>
    %c1_12 = arith.constant 1 : index
    %c0_13 = arith.constant 0 : index
    %12 = vector.load %arg6[%c1_12, %c0_13] : memref<3x3xf32, #tpu.memory_space<vmem>>, vector<1x3xf32>
    %c2_14 = arith.constant 2 : index
    %c0_15 = arith.constant 0 : index
    %13 = vector.load %arg6[%c2_14, %c0_15] : memref<3x3xf32, #tpu.memory_space<vmem>>, vector<1x3xf32>
    %c0_16 = arith.constant 0 : index
    %c0_17 = arith.constant 0 : index
    %14 = vector.load %arg9[%c0_16, %c0_17] : memref<1x48xf32, #tpu.memory_space<vmem>>, vector<1x48xf32>
    %c0_18 = arith.constant 0 : index
    %c0_19 = arith.constant 0 : index
    %15 = vector.load %arg7[%c0_18, %c0_19] : memref<1x3xf32, #tpu.memory_space<vmem>>, vector<1x3xf32>
    %c0_20 = arith.constant 0 : index
    %c0_21 = arith.constant 0 : index
    %16 = vector.load %arg10[%c0_20, %c0_21] : memref<16x99xbf16, #tpu.memory_space<vmem>>, vector<16x99xbf16>
    %c0_22 = arith.constant 0 : index
    %c0_23 = arith.constant 0 : index
    %17 = vector.load %arg11[%c0_22, %c0_23] : memref<1x99xf32, #tpu.memory_space<vmem>>, vector<1x99xf32>
    %c0_24 = arith.constant 0 : index
    %c0_25 = arith.constant 0 : index
    %18 = vector.load %arg2[%c0_24, %c0_25] : memref<8x16xf32, #tpu.memory_space<vmem>>, vector<8x16xf32>
    %19 = arith.truncf %18 : vector<8x16xf32> to vector<8x16xbf16>
    %cst_26 = arith.constant dense<0.000000e+00> : vector<8x99xf32>
    %20 = tpu.matmul %19, %16, %cst_26 {dimension_numbers = #tpu.dot_dimension_numbers<[1], [0], [0], [1], [0, 0, 1, 1], [], []>} : vector<8x16xbf16>, vector<16x99xbf16>, vector<8x99xf32> -> vector<8x99xf32>
    %21 = vector.broadcast %17 : vector<1x99xf32> to vector<8x99xf32>
    %22 = arith.addf %20, %21 : vector<8x99xf32>
    %23 = vector.extract_strided_slice %22 {offsets = [0, 0], sizes = [8, 16], strides = [1, 1]} : vector<8x99xf32> to vector<8x16xf32>
    %24 = vector.extract_strided_slice %22 {offsets = [0, 16], sizes = [8, 16], strides = [1, 1]} : vector<8x99xf32> to vector<8x16xf32>
    %25 = vector.extract_strided_slice %22 {offsets = [0, 32], sizes = [8, 16], strides = [1, 1]} : vector<8x99xf32> to vector<8x16xf32>
    %26 = vector.extract_strided_slice %22 {offsets = [0, 96], sizes = [8, 3], strides = [1, 1]} : vector<8x99xf32> to vector<8x3xf32>
    %27 = vector.extract_strided_slice %1 {offsets = [0, 0], sizes = [8, 3], strides = [1, 1]} : vector<64x3xf32> to vector<8x3xf32>
    %28 = vector.extract_strided_slice %7 {offsets = [0, 96], sizes = [8, 3], strides = [1, 1]} : vector<64x99xf32> to vector<8x3xf32>
    %29 = arith.addf %26, %28 : vector<8x3xf32>
    %30 = math.tanh %29 : vector<8x3xf32>
    %31 = vector.extract_strided_slice %30 {offsets = [0, 0], sizes = [8, 1], strides = [1, 1]} : vector<8x3xf32> to vector<8x1xf32>
    %32 = vector.broadcast %31 : vector<8x1xf32> to vector<8x3xf32>
    %33 = vector.broadcast %11 : vector<1x3xf32> to vector<8x3xf32>
    %34 = arith.mulf %32, %33 : vector<8x3xf32>
    %35 = vector.broadcast %15 : vector<1x3xf32> to vector<8x3xf32>
    %36 = arith.addf %35, %34 : vector<8x3xf32>
    %37 = vector.extract_strided_slice %30 {offsets = [0, 1], sizes = [8, 1], strides = [1, 1]} : vector<8x3xf32> to vector<8x1xf32>
    %38 = vector.broadcast %37 : vector<8x1xf32> to vector<8x3xf32>
    %39 = vector.broadcast %12 : vector<1x3xf32> to vector<8x3xf32>
    %40 = arith.mulf %38, %39 : vector<8x3xf32>
    %41 = arith.addf %36, %40 : vector<8x3xf32>
    %42 = vector.extract_strided_slice %30 {offsets = [0, 2], sizes = [8, 1], strides = [1, 1]} : vector<8x3xf32> to vector<8x1xf32>
    %43 = vector.broadcast %42 : vector<8x1xf32> to vector<8x3xf32>
    %44 = vector.broadcast %13 : vector<1x3xf32> to vector<8x3xf32>
    %45 = arith.mulf %43, %44 : vector<8x3xf32>
    %46 = arith.addf %41, %45 : vector<8x3xf32>
    %cst_27 = arith.constant dense<0xFF800000> : vector<8xf32>
    %47 = vector.multi_reduction <maximumf>, %46, %cst_27 [1] : vector<8x3xf32> to vector<8xf32>
    %48 = vector.shape_cast %47 : vector<8xf32> to vector<8x1xf32>
    %49 = vector.broadcast %48 : vector<8x1xf32> to vector<8x3xf32>
    %50 = arith.subf %46, %49 : vector<8x3xf32>
    %51 = math.exp %50 : vector<8x3xf32>
    %cst_28 = arith.constant dense<0.000000e+00> : vector<8xf32>
    %52 = vector.multi_reduction <add>, %51, %cst_28 [1] : vector<8x3xf32> to vector<8xf32>
    %53 = vector.shape_cast %52 : vector<8xf32> to vector<8x1xf32>
    %54 = tpu.reciprocal %53 {approx = true} : vector<8x1xf32> -> vector<8x1xf32>
    %55 = vector.broadcast %54 : vector<8x1xf32> to vector<8x3xf32>
    %56 = arith.mulf %51, %55 : vector<8x3xf32>
    %57 = arith.mulf %27, %56 : vector<8x3xf32>
    %58 = vector.extract_strided_slice %57 {offsets = [0, 0], sizes = [8, 1], strides = [1, 1]} : vector<8x3xf32> to vector<8x1xf32>
    %59 = vector.broadcast %58 : vector<8x1xf32> to vector<8x48xf32>
    %60 = vector.broadcast %8 : vector<1x48xf32> to vector<8x48xf32>
    %61 = arith.mulf %59, %60 : vector<8x48xf32>
    %62 = vector.broadcast %14 : vector<1x48xf32> to vector<8x48xf32>
    %63 = arith.addf %62, %61 : vector<8x48xf32>
    %64 = vector.extract_strided_slice %57 {offsets = [0, 1], sizes = [8, 1], strides = [1, 1]} : vector<8x3xf32> to vector<8x1xf32>
    %65 = vector.broadcast %64 : vector<8x1xf32> to vector<8x48xf32>
    %66 = vector.broadcast %9 : vector<1x48xf32> to vector<8x48xf32>
    %67 = arith.mulf %65, %66 : vector<8x48xf32>
    %68 = arith.addf %63, %67 : vector<8x48xf32>
    %69 = vector.extract_strided_slice %57 {offsets = [0, 2], sizes = [8, 1], strides = [1, 1]} : vector<8x3xf32> to vector<8x1xf32>
    %70 = vector.broadcast %69 : vector<8x1xf32> to vector<8x48xf32>
    %71 = vector.broadcast %10 : vector<1x48xf32> to vector<8x48xf32>
    %72 = arith.mulf %70, %71 : vector<8x48xf32>
    %73 = arith.addf %68, %72 : vector<8x48xf32>
    %74 = vector.extract_strided_slice %73 {offsets = [0, 0], sizes = [8, 16], strides = [1, 1]} : vector<8x48xf32> to vector<8x16xf32>
    %75 = arith.addf %74, %23 : vector<8x16xf32>
    %76 = arith.negf %75 : vector<8x16xf32>
    %77 = math.exp %76 : vector<8x16xf32>
    %cst_29 = arith.constant 1.000000e+00 : f32
    %78 = vector.broadcast %cst_29 : f32 to vector<8x16xf32>
    %79 = arith.addf %78, %77 : vector<8x16xf32>
    %80 = arith.divf %78, %79 : vector<8x16xf32>
    %81 = vector.extract_strided_slice %73 {offsets = [0, 16], sizes = [8, 16], strides = [1, 1]} : vector<8x48xf32> to vector<8x16xf32>
    %82 = arith.addf %81, %24 : vector<8x16xf32>
    %83 = arith.negf %82 : vector<8x16xf32>
    %84 = math.exp %83 : vector<8x16xf32>
    %cst_30 = arith.constant 1.000000e+00 : f32
    %85 = vector.broadcast %cst_30 : f32 to vector<8x16xf32>
    %86 = arith.addf %85, %84 : vector<8x16xf32>
    %87 = arith.divf %85, %86 : vector<8x16xf32>
    %88 = vector.extract_strided_slice %73 {offsets = [0, 32], sizes = [8, 16], strides = [1, 1]} : vector<8x48xf32> to vector<8x16xf32>
    %89 = arith.mulf %80, %25 : vector<8x16xf32>
    %90 = arith.addf %88, %89 : vector<8x16xf32>
    %91 = math.tanh %90 : vector<8x16xf32>
    %cst_31 = arith.constant 1.000000e+00 : f32
    %92 = vector.broadcast %cst_31 : f32 to vector<8x16xf32>
    %93 = arith.subf %92, %87 : vector<8x16xf32>
    %94 = arith.mulf %93, %91 : vector<8x16xf32>
    %95 = arith.mulf %87, %18 : vector<8x16xf32>
    %96 = arith.addf %94, %95 : vector<8x16xf32>
    %c0_32 = arith.constant 0 : index
    %c0_33 = arith.constant 0 : index
    %c0_34 = arith.constant 0 : index
    %97 = vector.load %arg19[%c0_32, %c0_33, %c0_34] : memref<8x8x16xf32, #tpu.memory_space<vmem>>, vector<1x8x16xf32>
    %98 = vector.shape_cast %97 : vector<1x8x16xf32> to vector<8x16xf32>
    %99 = vector.shape_cast %96 : vector<8x16xf32> to vector<1x8x16xf32>
    tpu.vector_store %arg19[%c0_32, %c0_33, %c0_34], %99 {strides = array<i32>} : memref<8x8x16xf32, #tpu.memory_space<vmem>>, vector<1x8x16xf32>,
    %100 = arith.truncf %96 : vector<8x16xf32> to vector<8x16xbf16>
    %cst_35 = arith.constant dense<0.000000e+00> : vector<8x99xf32>
    %101 = tpu.matmul %100, %16, %cst_35 {dimension_numbers = #tpu.dot_dimension_numbers<[1], [0], [0], [1], [0, 0, 1, 1], [], []>} : vector<8x16xbf16>, vector<16x99xbf16>, vector<8x99xf32> -> vector<8x99xf32>
    %102 = vector.broadcast %17 : vector<1x99xf32> to vector<8x99xf32>
    %103 = arith.addf %101, %102 : vector<8x99xf32>
    %104 = vector.extract_strided_slice %103 {offsets = [0, 48], sizes = [8, 32], strides = [1, 1]} : vector<8x99xf32> to vector<8x32xf32>
    %c0_36 = arith.constant 0 : index
    %c0_37 = arith.constant 0 : index
    %c0_38 = arith.constant 0 : index
    %105 = vector.load %arg20[%c0_36, %c0_37, %c0_38] : memref<8x8x32xf32, #tpu.memory_space<vmem>>, vector<1x8x32xf32>
    %106 = vector.shape_cast %105 : vector<1x8x32xf32> to vector<8x32xf32>
    %107 = vector.shape_cast %104 : vector<8x32xf32> to vector<1x8x32xf32>
    tpu.vector_store %arg20[%c0_36, %c0_37, %c0_38], %107 {strides = array<i32>} : memref<8x8x32xf32, #tpu.memory_space<vmem>>, vector<1x8x32xf32>,
    %108 = vector.extract_strided_slice %103 {offsets = [0, 0], sizes = [8, 16], strides = [1, 1]} : vector<8x99xf32> to vector<8x16xf32>
    %109 = vector.extract_strided_slice %103 {offsets = [0, 16], sizes = [8, 16], strides = [1, 1]} : vector<8x99xf32> to vector<8x16xf32>
    %110 = vector.extract_strided_slice %103 {offsets = [0, 32], sizes = [8, 16], strides = [1, 1]} : vector<8x99xf32> to vector<8x16xf32>
    %111 = vector.extract_strided_slice %103 {offsets = [0, 96], sizes = [8, 3], strides = [1, 1]} : vector<8x99xf32> to vector<8x3xf32>
    %112 = vector.extract_strided_slice %1 {offsets = [8, 0], sizes = [8, 3], strides = [1, 1]} : vector<64x3xf32> to vector<8x3xf32>
    %113 = vector.extract_strided_slice %7 {offsets = [8, 96], sizes = [8, 3], strides = [1, 1]} : vector<64x99xf32> to vector<8x3xf32>
    %114 = arith.addf %111, %113 : vector<8x3xf32>
    %115 = math.tanh %114 : vector<8x3xf32>
    %116 = vector.extract_strided_slice %115 {offsets = [0, 0], sizes = [8, 1], strides = [1, 1]} : vector<8x3xf32> to vector<8x1xf32>
    %117 = vector.broadcast %116 : vector<8x1xf32> to vector<8x3xf32>
    %118 = vector.broadcast %11 : vector<1x3xf32> to vector<8x3xf32>
    %119 = arith.mulf %117, %118 : vector<8x3xf32>
    %120 = vector.broadcast %15 : vector<1x3xf32> to vector<8x3xf32>
    %121 = arith.addf %120, %119 : vector<8x3xf32>
    %122 = vector.extract_strided_slice %115 {offsets = [0, 1], sizes = [8, 1], strides = [1, 1]} : vector<8x3xf32> to vector<8x1xf32>
    %123 = vector.broadcast %122 : vector<8x1xf32> to vector<8x3xf32>
    %124 = vector.broadcast %12 : vector<1x3xf32> to vector<8x3xf32>
    %125 = arith.mulf %123, %124 : vector<8x3xf32>
    %126 = arith.addf %121, %125 : vector<8x3xf32>
    %127 = vector.extract_strided_slice %115 {offsets = [0, 2], sizes = [8, 1], strides = [1, 1]} : vector<8x3xf32> to vector<8x1xf32>
    %128 = vector.broadcast %127 : vector<8x1xf32> to vector<8x3xf32>
    %129 = vector.broadcast %13 : vector<1x3xf32> to vector<8x3xf32>
    %130 = arith.mulf %128, %129 : vector<8x3xf32>
    %131 = arith.addf %126, %130 : vector<8x3xf32>
    %cst_39 = arith.constant dense<0xFF800000> : vector<8xf32>
    %132 = vector.multi_reduction <maximumf>, %131, %cst_39 [1] : vector<8x3xf32> to vector<8xf32>
    %133 = vector.shape_cast %132 : vector<8xf32> to vector<8x1xf32>
    %134 = vector.broadcast %133 : vector<8x1xf32> to vector<8x3xf32>
    %135 = arith.subf %131, %134 : vector<8x3xf32>
    %136 = math.exp %135 : vector<8x3xf32>
    %cst_40 = arith.constant dense<0.000000e+00> : vector<8xf32>
    %137 = vector.multi_reduction <add>, %136, %cst_40 [1] : vector<8x3xf32> to vector<8xf32>
    %138 = vector.shape_cast %137 : vector<8xf32> to vector<8x1xf32>
    %139 = tpu.reciprocal %138 {approx = true} : vector<8x1xf32> -> vector<8x1xf32>
    %140 = vector.broadcast %139 : vector<8x1xf32> to vector<8x3xf32>
    %141 = arith.mulf %136, %140 : vector<8x3xf32>
    %142 = arith.mulf %112, %141 : vector<8x3xf32>
    %143 = vector.extract_strided_slice %142 {offsets = [0, 0], sizes = [8, 1], strides = [1, 1]} : vector<8x3xf32> to vector<8x1xf32>
    %144 = vector.broadcast %143 : vector<8x1xf32> to vector<8x48xf32>
    %145 = vector.broadcast %8 : vector<1x48xf32> to vector<8x48xf32>
    %146 = arith.mulf %144, %145 : vector<8x48xf32>
    %147 = vector.broadcast %14 : vector<1x48xf32> to vector<8x48xf32>
    %148 = arith.addf %147, %146 : vector<8x48xf32>
    %149 = vector.extract_strided_slice %142 {offsets = [0, 1], sizes = [8, 1], strides = [1, 1]} : vector<8x3xf32> to vector<8x1xf32>
    %150 = vector.broadcast %149 : vector<8x1xf32> to vector<8x48xf32>
    %151 = vector.broadcast %9 : vector<1x48xf32> to vector<8x48xf32>
    %152 = arith.mulf %150, %151 : vector<8x48xf32>
    %153 = arith.addf %148, %152 : vector<8x48xf32>
    %154 = vector.extract_strided_slice %142 {offsets = [0, 2], sizes = [8, 1], strides = [1, 1]} : vector<8x3xf32> to vector<8x1xf32>
    %155 = vector.broadcast %154 : vector<8x1xf32> to vector<8x48xf32>
    %156 = vector.broadcast %10 : vector<1x48xf32> to vector<8x48xf32>
    %157 = arith.mulf %155, %156 : vector<8x48xf32>
    %158 = arith.addf %153, %157 : vector<8x48xf32>
    %159 = vector.extract_strided_slice %158 {offsets = [0, 0], sizes = [8, 16], strides = [1, 1]} : vector<8x48xf32> to vector<8x16xf32>
    %160 = arith.addf %159, %108 : vector<8x16xf32>
    %161 = arith.negf %160 : vector<8x16xf32>
    %162 = math.exp %161 : vector<8x16xf32>
    %cst_41 = arith.constant 1.000000e+00 : f32
    %163 = vector.broadcast %cst_41 : f32 to vector<8x16xf32>
    %164 = arith.addf %163, %162 : vector<8x16xf32>
    %165 = arith.divf %163, %164 : vector<8x16xf32>
    %166 = vector.extract_strided_slice %158 {offsets = [0, 16], sizes = [8, 16], strides = [1, 1]} : vector<8x48xf32> to vector<8x16xf32>
    %167 = arith.addf %166, %109 : vector<8x16xf32>
    %168 = arith.negf %167 : vector<8x16xf32>
    %169 = math.exp %168 : vector<8x16xf32>
    %cst_42 = arith.constant 1.000000e+00 : f32
    %170 = vector.broadcast %cst_42 : f32 to vector<8x16xf32>
    %171 = arith.addf %170, %169 : vector<8x16xf32>
    %172 = arith.divf %170, %171 : vector<8x16xf32>
    %173 = vector.extract_strided_slice %158 {offsets = [0, 32], sizes = [8, 16], strides = [1, 1]} : vector<8x48xf32> to vector<8x16xf32>
    %174 = arith.mulf %165, %110 : vector<8x16xf32>
    %175 = arith.addf %173, %174 : vector<8x16xf32>
    %176 = math.tanh %175 : vector<8x16xf32>
    %cst_43 = arith.constant 1.000000e+00 : f32
    %177 = vector.broadcast %cst_43 : f32 to vector<8x16xf32>
    %178 = arith.subf %177, %172 : vector<8x16xf32>
    %179 = arith.mulf %178, %176 : vector<8x16xf32>
    %180 = arith.mulf %172, %96 : vector<8x16xf32>
    %181 = arith.addf %179, %180 : vector<8x16xf32>
    %c1_44 = arith.constant 1 : index
    %c0_45 = arith.constant 0 : index
    %c0_46 = arith.constant 0 : index
    %182 = vector.load %arg19[%c1_44, %c0_45, %c0_46] : memref<8x8x16xf32, #tpu.memory_space<vmem>>, vector<1x8x16xf32>
    %183 = vector.shape_cast %182 : vector<1x8x16xf32> to vector<8x16xf32>
    %184 = vector.shape_cast %181 : vector<8x16xf32> to vector<1x8x16xf32>
    tpu.vector_store %arg19[%c1_44, %c0_45, %c0_46], %184 {strides = array<i32>} : memref<8x8x16xf32, #tpu.memory_space<vmem>>, vector<1x8x16xf32>,
    %185 = arith.truncf %181 : vector<8x16xf32> to vector<8x16xbf16>
    %cst_47 = arith.constant dense<0.000000e+00> : vector<8x99xf32>
    %186 = tpu.matmul %185, %16, %cst_47 {dimension_numbers = #tpu.dot_dimension_numbers<[1], [0], [0], [1], [0, 0, 1, 1], [], []>} : vector<8x16xbf16>, vector<16x99xbf16>, vector<8x99xf32> -> vector<8x99xf32>
    %187 = vector.broadcast %17 : vector<1x99xf32> to vector<8x99xf32>
    %188 = arith.addf %186, %187 : vector<8x99xf32>
    %189 = vector.extract_strided_slice %188 {offsets = [0, 48], sizes = [8, 32], strides = [1, 1]} : vector<8x99xf32> to vector<8x32xf32>
    %c1_48 = arith.constant 1 : index
    %c0_49 = arith.constant 0 : index
    %c0_50 = arith.constant 0 : index
    %190 = vector.load %arg20[%c1_48, %c0_49, %c0_50] : memref<8x8x32xf32, #tpu.memory_space<vmem>>, vector<1x8x32xf32>
    %191 = vector.shape_cast %190 : vector<1x8x32xf32> to vector<8x32xf32>
    %192 = vector.shape_cast %189 : vector<8x32xf32> to vector<1x8x32xf32>
    tpu.vector_store %arg20[%c1_48, %c0_49, %c0_50], %192 {strides = array<i32>} : memref<8x8x32xf32, #tpu.memory_space<vmem>>, vector<1x8x32xf32>,
    %193 = vector.extract_strided_slice %188 {offsets = [0, 0], sizes = [8, 16], strides = [1, 1]} : vector<8x99xf32> to vector<8x16xf32>
    %194 = vector.extract_strided_slice %188 {offsets = [0, 16], sizes = [8, 16], strides = [1, 1]} : vector<8x99xf32> to vector<8x16xf32>
    %195 = vector.extract_strided_slice %188 {offsets = [0, 32], sizes = [8, 16], strides = [1, 1]} : vector<8x99xf32> to vector<8x16xf32>
    %196 = vector.extract_strided_slice %188 {offsets = [0, 96], sizes = [8, 3], strides = [1, 1]} : vector<8x99xf32> to vector<8x3xf32>
    %197 = vector.extract_strided_slice %1 {offsets = [16, 0], sizes = [8, 3], strides = [1, 1]} : vector<64x3xf32> to vector<8x3xf32>
    %198 = vector.extract_strided_slice %7 {offsets = [16, 96], sizes = [8, 3], strides = [1, 1]} : vector<64x99xf32> to vector<8x3xf32>
    %199 = arith.addf %196, %198 : vector<8x3xf32>
    %200 = math.tanh %199 : vector<8x3xf32>
    %201 = vector.extract_strided_slice %200 {offsets = [0, 0], sizes = [8, 1], strides = [1, 1]} : vector<8x3xf32> to vector<8x1xf32>
    %202 = vector.broadcast %201 : vector<8x1xf32> to vector<8x3xf32>
    %203 = vector.broadcast %11 : vector<1x3xf32> to vector<8x3xf32>
    %204 = arith.mulf %202, %203 : vector<8x3xf32>
    %205 = vector.broadcast %15 : vector<1x3xf32> to vector<8x3xf32>
    %206 = arith.addf %205, %204 : vector<8x3xf32>
    %207 = vector.extract_strided_slice %200 {offsets = [0, 1], sizes = [8, 1], strides = [1, 1]} : vector<8x3xf32> to vector<8x1xf32>
    %208 = vector.broadcast %207 : vector<8x1xf32> to vector<8x3xf32>
    %209 = vector.broadcast %12 : vector<1x3xf32> to vector<8x3xf32>
    %210 = arith.mulf %208, %209 : vector<8x3xf32>
    %211 = arith.addf %206, %210 : vector<8x3xf32>
    %212 = vector.extract_strided_slice %200 {offsets = [0, 2], sizes = [8, 1], strides = [1, 1]} : vector<8x3xf32> to vector<8x1xf32>
    %213 = vector.broadcast %212 : vector<8x1xf32> to vector<8x3xf32>
    %214 = vector.broadcast %13 : vector<1x3xf32> to vector<8x3xf32>
    %215 = arith.mulf %213, %214 : vector<8x3xf32>
    %216 = arith.addf %211, %215 : vector<8x3xf32>
    %cst_51 = arith.constant dense<0xFF800000> : vector<8xf32>
    %217 = vector.multi_reduction <maximumf>, %216, %cst_51 [1] : vector<8x3xf32> to vector<8xf32>
    %218 = vector.shape_cast %217 : vector<8xf32> to vector<8x1xf32>
    %219 = vector.broadcast %218 : vector<8x1xf32> to vector<8x3xf32>
    %220 = arith.subf %216, %219 : vector<8x3xf32>
    %221 = math.exp %220 : vector<8x3xf32>
    %cst_52 = arith.constant dense<0.000000e+00> : vector<8xf32>
    %222 = vector.multi_reduction <add>, %221, %cst_52 [1] : vector<8x3xf32> to vector<8xf32>
    %223 = vector.shape_cast %222 : vector<8xf32> to vector<8x1xf32>
    %224 = tpu.reciprocal %223 {approx = true} : vector<8x1xf32> -> vector<8x1xf32>
    %225 = vector.broadcast %224 : vector<8x1xf32> to vector<8x3xf32>
    %226 = arith.mulf %221, %225 : vector<8x3xf32>
    %227 = arith.mulf %197, %226 : vector<8x3xf32>
    %228 = vector.extract_strided_slice %227 {offsets = [0, 0], sizes = [8, 1], strides = [1, 1]} : vector<8x3xf32> to vector<8x1xf32>
    %229 = vector.broadcast %228 : vector<8x1xf32> to vector<8x48xf32>
    %230 = vector.broadcast %8 : vector<1x48xf32> to vector<8x48xf32>
    %231 = arith.mulf %229, %230 : vector<8x48xf32>
    %232 = vector.broadcast %14 : vector<1x48xf32> to vector<8x48xf32>
    %233 = arith.addf %232, %231 : vector<8x48xf32>
    %234 = vector.extract_strided_slice %227 {offsets = [0, 1], sizes = [8, 1], strides = [1, 1]} : vector<8x3xf32> to vector<8x1xf32>
    %235 = vector.broadcast %234 : vector<8x1xf32> to vector<8x48xf32>
    %236 = vector.broadcast %9 : vector<1x48xf32> to vector<8x48xf32>
    %237 = arith.mulf %235, %236 : vector<8x48xf32>
    %238 = arith.addf %233, %237 : vector<8x48xf32>
    %239 = vector.extract_strided_slice %227 {offsets = [0, 2], sizes = [8, 1], strides = [1, 1]} : vector<8x3xf32> to vector<8x1xf32>
    %240 = vector.broadcast %239 : vector<8x1xf32> to vector<8x48xf32>
    %241 = vector.broadcast %10 : vector<1x48xf32> to vector<8x48xf32>
    %242 = arith.mulf %240, %241 : vector<8x48xf32>
    %243 = arith.addf %238, %242 : vector<8x48xf32>
    %244 = vector.extract_strided_slice %243 {offsets = [0, 0], sizes = [8, 16], strides = [1, 1]} : vector<8x48xf32> to vector<8x16xf32>
    %245 = arith.addf %244, %193 : vector<8x16xf32>
    %246 = arith.negf %245 : vector<8x16xf32>
    %247 = math.exp %246 : vector<8x16xf32>
    %cst_53 = arith.constant 1.000000e+00 : f32
    %248 = vector.broadcast %cst_53 : f32 to vector<8x16xf32>
    %249 = arith.addf %248, %247 : vector<8x16xf32>
    %250 = arith.divf %248, %249 : vector<8x16xf32>
    %251 = vector.extract_strided_slice %243 {offsets = [0, 16], sizes = [8, 16], strides = [1, 1]} : vector<8x48xf32> to vector<8x16xf32>
    %252 = arith.addf %251, %194 : vector<8x16xf32>
    %253 = arith.negf %252 : vector<8x16xf32>
    %254 = math.exp %253 : vector<8x16xf32>
    %cst_54 = arith.constant 1.000000e+00 : f32
    %255 = vector.broadcast %cst_54 : f32 to vector<8x16xf32>
    %256 = arith.addf %255, %254 : vector<8x16xf32>
    %257 = arith.divf %255, %256 : vector<8x16xf32>
    %258 = vector.extract_strided_slice %243 {offsets = [0, 32], sizes = [8, 16], strides = [1, 1]} : vector<8x48xf32> to vector<8x16xf32>
    %259 = arith.mulf %250, %195 : vector<8x16xf32>
    %260 = arith.addf %258, %259 : vector<8x16xf32>
    %261 = math.tanh %260 : vector<8x16xf32>
    %cst_55 = arith.constant 1.000000e+00 : f32
    %262 = vector.broadcast %cst_55 : f32 to vector<8x16xf32>
    %263 = arith.subf %262, %257 : vector<8x16xf32>
    %264 = arith.mulf %263, %261 : vector<8x16xf32>
    %265 = arith.mulf %257, %181 : vector<8x16xf32>
    %266 = arith.addf %264, %265 : vector<8x16xf32>
    %c2_56 = arith.constant 2 : index
    %c0_57 = arith.constant 0 : index
    %c0_58 = arith.constant 0 : index
    %267 = vector.load %arg19[%c2_56, %c0_57, %c0_58] : memref<8x8x16xf32, #tpu.memory_space<vmem>>, vector<1x8x16xf32>
    %268 = vector.shape_cast %267 : vector<1x8x16xf32> to vector<8x16xf32>
    %269 = vector.shape_cast %266 : vector<8x16xf32> to vector<1x8x16xf32>
    tpu.vector_store %arg19[%c2_56, %c0_57, %c0_58], %269 {strides = array<i32>} : memref<8x8x16xf32, #tpu.memory_space<vmem>>, vector<1x8x16xf32>,
    %270 = arith.truncf %266 : vector<8x16xf32> to vector<8x16xbf16>
    %cst_59 = arith.constant dense<0.000000e+00> : vector<8x99xf32>
    %271 = tpu.matmul %270, %16, %cst_59 {dimension_numbers = #tpu.dot_dimension_numbers<[1], [0], [0], [1], [0, 0, 1, 1], [], []>} : vector<8x16xbf16>, vector<16x99xbf16>, vector<8x99xf32> -> vector<8x99xf32>
    %272 = vector.broadcast %17 : vector<1x99xf32> to vector<8x99xf32>
    %273 = arith.addf %271, %272 : vector<8x99xf32>
    %274 = vector.extract_strided_slice %273 {offsets = [0, 48], sizes = [8, 32], strides = [1, 1]} : vector<8x99xf32> to vector<8x32xf32>
    %c2_60 = arith.constant 2 : index
    %c0_61 = arith.constant 0 : index
    %c0_62 = arith.constant 0 : index
    %275 = vector.load %arg20[%c2_60, %c0_61, %c0_62] : memref<8x8x32xf32, #tpu.memory_space<vmem>>, vector<1x8x32xf32>
    %276 = vector.shape_cast %275 : vector<1x8x32xf32> to vector<8x32xf32>
    %277 = vector.shape_cast %274 : vector<8x32xf32> to vector<1x8x32xf32>
    tpu.vector_store %arg20[%c2_60, %c0_61, %c0_62], %277 {strides = array<i32>} : memref<8x8x32xf32, #tpu.memory_space<vmem>>, vector<1x8x32xf32>,
    %278 = vector.extract_strided_slice %273 {offsets = [0, 0], sizes = [8, 16], strides = [1, 1]} : vector<8x99xf32> to vector<8x16xf32>
    %279 = vector.extract_strided_slice %273 {offsets = [0, 16], sizes = [8, 16], strides = [1, 1]} : vector<8x99xf32> to vector<8x16xf32>
    %280 = vector.extract_strided_slice %273 {offsets = [0, 32], sizes = [8, 16], strides = [1, 1]} : vector<8x99xf32> to vector<8x16xf32>
    %281 = vector.extract_strided_slice %273 {offsets = [0, 96], sizes = [8, 3], strides = [1, 1]} : vector<8x99xf32> to vector<8x3xf32>
    %282 = vector.extract_strided_slice %1 {offsets = [24, 0], sizes = [8, 3], strides = [1, 1]} : vector<64x3xf32> to vector<8x3xf32>
    %283 = vector.extract_strided_slice %7 {offsets = [24, 96], sizes = [8, 3], strides = [1, 1]} : vector<64x99xf32> to vector<8x3xf32>
    %284 = arith.addf %281, %283 : vector<8x3xf32>
    %285 = math.tanh %284 : vector<8x3xf32>
    %286 = vector.extract_strided_slice %285 {offsets = [0, 0], sizes = [8, 1], strides = [1, 1]} : vector<8x3xf32> to vector<8x1xf32>
    %287 = vector.broadcast %286 : vector<8x1xf32> to vector<8x3xf32>
    %288 = vector.broadcast %11 : vector<1x3xf32> to vector<8x3xf32>
    %289 = arith.mulf %287, %288 : vector<8x3xf32>
    %290 = vector.broadcast %15 : vector<1x3xf32> to vector<8x3xf32>
    %291 = arith.addf %290, %289 : vector<8x3xf32>
    %292 = vector.extract_strided_slice %285 {offsets = [0, 1], sizes = [8, 1], strides = [1, 1]} : vector<8x3xf32> to vector<8x1xf32>
    %293 = vector.broadcast %292 : vector<8x1xf32> to vector<8x3xf32>
    %294 = vector.broadcast %12 : vector<1x3xf32> to vector<8x3xf32>
    %295 = arith.mulf %293, %294 : vector<8x3xf32>
    %296 = arith.addf %291, %295 : vector<8x3xf32>
    %297 = vector.extract_strided_slice %285 {offsets = [0, 2], sizes = [8, 1], strides = [1, 1]} : vector<8x3xf32> to vector<8x1xf32>
    %298 = vector.broadcast %297 : vector<8x1xf32> to vector<8x3xf32>
    %299 = vector.broadcast %13 : vector<1x3xf32> to vector<8x3xf32>
    %300 = arith.mulf %298, %299 : vector<8x3xf32>
    %301 = arith.addf %296, %300 : vector<8x3xf32>
    %cst_63 = arith.constant dense<0xFF800000> : vector<8xf32>
    %302 = vector.multi_reduction <maximumf>, %301, %cst_63 [1] : vector<8x3xf32> to vector<8xf32>
    %303 = vector.shape_cast %302 : vector<8xf32> to vector<8x1xf32>
    %304 = vector.broadcast %303 : vector<8x1xf32> to vector<8x3xf32>
    %305 = arith.subf %301, %304 : vector<8x3xf32>
    %306 = math.exp %305 : vector<8x3xf32>
    %cst_64 = arith.constant dense<0.000000e+00> : vector<8xf32>
    %307 = vector.multi_reduction <add>, %306, %cst_64 [1] : vector<8x3xf32> to vector<8xf32>
    %308 = vector.shape_cast %307 : vector<8xf32> to vector<8x1xf32>
    %309 = tpu.reciprocal %308 {approx = true} : vector<8x1xf32> -> vector<8x1xf32>
    %310 = vector.broadcast %309 : vector<8x1xf32> to vector<8x3xf32>
    %311 = arith.mulf %306, %310 : vector<8x3xf32>
    %312 = arith.mulf %282, %311 : vector<8x3xf32>
    %313 = vector.extract_strided_slice %312 {offsets = [0, 0], sizes = [8, 1], strides = [1, 1]} : vector<8x3xf32> to vector<8x1xf32>
    %314 = vector.broadcast %313 : vector<8x1xf32> to vector<8x48xf32>
    %315 = vector.broadcast %8 : vector<1x48xf32> to vector<8x48xf32>
    %316 = arith.mulf %314, %315 : vector<8x48xf32>
    %317 = vector.broadcast %14 : vector<1x48xf32> to vector<8x48xf32>
    %318 = arith.addf %317, %316 : vector<8x48xf32>
    %319 = vector.extract_strided_slice %312 {offsets = [0, 1], sizes = [8, 1], strides = [1, 1]} : vector<8x3xf32> to vector<8x1xf32>
    %320 = vector.broadcast %319 : vector<8x1xf32> to vector<8x48xf32>
    %321 = vector.broadcast %9 : vector<1x48xf32> to vector<8x48xf32>
    %322 = arith.mulf %320, %321 : vector<8x48xf32>
    %323 = arith.addf %318, %322 : vector<8x48xf32>
    %324 = vector.extract_strided_slice %312 {offsets = [0, 2], sizes = [8, 1], strides = [1, 1]} : vector<8x3xf32> to vector<8x1xf32>
    %325 = vector.broadcast %324 : vector<8x1xf32> to vector<8x48xf32>
    %326 = vector.broadcast %10 : vector<1x48xf32> to vector<8x48xf32>
    %327 = arith.mulf %325, %326 : vector<8x48xf32>
    %328 = arith.addf %323, %327 : vector<8x48xf32>
    %329 = vector.extract_strided_slice %328 {offsets = [0, 0], sizes = [8, 16], strides = [1, 1]} : vector<8x48xf32> to vector<8x16xf32>
    %330 = arith.addf %329, %278 : vector<8x16xf32>
    %331 = arith.negf %330 : vector<8x16xf32>
    %332 = math.exp %331 : vector<8x16xf32>
    %cst_65 = arith.constant 1.000000e+00 : f32
    %333 = vector.broadcast %cst_65 : f32 to vector<8x16xf32>
    %334 = arith.addf %333, %332 : vector<8x16xf32>
    %335 = arith.divf %333, %334 : vector<8x16xf32>
    %336 = vector.extract_strided_slice %328 {offsets = [0, 16], sizes = [8, 16], strides = [1, 1]} : vector<8x48xf32> to vector<8x16xf32>
    %337 = arith.addf %336, %279 : vector<8x16xf32>
    %338 = arith.negf %337 : vector<8x16xf32>
    %339 = math.exp %338 : vector<8x16xf32>
    %cst_66 = arith.constant 1.000000e+00 : f32
    %340 = vector.broadcast %cst_66 : f32 to vector<8x16xf32>
    %341 = arith.addf %340, %339 : vector<8x16xf32>
    %342 = arith.divf %340, %341 : vector<8x16xf32>
    %343 = vector.extract_strided_slice %328 {offsets = [0, 32], sizes = [8, 16], strides = [1, 1]} : vector<8x48xf32> to vector<8x16xf32>
    %344 = arith.mulf %335, %280 : vector<8x16xf32>
    %345 = arith.addf %343, %344 : vector<8x16xf32>
    %346 = math.tanh %345 : vector<8x16xf32>
    %cst_67 = arith.constant 1.000000e+00 : f32
    %347 = vector.broadcast %cst_67 : f32 to vector<8x16xf32>
    %348 = arith.subf %347, %342 : vector<8x16xf32>
    %349 = arith.mulf %348, %346 : vector<8x16xf32>
    %350 = arith.mulf %342, %266 : vector<8x16xf32>
    %351 = arith.addf %349, %350 : vector<8x16xf32>
    %c3 = arith.constant 3 : index
    %c0_68 = arith.constant 0 : index
    %c0_69 = arith.constant 0 : index
    %352 = vector.load %arg19[%c3, %c0_68, %c0_69] : memref<8x8x16xf32, #tpu.memory_space<vmem>>, vector<1x8x16xf32>
    %353 = vector.shape_cast %352 : vector<1x8x16xf32> to vector<8x16xf32>
    %354 = vector.shape_cast %351 : vector<8x16xf32> to vector<1x8x16xf32>
    tpu.vector_store %arg19[%c3, %c0_68, %c0_69], %354 {strides = array<i32>} : memref<8x8x16xf32, #tpu.memory_space<vmem>>, vector<1x8x16xf32>,
    %355 = arith.truncf %351 : vector<8x16xf32> to vector<8x16xbf16>
    %cst_70 = arith.constant dense<0.000000e+00> : vector<8x99xf32>
    %356 = tpu.matmul %355, %16, %cst_70 {dimension_numbers = #tpu.dot_dimension_numbers<[1], [0], [0], [1], [0, 0, 1, 1], [], []>} : vector<8x16xbf16>, vector<16x99xbf16>, vector<8x99xf32> -> vector<8x99xf32>
    %357 = vector.broadcast %17 : vector<1x99xf32> to vector<8x99xf32>
    %358 = arith.addf %356, %357 : vector<8x99xf32>
    %359 = vector.extract_strided_slice %358 {offsets = [0, 48], sizes = [8, 32], strides = [1, 1]} : vector<8x99xf32> to vector<8x32xf32>
    %c3_71 = arith.constant 3 : index
    %c0_72 = arith.constant 0 : index
    %c0_73 = arith.constant 0 : index
    %360 = vector.load %arg20[%c3_71, %c0_72, %c0_73] : memref<8x8x32xf32, #tpu.memory_space<vmem>>, vector<1x8x32xf32>
    %361 = vector.shape_cast %360 : vector<1x8x32xf32> to vector<8x32xf32>
    %362 = vector.shape_cast %359 : vector<8x32xf32> to vector<1x8x32xf32>
    tpu.vector_store %arg20[%c3_71, %c0_72, %c0_73], %362 {strides = array<i32>} : memref<8x8x32xf32, #tpu.memory_space<vmem>>, vector<1x8x32xf32>,
    %363 = vector.extract_strided_slice %358 {offsets = [0, 0], sizes = [8, 16], strides = [1, 1]} : vector<8x99xf32> to vector<8x16xf32>
    %364 = vector.extract_strided_slice %358 {offsets = [0, 16], sizes = [8, 16], strides = [1, 1]} : vector<8x99xf32> to vector<8x16xf32>
    %365 = vector.extract_strided_slice %358 {offsets = [0, 32], sizes = [8, 16], strides = [1, 1]} : vector<8x99xf32> to vector<8x16xf32>
    %366 = vector.extract_strided_slice %358 {offsets = [0, 96], sizes = [8, 3], strides = [1, 1]} : vector<8x99xf32> to vector<8x3xf32>
    %367 = vector.extract_strided_slice %1 {offsets = [32, 0], sizes = [8, 3], strides = [1, 1]} : vector<64x3xf32> to vector<8x3xf32>
    %368 = vector.extract_strided_slice %7 {offsets = [32, 96], sizes = [8, 3], strides = [1, 1]} : vector<64x99xf32> to vector<8x3xf32>
    %369 = arith.addf %366, %368 : vector<8x3xf32>
    %370 = math.tanh %369 : vector<8x3xf32>
    %371 = vector.extract_strided_slice %370 {offsets = [0, 0], sizes = [8, 1], strides = [1, 1]} : vector<8x3xf32> to vector<8x1xf32>
    %372 = vector.broadcast %371 : vector<8x1xf32> to vector<8x3xf32>
    %373 = vector.broadcast %11 : vector<1x3xf32> to vector<8x3xf32>
    %374 = arith.mulf %372, %373 : vector<8x3xf32>
    %375 = vector.broadcast %15 : vector<1x3xf32> to vector<8x3xf32>
    %376 = arith.addf %375, %374 : vector<8x3xf32>
    %377 = vector.extract_strided_slice %370 {offsets = [0, 1], sizes = [8, 1], strides = [1, 1]} : vector<8x3xf32> to vector<8x1xf32>
    %378 = vector.broadcast %377 : vector<8x1xf32> to vector<8x3xf32>
    %379 = vector.broadcast %12 : vector<1x3xf32> to vector<8x3xf32>
    %380 = arith.mulf %378, %379 : vector<8x3xf32>
    %381 = arith.addf %376, %380 : vector<8x3xf32>
    %382 = vector.extract_strided_slice %370 {offsets = [0, 2], sizes = [8, 1], strides = [1, 1]} : vector<8x3xf32> to vector<8x1xf32>
    %383 = vector.broadcast %382 : vector<8x1xf32> to vector<8x3xf32>
    %384 = vector.broadcast %13 : vector<1x3xf32> to vector<8x3xf32>
    %385 = arith.mulf %383, %384 : vector<8x3xf32>
    %386 = arith.addf %381, %385 : vector<8x3xf32>
    %cst_74 = arith.constant dense<0xFF800000> : vector<8xf32>
    %387 = vector.multi_reduction <maximumf>, %386, %cst_74 [1] : vector<8x3xf32> to vector<8xf32>
    %388 = vector.shape_cast %387 : vector<8xf32> to vector<8x1xf32>
    %389 = vector.broadcast %388 : vector<8x1xf32> to vector<8x3xf32>
    %390 = arith.subf %386, %389 : vector<8x3xf32>
    %391 = math.exp %390 : vector<8x3xf32>
    %cst_75 = arith.constant dense<0.000000e+00> : vector<8xf32>
    %392 = vector.multi_reduction <add>, %391, %cst_75 [1] : vector<8x3xf32> to vector<8xf32>
    %393 = vector.shape_cast %392 : vector<8xf32> to vector<8x1xf32>
    %394 = tpu.reciprocal %393 {approx = true} : vector<8x1xf32> -> vector<8x1xf32>
    %395 = vector.broadcast %394 : vector<8x1xf32> to vector<8x3xf32>
    %396 = arith.mulf %391, %395 : vector<8x3xf32>
    %397 = arith.mulf %367, %396 : vector<8x3xf32>
    %398 = vector.extract_strided_slice %397 {offsets = [0, 0], sizes = [8, 1], strides = [1, 1]} : vector<8x3xf32> to vector<8x1xf32>
    %399 = vector.broadcast %398 : vector<8x1xf32> to vector<8x48xf32>
    %400 = vector.broadcast %8 : vector<1x48xf32> to vector<8x48xf32>
    %401 = arith.mulf %399, %400 : vector<8x48xf32>
    %402 = vector.broadcast %14 : vector<1x48xf32> to vector<8x48xf32>
    %403 = arith.addf %402, %401 : vector<8x48xf32>
    %404 = vector.extract_strided_slice %397 {offsets = [0, 1], sizes = [8, 1], strides = [1, 1]} : vector<8x3xf32> to vector<8x1xf32>
    %405 = vector.broadcast %404 : vector<8x1xf32> to vector<8x48xf32>
    %406 = vector.broadcast %9 : vector<1x48xf32> to vector<8x48xf32>
    %407 = arith.mulf %405, %406 : vector<8x48xf32>
    %408 = arith.addf %403, %407 : vector<8x48xf32>
    %409 = vector.extract_strided_slice %397 {offsets = [0, 2], sizes = [8, 1], strides = [1, 1]} : vector<8x3xf32> to vector<8x1xf32>
    %410 = vector.broadcast %409 : vector<8x1xf32> to vector<8x48xf32>
    %411 = vector.broadcast %10 : vector<1x48xf32> to vector<8x48xf32>
    %412 = arith.mulf %410, %411 : vector<8x48xf32>
    %413 = arith.addf %408, %412 : vector<8x48xf32>
    %414 = vector.extract_strided_slice %413 {offsets = [0, 0], sizes = [8, 16], strides = [1, 1]} : vector<8x48xf32> to vector<8x16xf32>
    %415 = arith.addf %414, %363 : vector<8x16xf32>
    %416 = arith.negf %415 : vector<8x16xf32>
    %417 = math.exp %416 : vector<8x16xf32>
    %cst_76 = arith.constant 1.000000e+00 : f32
    %418 = vector.broadcast %cst_76 : f32 to vector<8x16xf32>
    %419 = arith.addf %418, %417 : vector<8x16xf32>
    %420 = arith.divf %418, %419 : vector<8x16xf32>
    %421 = vector.extract_strided_slice %413 {offsets = [0, 16], sizes = [8, 16], strides = [1, 1]} : vector<8x48xf32> to vector<8x16xf32>
    %422 = arith.addf %421, %364 : vector<8x16xf32>
    %423 = arith.negf %422 : vector<8x16xf32>
    %424 = math.exp %423 : vector<8x16xf32>
    %cst_77 = arith.constant 1.000000e+00 : f32
    %425 = vector.broadcast %cst_77 : f32 to vector<8x16xf32>
    %426 = arith.addf %425, %424 : vector<8x16xf32>
    %427 = arith.divf %425, %426 : vector<8x16xf32>
    %428 = vector.extract_strided_slice %413 {offsets = [0, 32], sizes = [8, 16], strides = [1, 1]} : vector<8x48xf32> to vector<8x16xf32>
    %429 = arith.mulf %420, %365 : vector<8x16xf32>
    %430 = arith.addf %428, %429 : vector<8x16xf32>
    %431 = math.tanh %430 : vector<8x16xf32>
    %cst_78 = arith.constant 1.000000e+00 : f32
    %432 = vector.broadcast %cst_78 : f32 to vector<8x16xf32>
    %433 = arith.subf %432, %427 : vector<8x16xf32>
    %434 = arith.mulf %433, %431 : vector<8x16xf32>
    %435 = arith.mulf %427, %351 : vector<8x16xf32>
    %436 = arith.addf %434, %435 : vector<8x16xf32>
    %c4 = arith.constant 4 : index
    %c0_79 = arith.constant 0 : index
    %c0_80 = arith.constant 0 : index
    %437 = vector.load %arg19[%c4, %c0_79, %c0_80] : memref<8x8x16xf32, #tpu.memory_space<vmem>>, vector<1x8x16xf32>
    %438 = vector.shape_cast %437 : vector<1x8x16xf32> to vector<8x16xf32>
    %439 = vector.shape_cast %436 : vector<8x16xf32> to vector<1x8x16xf32>
    tpu.vector_store %arg19[%c4, %c0_79, %c0_80], %439 {strides = array<i32>} : memref<8x8x16xf32, #tpu.memory_space<vmem>>, vector<1x8x16xf32>,
    %440 = arith.truncf %436 : vector<8x16xf32> to vector<8x16xbf16>
    %cst_81 = arith.constant dense<0.000000e+00> : vector<8x99xf32>
    %441 = tpu.matmul %440, %16, %cst_81 {dimension_numbers = #tpu.dot_dimension_numbers<[1], [0], [0], [1], [0, 0, 1, 1], [], []>} : vector<8x16xbf16>, vector<16x99xbf16>, vector<8x99xf32> -> vector<8x99xf32>
    %442 = vector.broadcast %17 : vector<1x99xf32> to vector<8x99xf32>
    %443 = arith.addf %441, %442 : vector<8x99xf32>
    %444 = vector.extract_strided_slice %443 {offsets = [0, 48], sizes = [8, 32], strides = [1, 1]} : vector<8x99xf32> to vector<8x32xf32>
    %c4_82 = arith.constant 4 : index
    %c0_83 = arith.constant 0 : index
    %c0_84 = arith.constant 0 : index
    %445 = vector.load %arg20[%c4_82, %c0_83, %c0_84] : memref<8x8x32xf32, #tpu.memory_space<vmem>>, vector<1x8x32xf32>
    %446 = vector.shape_cast %445 : vector<1x8x32xf32> to vector<8x32xf32>
    %447 = vector.shape_cast %444 : vector<8x32xf32> to vector<1x8x32xf32>
    tpu.vector_store %arg20[%c4_82, %c0_83, %c0_84], %447 {strides = array<i32>} : memref<8x8x32xf32, #tpu.memory_space<vmem>>, vector<1x8x32xf32>,
    %448 = vector.extract_strided_slice %443 {offsets = [0, 0], sizes = [8, 16], strides = [1, 1]} : vector<8x99xf32> to vector<8x16xf32>
    %449 = vector.extract_strided_slice %443 {offsets = [0, 16], sizes = [8, 16], strides = [1, 1]} : vector<8x99xf32> to vector<8x16xf32>
    %450 = vector.extract_strided_slice %443 {offsets = [0, 32], sizes = [8, 16], strides = [1, 1]} : vector<8x99xf32> to vector<8x16xf32>
    %451 = vector.extract_strided_slice %443 {offsets = [0, 96], sizes = [8, 3], strides = [1, 1]} : vector<8x99xf32> to vector<8x3xf32>
    %452 = vector.extract_strided_slice %1 {offsets = [40, 0], sizes = [8, 3], strides = [1, 1]} : vector<64x3xf32> to vector<8x3xf32>
    %453 = vector.extract_strided_slice %7 {offsets = [40, 96], sizes = [8, 3], strides = [1, 1]} : vector<64x99xf32> to vector<8x3xf32>
    %454 = arith.addf %451, %453 : vector<8x3xf32>
    %455 = math.tanh %454 : vector<8x3xf32>
    %456 = vector.extract_strided_slice %455 {offsets = [0, 0], sizes = [8, 1], strides = [1, 1]} : vector<8x3xf32> to vector<8x1xf32>
    %457 = vector.broadcast %456 : vector<8x1xf32> to vector<8x3xf32>
    %458 = vector.broadcast %11 : vector<1x3xf32> to vector<8x3xf32>
    %459 = arith.mulf %457, %458 : vector<8x3xf32>
    %460 = vector.broadcast %15 : vector<1x3xf32> to vector<8x3xf32>
    %461 = arith.addf %460, %459 : vector<8x3xf32>
    %462 = vector.extract_strided_slice %455 {offsets = [0, 1], sizes = [8, 1], strides = [1, 1]} : vector<8x3xf32> to vector<8x1xf32>
    %463 = vector.broadcast %462 : vector<8x1xf32> to vector<8x3xf32>
    %464 = vector.broadcast %12 : vector<1x3xf32> to vector<8x3xf32>
    %465 = arith.mulf %463, %464 : vector<8x3xf32>
    %466 = arith.addf %461, %465 : vector<8x3xf32>
    %467 = vector.extract_strided_slice %455 {offsets = [0, 2], sizes = [8, 1], strides = [1, 1]} : vector<8x3xf32> to vector<8x1xf32>
    %468 = vector.broadcast %467 : vector<8x1xf32> to vector<8x3xf32>
    %469 = vector.broadcast %13 : vector<1x3xf32> to vector<8x3xf32>
    %470 = arith.mulf %468, %469 : vector<8x3xf32>
    %471 = arith.addf %466, %470 : vector<8x3xf32>
    %cst_85 = arith.constant dense<0xFF800000> : vector<8xf32>
    %472 = vector.multi_reduction <maximumf>, %471, %cst_85 [1] : vector<8x3xf32> to vector<8xf32>
    %473 = vector.shape_cast %472 : vector<8xf32> to vector<8x1xf32>
    %474 = vector.broadcast %473 : vector<8x1xf32> to vector<8x3xf32>
    %475 = arith.subf %471, %474 : vector<8x3xf32>
    %476 = math.exp %475 : vector<8x3xf32>
    %cst_86 = arith.constant dense<0.000000e+00> : vector<8xf32>
    %477 = vector.multi_reduction <add>, %476, %cst_86 [1] : vector<8x3xf32> to vector<8xf32>
    %478 = vector.shape_cast %477 : vector<8xf32> to vector<8x1xf32>
    %479 = tpu.reciprocal %478 {approx = true} : vector<8x1xf32> -> vector<8x1xf32>
    %480 = vector.broadcast %479 : vector<8x1xf32> to vector<8x3xf32>
    %481 = arith.mulf %476, %480 : vector<8x3xf32>
    %482 = arith.mulf %452, %481 : vector<8x3xf32>
    %483 = vector.extract_strided_slice %482 {offsets = [0, 0], sizes = [8, 1], strides = [1, 1]} : vector<8x3xf32> to vector<8x1xf32>
    %484 = vector.broadcast %483 : vector<8x1xf32> to vector<8x48xf32>
    %485 = vector.broadcast %8 : vector<1x48xf32> to vector<8x48xf32>
    %486 = arith.mulf %484, %485 : vector<8x48xf32>
    %487 = vector.broadcast %14 : vector<1x48xf32> to vector<8x48xf32>
    %488 = arith.addf %487, %486 : vector<8x48xf32>
    %489 = vector.extract_strided_slice %482 {offsets = [0, 1], sizes = [8, 1], strides = [1, 1]} : vector<8x3xf32> to vector<8x1xf32>
    %490 = vector.broadcast %489 : vector<8x1xf32> to vector<8x48xf32>
    %491 = vector.broadcast %9 : vector<1x48xf32> to vector<8x48xf32>
    %492 = arith.mulf %490, %491 : vector<8x48xf32>
    %493 = arith.addf %488, %492 : vector<8x48xf32>
    %494 = vector.extract_strided_slice %482 {offsets = [0, 2], sizes = [8, 1], strides = [1, 1]} : vector<8x3xf32> to vector<8x1xf32>
    %495 = vector.broadcast %494 : vector<8x1xf32> to vector<8x48xf32>
    %496 = vector.broadcast %10 : vector<1x48xf32> to vector<8x48xf32>
    %497 = arith.mulf %495, %496 : vector<8x48xf32>
    %498 = arith.addf %493, %497 : vector<8x48xf32>
    %499 = vector.extract_strided_slice %498 {offsets = [0, 0], sizes = [8, 16], strides = [1, 1]} : vector<8x48xf32> to vector<8x16xf32>
    %500 = arith.addf %499, %448 : vector<8x16xf32>
    %501 = arith.negf %500 : vector<8x16xf32>
    %502 = math.exp %501 : vector<8x16xf32>
    %cst_87 = arith.constant 1.000000e+00 : f32
    %503 = vector.broadcast %cst_87 : f32 to vector<8x16xf32>
    %504 = arith.addf %503, %502 : vector<8x16xf32>
    %505 = arith.divf %503, %504 : vector<8x16xf32>
    %506 = vector.extract_strided_slice %498 {offsets = [0, 16], sizes = [8, 16], strides = [1, 1]} : vector<8x48xf32> to vector<8x16xf32>
    %507 = arith.addf %506, %449 : vector<8x16xf32>
    %508 = arith.negf %507 : vector<8x16xf32>
    %509 = math.exp %508 : vector<8x16xf32>
    %cst_88 = arith.constant 1.000000e+00 : f32
    %510 = vector.broadcast %cst_88 : f32 to vector<8x16xf32>
    %511 = arith.addf %510, %509 : vector<8x16xf32>
    %512 = arith.divf %510, %511 : vector<8x16xf32>
    %513 = vector.extract_strided_slice %498 {offsets = [0, 32], sizes = [8, 16], strides = [1, 1]} : vector<8x48xf32> to vector<8x16xf32>
    %514 = arith.mulf %505, %450 : vector<8x16xf32>
    %515 = arith.addf %513, %514 : vector<8x16xf32>
    %516 = math.tanh %515 : vector<8x16xf32>
    %cst_89 = arith.constant 1.000000e+00 : f32
    %517 = vector.broadcast %cst_89 : f32 to vector<8x16xf32>
    %518 = arith.subf %517, %512 : vector<8x16xf32>
    %519 = arith.mulf %518, %516 : vector<8x16xf32>
    %520 = arith.mulf %512, %436 : vector<8x16xf32>
    %521 = arith.addf %519, %520 : vector<8x16xf32>
    %c5 = arith.constant 5 : index
    %c0_90 = arith.constant 0 : index
    %c0_91 = arith.constant 0 : index
    %522 = vector.load %arg19[%c5, %c0_90, %c0_91] : memref<8x8x16xf32, #tpu.memory_space<vmem>>, vector<1x8x16xf32>
    %523 = vector.shape_cast %522 : vector<1x8x16xf32> to vector<8x16xf32>
    %524 = vector.shape_cast %521 : vector<8x16xf32> to vector<1x8x16xf32>
    tpu.vector_store %arg19[%c5, %c0_90, %c0_91], %524 {strides = array<i32>} : memref<8x8x16xf32, #tpu.memory_space<vmem>>, vector<1x8x16xf32>,
    %525 = arith.truncf %521 : vector<8x16xf32> to vector<8x16xbf16>
    %cst_92 = arith.constant dense<0.000000e+00> : vector<8x99xf32>
    %526 = tpu.matmul %525, %16, %cst_92 {dimension_numbers = #tpu.dot_dimension_numbers<[1], [0], [0], [1], [0, 0, 1, 1], [], []>} : vector<8x16xbf16>, vector<16x99xbf16>, vector<8x99xf32> -> vector<8x99xf32>
    %527 = vector.broadcast %17 : vector<1x99xf32> to vector<8x99xf32>
    %528 = arith.addf %526, %527 : vector<8x99xf32>
    %529 = vector.extract_strided_slice %528 {offsets = [0, 48], sizes = [8, 32], strides = [1, 1]} : vector<8x99xf32> to vector<8x32xf32>
    %c5_93 = arith.constant 5 : index
    %c0_94 = arith.constant 0 : index
    %c0_95 = arith.constant 0 : index
    %530 = vector.load %arg20[%c5_93, %c0_94, %c0_95] : memref<8x8x32xf32, #tpu.memory_space<vmem>>, vector<1x8x32xf32>
    %531 = vector.shape_cast %530 : vector<1x8x32xf32> to vector<8x32xf32>
    %532 = vector.shape_cast %529 : vector<8x32xf32> to vector<1x8x32xf32>
    tpu.vector_store %arg20[%c5_93, %c0_94, %c0_95], %532 {strides = array<i32>} : memref<8x8x32xf32, #tpu.memory_space<vmem>>, vector<1x8x32xf32>,
    %533 = vector.extract_strided_slice %528 {offsets = [0, 0], sizes = [8, 16], strides = [1, 1]} : vector<8x99xf32> to vector<8x16xf32>
    %534 = vector.extract_strided_slice %528 {offsets = [0, 16], sizes = [8, 16], strides = [1, 1]} : vector<8x99xf32> to vector<8x16xf32>
    %535 = vector.extract_strided_slice %528 {offsets = [0, 32], sizes = [8, 16], strides = [1, 1]} : vector<8x99xf32> to vector<8x16xf32>
    %536 = vector.extract_strided_slice %528 {offsets = [0, 96], sizes = [8, 3], strides = [1, 1]} : vector<8x99xf32> to vector<8x3xf32>
    %537 = vector.extract_strided_slice %1 {offsets = [48, 0], sizes = [8, 3], strides = [1, 1]} : vector<64x3xf32> to vector<8x3xf32>
    %538 = vector.extract_strided_slice %7 {offsets = [48, 96], sizes = [8, 3], strides = [1, 1]} : vector<64x99xf32> to vector<8x3xf32>
    %539 = arith.addf %536, %538 : vector<8x3xf32>
    %540 = math.tanh %539 : vector<8x3xf32>
    %541 = vector.extract_strided_slice %540 {offsets = [0, 0], sizes = [8, 1], strides = [1, 1]} : vector<8x3xf32> to vector<8x1xf32>
    %542 = vector.broadcast %541 : vector<8x1xf32> to vector<8x3xf32>
    %543 = vector.broadcast %11 : vector<1x3xf32> to vector<8x3xf32>
    %544 = arith.mulf %542, %543 : vector<8x3xf32>
    %545 = vector.broadcast %15 : vector<1x3xf32> to vector<8x3xf32>
    %546 = arith.addf %545, %544 : vector<8x3xf32>
    %547 = vector.extract_strided_slice %540 {offsets = [0, 1], sizes = [8, 1], strides = [1, 1]} : vector<8x3xf32> to vector<8x1xf32>
    %548 = vector.broadcast %547 : vector<8x1xf32> to vector<8x3xf32>
    %549 = vector.broadcast %12 : vector<1x3xf32> to vector<8x3xf32>
    %550 = arith.mulf %548, %549 : vector<8x3xf32>
    %551 = arith.addf %546, %550 : vector<8x3xf32>
    %552 = vector.extract_strided_slice %540 {offsets = [0, 2], sizes = [8, 1], strides = [1, 1]} : vector<8x3xf32> to vector<8x1xf32>
    %553 = vector.broadcast %552 : vector<8x1xf32> to vector<8x3xf32>
    %554 = vector.broadcast %13 : vector<1x3xf32> to vector<8x3xf32>
    %555 = arith.mulf %553, %554 : vector<8x3xf32>
    %556 = arith.addf %551, %555 : vector<8x3xf32>
    %cst_96 = arith.constant dense<0xFF800000> : vector<8xf32>
    %557 = vector.multi_reduction <maximumf>, %556, %cst_96 [1] : vector<8x3xf32> to vector<8xf32>
    %558 = vector.shape_cast %557 : vector<8xf32> to vector<8x1xf32>
    %559 = vector.broadcast %558 : vector<8x1xf32> to vector<8x3xf32>
    %560 = arith.subf %556, %559 : vector<8x3xf32>
    %561 = math.exp %560 : vector<8x3xf32>
    %cst_97 = arith.constant dense<0.000000e+00> : vector<8xf32>
    %562 = vector.multi_reduction <add>, %561, %cst_97 [1] : vector<8x3xf32> to vector<8xf32>
    %563 = vector.shape_cast %562 : vector<8xf32> to vector<8x1xf32>
    %564 = tpu.reciprocal %563 {approx = true} : vector<8x1xf32> -> vector<8x1xf32>
    %565 = vector.broadcast %564 : vector<8x1xf32> to vector<8x3xf32>
    %566 = arith.mulf %561, %565 : vector<8x3xf32>
    %567 = arith.mulf %537, %566 : vector<8x3xf32>
    %568 = vector.extract_strided_slice %567 {offsets = [0, 0], sizes = [8, 1], strides = [1, 1]} : vector<8x3xf32> to vector<8x1xf32>
    %569 = vector.broadcast %568 : vector<8x1xf32> to vector<8x48xf32>
    %570 = vector.broadcast %8 : vector<1x48xf32> to vector<8x48xf32>
    %571 = arith.mulf %569, %570 : vector<8x48xf32>
    %572 = vector.broadcast %14 : vector<1x48xf32> to vector<8x48xf32>
    %573 = arith.addf %572, %571 : vector<8x48xf32>
    %574 = vector.extract_strided_slice %567 {offsets = [0, 1], sizes = [8, 1], strides = [1, 1]} : vector<8x3xf32> to vector<8x1xf32>
    %575 = vector.broadcast %574 : vector<8x1xf32> to vector<8x48xf32>
    %576 = vector.broadcast %9 : vector<1x48xf32> to vector<8x48xf32>
    %577 = arith.mulf %575, %576 : vector<8x48xf32>
    %578 = arith.addf %573, %577 : vector<8x48xf32>
    %579 = vector.extract_strided_slice %567 {offsets = [0, 2], sizes = [8, 1], strides = [1, 1]} : vector<8x3xf32> to vector<8x1xf32>
    %580 = vector.broadcast %579 : vector<8x1xf32> to vector<8x48xf32>
    %581 = vector.broadcast %10 : vector<1x48xf32> to vector<8x48xf32>
    %582 = arith.mulf %580, %581 : vector<8x48xf32>
    %583 = arith.addf %578, %582 : vector<8x48xf32>
    %584 = vector.extract_strided_slice %583 {offsets = [0, 0], sizes = [8, 16], strides = [1, 1]} : vector<8x48xf32> to vector<8x16xf32>
    %585 = arith.addf %584, %533 : vector<8x16xf32>
    %586 = arith.negf %585 : vector<8x16xf32>
    %587 = math.exp %586 : vector<8x16xf32>
    %cst_98 = arith.constant 1.000000e+00 : f32
    %588 = vector.broadcast %cst_98 : f32 to vector<8x16xf32>
    %589 = arith.addf %588, %587 : vector<8x16xf32>
    %590 = arith.divf %588, %589 : vector<8x16xf32>
    %591 = vector.extract_strided_slice %583 {offsets = [0, 16], sizes = [8, 16], strides = [1, 1]} : vector<8x48xf32> to vector<8x16xf32>
    %592 = arith.addf %591, %534 : vector<8x16xf32>
    %593 = arith.negf %592 : vector<8x16xf32>
    %594 = math.exp %593 : vector<8x16xf32>
    %cst_99 = arith.constant 1.000000e+00 : f32
    %595 = vector.broadcast %cst_99 : f32 to vector<8x16xf32>
    %596 = arith.addf %595, %594 : vector<8x16xf32>
    %597 = arith.divf %595, %596 : vector<8x16xf32>
    %598 = vector.extract_strided_slice %583 {offsets = [0, 32], sizes = [8, 16], strides = [1, 1]} : vector<8x48xf32> to vector<8x16xf32>
    %599 = arith.mulf %590, %535 : vector<8x16xf32>
    %600 = arith.addf %598, %599 : vector<8x16xf32>
    %601 = math.tanh %600 : vector<8x16xf32>
    %cst_100 = arith.constant 1.000000e+00 : f32
    %602 = vector.broadcast %cst_100 : f32 to vector<8x16xf32>
    %603 = arith.subf %602, %597 : vector<8x16xf32>
    %604 = arith.mulf %603, %601 : vector<8x16xf32>
    %605 = arith.mulf %597, %521 : vector<8x16xf32>
    %606 = arith.addf %604, %605 : vector<8x16xf32>
    %c6 = arith.constant 6 : index
    %c0_101 = arith.constant 0 : index
    %c0_102 = arith.constant 0 : index
    %607 = vector.load %arg19[%c6, %c0_101, %c0_102] : memref<8x8x16xf32, #tpu.memory_space<vmem>>, vector<1x8x16xf32>
    %608 = vector.shape_cast %607 : vector<1x8x16xf32> to vector<8x16xf32>
    %609 = vector.shape_cast %606 : vector<8x16xf32> to vector<1x8x16xf32>
    tpu.vector_store %arg19[%c6, %c0_101, %c0_102], %609 {strides = array<i32>} : memref<8x8x16xf32, #tpu.memory_space<vmem>>, vector<1x8x16xf32>,
    %610 = arith.truncf %606 : vector<8x16xf32> to vector<8x16xbf16>
    %cst_103 = arith.constant dense<0.000000e+00> : vector<8x99xf32>
    %611 = tpu.matmul %610, %16, %cst_103 {dimension_numbers = #tpu.dot_dimension_numbers<[1], [0], [0], [1], [0, 0, 1, 1], [], []>} : vector<8x16xbf16>, vector<16x99xbf16>, vector<8x99xf32> -> vector<8x99xf32>
    %612 = vector.broadcast %17 : vector<1x99xf32> to vector<8x99xf32>
    %613 = arith.addf %611, %612 : vector<8x99xf32>
    %614 = vector.extract_strided_slice %613 {offsets = [0, 48], sizes = [8, 32], strides = [1, 1]} : vector<8x99xf32> to vector<8x32xf32>
    %c6_104 = arith.constant 6 : index
    %c0_105 = arith.constant 0 : index
    %c0_106 = arith.constant 0 : index
    %615 = vector.load %arg20[%c6_104, %c0_105, %c0_106] : memref<8x8x32xf32, #tpu.memory_space<vmem>>, vector<1x8x32xf32>
    %616 = vector.shape_cast %615 : vector<1x8x32xf32> to vector<8x32xf32>
    %617 = vector.shape_cast %614 : vector<8x32xf32> to vector<1x8x32xf32>
    tpu.vector_store %arg20[%c6_104, %c0_105, %c0_106], %617 {strides = array<i32>} : memref<8x8x32xf32, #tpu.memory_space<vmem>>, vector<1x8x32xf32>,
    %618 = vector.extract_strided_slice %613 {offsets = [0, 0], sizes = [8, 16], strides = [1, 1]} : vector<8x99xf32> to vector<8x16xf32>
    %619 = vector.extract_strided_slice %613 {offsets = [0, 16], sizes = [8, 16], strides = [1, 1]} : vector<8x99xf32> to vector<8x16xf32>
    %620 = vector.extract_strided_slice %613 {offsets = [0, 32], sizes = [8, 16], strides = [1, 1]} : vector<8x99xf32> to vector<8x16xf32>
    %621 = vector.extract_strided_slice %613 {offsets = [0, 96], sizes = [8, 3], strides = [1, 1]} : vector<8x99xf32> to vector<8x3xf32>
    %622 = vector.extract_strided_slice %1 {offsets = [56, 0], sizes = [8, 3], strides = [1, 1]} : vector<64x3xf32> to vector<8x3xf32>
    %623 = vector.extract_strided_slice %7 {offsets = [56, 96], sizes = [8, 3], strides = [1, 1]} : vector<64x99xf32> to vector<8x3xf32>
    %624 = arith.addf %621, %623 : vector<8x3xf32>
    %625 = math.tanh %624 : vector<8x3xf32>
    %626 = vector.extract_strided_slice %625 {offsets = [0, 0], sizes = [8, 1], strides = [1, 1]} : vector<8x3xf32> to vector<8x1xf32>
    %627 = vector.broadcast %626 : vector<8x1xf32> to vector<8x3xf32>
    %628 = vector.broadcast %11 : vector<1x3xf32> to vector<8x3xf32>
    %629 = arith.mulf %627, %628 : vector<8x3xf32>
    %630 = vector.broadcast %15 : vector<1x3xf32> to vector<8x3xf32>
    %631 = arith.addf %630, %629 : vector<8x3xf32>
    %632 = vector.extract_strided_slice %625 {offsets = [0, 1], sizes = [8, 1], strides = [1, 1]} : vector<8x3xf32> to vector<8x1xf32>
    %633 = vector.broadcast %632 : vector<8x1xf32> to vector<8x3xf32>
    %634 = vector.broadcast %12 : vector<1x3xf32> to vector<8x3xf32>
    %635 = arith.mulf %633, %634 : vector<8x3xf32>
    %636 = arith.addf %631, %635 : vector<8x3xf32>
    %637 = vector.extract_strided_slice %625 {offsets = [0, 2], sizes = [8, 1], strides = [1, 1]} : vector<8x3xf32> to vector<8x1xf32>
    %638 = vector.broadcast %637 : vector<8x1xf32> to vector<8x3xf32>
    %639 = vector.broadcast %13 : vector<1x3xf32> to vector<8x3xf32>
    %640 = arith.mulf %638, %639 : vector<8x3xf32>
    %641 = arith.addf %636, %640 : vector<8x3xf32>
    %cst_107 = arith.constant dense<0xFF800000> : vector<8xf32>
    %642 = vector.multi_reduction <maximumf>, %641, %cst_107 [1] : vector<8x3xf32> to vector<8xf32>
    %643 = vector.shape_cast %642 : vector<8xf32> to vector<8x1xf32>
    %644 = vector.broadcast %643 : vector<8x1xf32> to vector<8x3xf32>
    %645 = arith.subf %641, %644 : vector<8x3xf32>
    %646 = math.exp %645 : vector<8x3xf32>
    %cst_108 = arith.constant dense<0.000000e+00> : vector<8xf32>
    %647 = vector.multi_reduction <add>, %646, %cst_108 [1] : vector<8x3xf32> to vector<8xf32>
    %648 = vector.shape_cast %647 : vector<8xf32> to vector<8x1xf32>
    %649 = tpu.reciprocal %648 {approx = true} : vector<8x1xf32> -> vector<8x1xf32>
    %650 = vector.broadcast %649 : vector<8x1xf32> to vector<8x3xf32>
    %651 = arith.mulf %646, %650 : vector<8x3xf32>
    %652 = arith.mulf %622, %651 : vector<8x3xf32>
    %653 = vector.extract_strided_slice %652 {offsets = [0, 0], sizes = [8, 1], strides = [1, 1]} : vector<8x3xf32> to vector<8x1xf32>
    %654 = vector.broadcast %653 : vector<8x1xf32> to vector<8x48xf32>
    %655 = vector.broadcast %8 : vector<1x48xf32> to vector<8x48xf32>
    %656 = arith.mulf %654, %655 : vector<8x48xf32>
    %657 = vector.broadcast %14 : vector<1x48xf32> to vector<8x48xf32>
    %658 = arith.addf %657, %656 : vector<8x48xf32>
    %659 = vector.extract_strided_slice %652 {offsets = [0, 1], sizes = [8, 1], strides = [1, 1]} : vector<8x3xf32> to vector<8x1xf32>
    %660 = vector.broadcast %659 : vector<8x1xf32> to vector<8x48xf32>
    %661 = vector.broadcast %9 : vector<1x48xf32> to vector<8x48xf32>
    %662 = arith.mulf %660, %661 : vector<8x48xf32>
    %663 = arith.addf %658, %662 : vector<8x48xf32>
    %664 = vector.extract_strided_slice %652 {offsets = [0, 2], sizes = [8, 1], strides = [1, 1]} : vector<8x3xf32> to vector<8x1xf32>
    %665 = vector.broadcast %664 : vector<8x1xf32> to vector<8x48xf32>
    %666 = vector.broadcast %10 : vector<1x48xf32> to vector<8x48xf32>
    %667 = arith.mulf %665, %666 : vector<8x48xf32>
    %668 = arith.addf %663, %667 : vector<8x48xf32>
    %669 = vector.extract_strided_slice %668 {offsets = [0, 0], sizes = [8, 16], strides = [1, 1]} : vector<8x48xf32> to vector<8x16xf32>
    %670 = arith.addf %669, %618 : vector<8x16xf32>
    %671 = arith.negf %670 : vector<8x16xf32>
    %672 = math.exp %671 : vector<8x16xf32>
    %cst_109 = arith.constant 1.000000e+00 : f32
    %673 = vector.broadcast %cst_109 : f32 to vector<8x16xf32>
    %674 = arith.addf %673, %672 : vector<8x16xf32>
    %675 = arith.divf %673, %674 : vector<8x16xf32>
    %676 = vector.extract_strided_slice %668 {offsets = [0, 16], sizes = [8, 16], strides = [1, 1]} : vector<8x48xf32> to vector<8x16xf32>
    %677 = arith.addf %676, %619 : vector<8x16xf32>
    %678 = arith.negf %677 : vector<8x16xf32>
    %679 = math.exp %678 : vector<8x16xf32>
    %cst_110 = arith.constant 1.000000e+00 : f32
    %680 = vector.broadcast %cst_110 : f32 to vector<8x16xf32>
    %681 = arith.addf %680, %679 : vector<8x16xf32>
    %682 = arith.divf %680, %681 : vector<8x16xf32>
    %683 = vector.extract_strided_slice %668 {offsets = [0, 32], sizes = [8, 16], strides = [1, 1]} : vector<8x48xf32> to vector<8x16xf32>
    %684 = arith.mulf %675, %620 : vector<8x16xf32>
    %685 = arith.addf %683, %684 : vector<8x16xf32>
    %686 = math.tanh %685 : vector<8x16xf32>
    %cst_111 = arith.constant 1.000000e+00 : f32
    %687 = vector.broadcast %cst_111 : f32 to vector<8x16xf32>
    %688 = arith.subf %687, %682 : vector<8x16xf32>
    %689 = arith.mulf %688, %686 : vector<8x16xf32>
    %690 = arith.mulf %682, %606 : vector<8x16xf32>
    %691 = arith.addf %689, %690 : vector<8x16xf32>
    %c7 = arith.constant 7 : index
    %c0_112 = arith.constant 0 : index
    %c0_113 = arith.constant 0 : index
    %692 = vector.load %arg19[%c7, %c0_112, %c0_113] : memref<8x8x16xf32, #tpu.memory_space<vmem>>, vector<1x8x16xf32>
    %693 = vector.shape_cast %692 : vector<1x8x16xf32> to vector<8x16xf32>
    %694 = vector.shape_cast %691 : vector<8x16xf32> to vector<1x8x16xf32>
    tpu.vector_store %arg19[%c7, %c0_112, %c0_113], %694 {strides = array<i32>} : memref<8x8x16xf32, #tpu.memory_space<vmem>>, vector<1x8x16xf32>,
    %695 = arith.truncf %691 : vector<8x16xf32> to vector<8x16xbf16>
    %cst_114 = arith.constant dense<0.000000e+00> : vector<8x99xf32>
    %696 = tpu.matmul %695, %16, %cst_114 {dimension_numbers = #tpu.dot_dimension_numbers<[1], [0], [0], [1], [0, 0, 1, 1], [], []>} : vector<8x16xbf16>, vector<16x99xbf16>, vector<8x99xf32> -> vector<8x99xf32>
    %697 = vector.broadcast %17 : vector<1x99xf32> to vector<8x99xf32>
    %698 = arith.addf %696, %697 : vector<8x99xf32>
    %699 = vector.extract_strided_slice %698 {offsets = [0, 48], sizes = [8, 32], strides = [1, 1]} : vector<8x99xf32> to vector<8x32xf32>
    %c7_115 = arith.constant 7 : index
    %c0_116 = arith.constant 0 : index
    %c0_117 = arith.constant 0 : index
    %700 = vector.load %arg20[%c7_115, %c0_116, %c0_117] : memref<8x8x32xf32, #tpu.memory_space<vmem>>, vector<1x8x32xf32>
    %701 = vector.shape_cast %700 : vector<1x8x32xf32> to vector<8x32xf32>
    %702 = vector.shape_cast %699 : vector<8x32xf32> to vector<1x8x32xf32>
    tpu.vector_store %arg20[%c7_115, %c0_116, %c0_117], %702 {strides = array<i32>} : memref<8x8x32xf32, #tpu.memory_space<vmem>>, vector<1x8x32xf32>,
    %c0_118 = arith.constant 0 : index
    %c0_119 = arith.constant 0 : index
    %c0_120 = arith.constant 0 : index
    %703 = vector.load %arg19[%c0_118, %c0_119, %c0_120] : memref<8x8x16xf32, #tpu.memory_space<vmem>>, vector<8x8x16xf32>
    %c0_121 = arith.constant 0 : index
    %c0_122 = arith.constant 0 : index
    %c0_123 = arith.constant 0 : index
    %704 = vector.load %arg20[%c0_121, %c0_122, %c0_123] : memref<8x8x32xf32, #tpu.memory_space<vmem>>, vector<8x8x32xf32>
    %c0_124 = arith.constant 0 : index
    %c0_125 = arith.constant 0 : index
    %705 = vector.load %arg15[%c0_124, %c0_125] : memref<1x32xf32, #tpu.memory_space<vmem>>, vector<1x32xf32>
    %706 = vector.shape_cast %705 : vector<1x32xf32> to vector<1x1x32xf32>
    %c0_126 = arith.constant 0 : index
    %c0_127 = arith.constant 0 : index
    %707 = vector.load %arg12[%c0_126, %c0_127] : memref<32x128xbf16, #tpu.memory_space<vmem>>, vector<32x128xbf16>
    %c0_128 = arith.constant 0 : index
    %c0_129 = arith.constant 0 : index
    %708 = vector.load %arg13[%c0_128, %c0_129] : memref<1x128xf32, #tpu.memory_space<vmem>>, vector<1x128xf32>
    %c0_130 = arith.constant 0 : index
    %c0_131 = arith.constant 0 : index
    %709 = vector.load %arg14[%c0_130, %c0_131] : memref<16x96xbf16, #tpu.memory_space<vmem>>, vector<16x96xbf16>
    %c0_132 = arith.constant 0 : index
    %c0_133 = arith.constant 0 : index
    %710 = vector.load %arg3[%c0_132, %c0_133] : memref<8x32xf32, #tpu.memory_space<vmem>>, vector<8x32xf32>
    %711 = arith.truncf %710 : vector<8x32xf32> to vector<8x32xbf16>
    %cst_134 = arith.constant dense<0.000000e+00> : vector<8x128xf32>
    %712 = tpu.matmul %711, %707, %cst_134 {dimension_numbers = #tpu.dot_dimension_numbers<[1], [0], [0], [1], [0, 0, 1, 1], [], []>} : vector<8x32xbf16>, vector<32x128xbf16>, vector<8x128xf32> -> vector<8x128xf32>
    %713 = vector.broadcast %708 : vector<1x128xf32> to vector<8x128xf32>
    %714 = arith.addf %712, %713 : vector<8x128xf32>
    %715 = vector.extract_strided_slice %714 {offsets = [0, 0], sizes = [8, 32], strides = [1, 1]} : vector<8x128xf32> to vector<8x32xf32>
    %716 = vector.extract_strided_slice %714 {offsets = [0, 32], sizes = [8, 32], strides = [1, 1]} : vector<8x128xf32> to vector<8x32xf32>
    %717 = vector.extract_strided_slice %714 {offsets = [0, 64], sizes = [8, 32], strides = [1, 1]} : vector<8x128xf32> to vector<8x32xf32>
    %718 = vector.extract_strided_slice %714 {offsets = [0, 96], sizes = [8, 32], strides = [1, 1]} : vector<8x128xf32> to vector<8x32xf32>
    %719 = vector.shape_cast %718 : vector<8x32xf32> to vector<1x8x32xf32>
    %720 = vector.broadcast %719 : vector<1x8x32xf32> to vector<8x8x32xf32>
    %721 = arith.addf %704, %720 : vector<8x8x32xf32>
    %722 = math.tanh %721 : vector<8x8x32xf32>
    %723 = vector.broadcast %706 : vector<1x1x32xf32> to vector<8x8x32xf32>
    %724 = arith.mulf %722, %723 : vector<8x8x32xf32>
    %cst_135 = arith.constant dense<0.000000e+00> : vector<8x8xf32>
    %725 = vector.multi_reduction <add>, %724, %cst_135 [2] : vector<8x8x32xf32> to vector<8x8xf32>
    %726 = vector.shape_cast %725 : vector<8x8xf32> to vector<8x8x1xf32>
    %cst_136 = arith.constant dense<0xFF800000> : vector<8x1xf32>
    %727 = vector.multi_reduction <maximumf>, %726, %cst_136 [0] : vector<8x8x1xf32> to vector<8x1xf32>
    %728 = vector.shape_cast %727 : vector<8x1xf32> to vector<1x8x1xf32>
    %729 = vector.broadcast %728 : vector<1x8x1xf32> to vector<8x8x1xf32>
    %730 = arith.subf %726, %729 : vector<8x8x1xf32>
    %731 = math.exp %730 : vector<8x8x1xf32>
    %cst_137 = arith.constant dense<0.000000e+00> : vector<8x1xf32>
    %732 = vector.multi_reduction <add>, %731, %cst_137 [0] : vector<8x8x1xf32> to vector<8x1xf32>
    %733 = tpu.reciprocal %732 {approx = true} : vector<8x1xf32> -> vector<8x1xf32>
    %734 = vector.shape_cast %733 : vector<8x1xf32> to vector<1x8x1xf32>
    %735 = vector.broadcast %734 : vector<1x8x1xf32> to vector<8x8x1xf32>
    %736 = arith.mulf %731, %735 : vector<8x8x1xf32>
    %737 = vector.broadcast %736 : vector<8x8x1xf32> to vector<8x8x16xf32>
    %738 = arith.mulf %737, %703 : vector<8x8x16xf32>
    %cst_138 = arith.constant dense<0.000000e+00> : vector<8x16xf32>
    %739 = vector.multi_reduction <add>, %738, %cst_138 [0] : vector<8x8x16xf32> to vector<8x16xf32>
    %740 = arith.truncf %739 : vector<8x16xf32> to vector<8x16xbf16>
    %cst_139 = arith.constant dense<0.000000e+00> : vector<8x96xf32>
    %741 = tpu.matmul %740, %709, %cst_139 {dimension_numbers = #tpu.dot_dimension_numbers<[1], [0], [0], [1], [0, 0, 1, 1], [], []>} : vector<8x16xbf16>, vector<16x96xbf16>, vector<8x96xf32> -> vector<8x96xf32>
    %742 = vector.extract_strided_slice %7 {offsets = [0, 0], sizes = [8, 96], strides = [1, 1]} : vector<64x99xf32> to vector<8x96xf32>
    %743 = arith.addf %741, %742 : vector<8x96xf32>
    %744 = vector.extract_strided_slice %743 {offsets = [0, 0], sizes = [8, 32], strides = [1, 1]} : vector<8x96xf32> to vector<8x32xf32>
    %745 = arith.addf %744, %715 : vector<8x32xf32>
    %746 = arith.negf %745 : vector<8x32xf32>
    %747 = math.exp %746 : vector<8x32xf32>
    %cst_140 = arith.constant 1.000000e+00 : f32
    %748 = vector.broadcast %cst_140 : f32 to vector<8x32xf32>
    %749 = arith.addf %748, %747 : vector<8x32xf32>
    %750 = arith.divf %748, %749 : vector<8x32xf32>
    %751 = vector.extract_strided_slice %743 {offsets = [0, 32], sizes = [8, 32], strides = [1, 1]} : vector<8x96xf32> to vector<8x32xf32>
    %752 = arith.addf %751, %716 : vector<8x32xf32>
    %753 = arith.negf %752 : vector<8x32xf32>
    %754 = math.exp %753 : vector<8x32xf32>
    %cst_141 = arith.constant 1.000000e+00 : f32
    %755 = vector.broadcast %cst_141 : f32 to vector<8x32xf32>
    %756 = arith.addf %755, %754 : vector<8x32xf32>
    %757 = arith.divf %755, %756 : vector<8x32xf32>
    %758 = vector.extract_strided_slice %743 {offsets = [0, 64], sizes = [8, 32], strides = [1, 1]} : vector<8x96xf32> to vector<8x32xf32>
    %759 = arith.mulf %750, %717 : vector<8x32xf32>
    %760 = arith.addf %758, %759 : vector<8x32xf32>
    %761 = math.tanh %760 : vector<8x32xf32>
    %cst_142 = arith.constant 1.000000e+00 : f32
    %762 = vector.broadcast %cst_142 : f32 to vector<8x32xf32>
    %763 = arith.subf %762, %757 : vector<8x32xf32>
    %764 = arith.mulf %763, %761 : vector<8x32xf32>
    %765 = arith.mulf %757, %710 : vector<8x32xf32>
    %766 = arith.addf %764, %765 : vector<8x32xf32>
    %767 = arith.truncf %766 : vector<8x32xf32> to vector<8x32xbf16>
    %cst_143 = arith.constant dense<0.000000e+00> : vector<8x128xf32>
    %768 = tpu.matmul %767, %707, %cst_143 {dimension_numbers = #tpu.dot_dimension_numbers<[1], [0], [0], [1], [0, 0, 1, 1], [], []>} : vector<8x32xbf16>, vector<32x128xbf16>, vector<8x128xf32> -> vector<8x128xf32>
    %769 = vector.broadcast %708 : vector<1x128xf32> to vector<8x128xf32>
    %770 = arith.addf %768, %769 : vector<8x128xf32>
    %771 = vector.extract_strided_slice %770 {offsets = [0, 0], sizes = [8, 32], strides = [1, 1]} : vector<8x128xf32> to vector<8x32xf32>
    %772 = vector.extract_strided_slice %770 {offsets = [0, 32], sizes = [8, 32], strides = [1, 1]} : vector<8x128xf32> to vector<8x32xf32>
    %773 = vector.extract_strided_slice %770 {offsets = [0, 64], sizes = [8, 32], strides = [1, 1]} : vector<8x128xf32> to vector<8x32xf32>
    %774 = vector.extract_strided_slice %770 {offsets = [0, 96], sizes = [8, 32], strides = [1, 1]} : vector<8x128xf32> to vector<8x32xf32>
    %775 = vector.shape_cast %774 : vector<8x32xf32> to vector<1x8x32xf32>
    %776 = vector.broadcast %775 : vector<1x8x32xf32> to vector<8x8x32xf32>
    %777 = arith.addf %704, %776 : vector<8x8x32xf32>
    %778 = math.tanh %777 : vector<8x8x32xf32>
    %779 = vector.broadcast %706 : vector<1x1x32xf32> to vector<8x8x32xf32>
    %780 = arith.mulf %778, %779 : vector<8x8x32xf32>
    %cst_144 = arith.constant dense<0.000000e+00> : vector<8x8xf32>
    %781 = vector.multi_reduction <add>, %780, %cst_144 [2] : vector<8x8x32xf32> to vector<8x8xf32>
    %782 = vector.shape_cast %781 : vector<8x8xf32> to vector<8x8x1xf32>
    %cst_145 = arith.constant dense<0xFF800000> : vector<8x1xf32>
    %783 = vector.multi_reduction <maximumf>, %782, %cst_145 [0] : vector<8x8x1xf32> to vector<8x1xf32>
    %784 = vector.shape_cast %783 : vector<8x1xf32> to vector<1x8x1xf32>
    %785 = vector.broadcast %784 : vector<1x8x1xf32> to vector<8x8x1xf32>
    %786 = arith.subf %782, %785 : vector<8x8x1xf32>
    %787 = math.exp %786 : vector<8x8x1xf32>
    %cst_146 = arith.constant dense<0.000000e+00> : vector<8x1xf32>
    %788 = vector.multi_reduction <add>, %787, %cst_146 [0] : vector<8x8x1xf32> to vector<8x1xf32>
    %789 = tpu.reciprocal %788 {approx = true} : vector<8x1xf32> -> vector<8x1xf32>
    %790 = vector.shape_cast %789 : vector<8x1xf32> to vector<1x8x1xf32>
    %791 = vector.broadcast %790 : vector<1x8x1xf32> to vector<8x8x1xf32>
    %792 = arith.mulf %787, %791 : vector<8x8x1xf32>
    %793 = vector.broadcast %792 : vector<8x8x1xf32> to vector<8x8x16xf32>
    %794 = arith.mulf %793, %703 : vector<8x8x16xf32>
    %cst_147 = arith.constant dense<0.000000e+00> : vector<8x16xf32>
    %795 = vector.multi_reduction <add>, %794, %cst_147 [0] : vector<8x8x16xf32> to vector<8x16xf32>
    %796 = arith.truncf %795 : vector<8x16xf32> to vector<8x16xbf16>
    %cst_148 = arith.constant dense<0.000000e+00> : vector<8x96xf32>
    %797 = tpu.matmul %796, %709, %cst_148 {dimension_numbers = #tpu.dot_dimension_numbers<[1], [0], [0], [1], [0, 0, 1, 1], [], []>} : vector<8x16xbf16>, vector<16x96xbf16>, vector<8x96xf32> -> vector<8x96xf32>
    %798 = vector.extract_strided_slice %7 {offsets = [8, 0], sizes = [8, 96], strides = [1, 1]} : vector<64x99xf32> to vector<8x96xf32>
    %799 = arith.addf %797, %798 : vector<8x96xf32>
    %800 = vector.extract_strided_slice %799 {offsets = [0, 0], sizes = [8, 32], strides = [1, 1]} : vector<8x96xf32> to vector<8x32xf32>
    %801 = arith.addf %800, %771 : vector<8x32xf32>
    %802 = arith.negf %801 : vector<8x32xf32>
    %803 = math.exp %802 : vector<8x32xf32>
    %cst_149 = arith.constant 1.000000e+00 : f32
    %804 = vector.broadcast %cst_149 : f32 to vector<8x32xf32>
    %805 = arith.addf %804, %803 : vector<8x32xf32>
    %806 = arith.divf %804, %805 : vector<8x32xf32>
    %807 = vector.extract_strided_slice %799 {offsets = [0, 32], sizes = [8, 32], strides = [1, 1]} : vector<8x96xf32> to vector<8x32xf32>
    %808 = arith.addf %807, %772 : vector<8x32xf32>
    %809 = arith.negf %808 : vector<8x32xf32>
    %810 = math.exp %809 : vector<8x32xf32>
    %cst_150 = arith.constant 1.000000e+00 : f32
    %811 = vector.broadcast %cst_150 : f32 to vector<8x32xf32>
    %812 = arith.addf %811, %810 : vector<8x32xf32>
    %813 = arith.divf %811, %812 : vector<8x32xf32>
    %814 = vector.extract_strided_slice %799 {offsets = [0, 64], sizes = [8, 32], strides = [1, 1]} : vector<8x96xf32> to vector<8x32xf32>
    %815 = arith.mulf %806, %773 : vector<8x32xf32>
    %816 = arith.addf %814, %815 : vector<8x32xf32>
    %817 = math.tanh %816 : vector<8x32xf32>
    %cst_151 = arith.constant 1.000000e+00 : f32
    %818 = vector.broadcast %cst_151 : f32 to vector<8x32xf32>
    %819 = arith.subf %818, %813 : vector<8x32xf32>
    %820 = arith.mulf %819, %817 : vector<8x32xf32>
    %821 = arith.mulf %813, %766 : vector<8x32xf32>
    %822 = arith.addf %820, %821 : vector<8x32xf32>
    %823 = arith.truncf %822 : vector<8x32xf32> to vector<8x32xbf16>
    %cst_152 = arith.constant dense<0.000000e+00> : vector<8x128xf32>
    %824 = tpu.matmul %823, %707, %cst_152 {dimension_numbers = #tpu.dot_dimension_numbers<[1], [0], [0], [1], [0, 0, 1, 1], [], []>} : vector<8x32xbf16>, vector<32x128xbf16>, vector<8x128xf32> -> vector<8x128xf32>
    %825 = vector.broadcast %708 : vector<1x128xf32> to vector<8x128xf32>
    %826 = arith.addf %824, %825 : vector<8x128xf32>
    %827 = vector.extract_strided_slice %826 {offsets = [0, 0], sizes = [8, 32], strides = [1, 1]} : vector<8x128xf32> to vector<8x32xf32>
    %828 = vector.extract_strided_slice %826 {offsets = [0, 32], sizes = [8, 32], strides = [1, 1]} : vector<8x128xf32> to vector<8x32xf32>
    %829 = vector.extract_strided_slice %826 {offsets = [0, 64], sizes = [8, 32], strides = [1, 1]} : vector<8x128xf32> to vector<8x32xf32>
    %830 = vector.extract_strided_slice %826 {offsets = [0, 96], sizes = [8, 32], strides = [1, 1]} : vector<8x128xf32> to vector<8x32xf32>
    %831 = vector.shape_cast %830 : vector<8x32xf32> to vector<1x8x32xf32>
    %832 = vector.broadcast %831 : vector<1x8x32xf32> to vector<8x8x32xf32>
    %833 = arith.addf %704, %832 : vector<8x8x32xf32>
    %834 = math.tanh %833 : vector<8x8x32xf32>
    %835 = vector.broadcast %706 : vector<1x1x32xf32> to vector<8x8x32xf32>
    %836 = arith.mulf %834, %835 : vector<8x8x32xf32>
    %cst_153 = arith.constant dense<0.000000e+00> : vector<8x8xf32>
    %837 = vector.multi_reduction <add>, %836, %cst_153 [2] : vector<8x8x32xf32> to vector<8x8xf32>
    %838 = vector.shape_cast %837 : vector<8x8xf32> to vector<8x8x1xf32>
    %cst_154 = arith.constant dense<0xFF800000> : vector<8x1xf32>
    %839 = vector.multi_reduction <maximumf>, %838, %cst_154 [0] : vector<8x8x1xf32> to vector<8x1xf32>
    %840 = vector.shape_cast %839 : vector<8x1xf32> to vector<1x8x1xf32>
    %841 = vector.broadcast %840 : vector<1x8x1xf32> to vector<8x8x1xf32>
    %842 = arith.subf %838, %841 : vector<8x8x1xf32>
    %843 = math.exp %842 : vector<8x8x1xf32>
    %cst_155 = arith.constant dense<0.000000e+00> : vector<8x1xf32>
    %844 = vector.multi_reduction <add>, %843, %cst_155 [0] : vector<8x8x1xf32> to vector<8x1xf32>
    %845 = tpu.reciprocal %844 {approx = true} : vector<8x1xf32> -> vector<8x1xf32>
    %846 = vector.shape_cast %845 : vector<8x1xf32> to vector<1x8x1xf32>
    %847 = vector.broadcast %846 : vector<1x8x1xf32> to vector<8x8x1xf32>
    %848 = arith.mulf %843, %847 : vector<8x8x1xf32>
    %849 = vector.broadcast %848 : vector<8x8x1xf32> to vector<8x8x16xf32>
    %850 = arith.mulf %849, %703 : vector<8x8x16xf32>
    %cst_156 = arith.constant dense<0.000000e+00> : vector<8x16xf32>
    %851 = vector.multi_reduction <add>, %850, %cst_156 [0] : vector<8x8x16xf32> to vector<8x16xf32>
    %852 = arith.truncf %851 : vector<8x16xf32> to vector<8x16xbf16>
    %cst_157 = arith.constant dense<0.000000e+00> : vector<8x96xf32>
    %853 = tpu.matmul %852, %709, %cst_157 {dimension_numbers = #tpu.dot_dimension_numbers<[1], [0], [0], [1], [0, 0, 1, 1], [], []>} : vector<8x16xbf16>, vector<16x96xbf16>, vector<8x96xf32> -> vector<8x96xf32>
    %854 = vector.extract_strided_slice %7 {offsets = [16, 0], sizes = [8, 96], strides = [1, 1]} : vector<64x99xf32> to vector<8x96xf32>
    %855 = arith.addf %853, %854 : vector<8x96xf32>
    %856 = vector.extract_strided_slice %855 {offsets = [0, 0], sizes = [8, 32], strides = [1, 1]} : vector<8x96xf32> to vector<8x32xf32>
    %857 = arith.addf %856, %827 : vector<8x32xf32>
    %858 = arith.negf %857 : vector<8x32xf32>
    %859 = math.exp %858 : vector<8x32xf32>
    %cst_158 = arith.constant 1.000000e+00 : f32
    %860 = vector.broadcast %cst_158 : f32 to vector<8x32xf32>
    %861 = arith.addf %860, %859 : vector<8x32xf32>
    %862 = arith.divf %860, %861 : vector<8x32xf32>
    %863 = vector.extract_strided_slice %855 {offsets = [0, 32], sizes = [8, 32], strides = [1, 1]} : vector<8x96xf32> to vector<8x32xf32>
    %864 = arith.addf %863, %828 : vector<8x32xf32>
    %865 = arith.negf %864 : vector<8x32xf32>
    %866 = math.exp %865 : vector<8x32xf32>
    %cst_159 = arith.constant 1.000000e+00 : f32
    %867 = vector.broadcast %cst_159 : f32 to vector<8x32xf32>
    %868 = arith.addf %867, %866 : vector<8x32xf32>
    %869 = arith.divf %867, %868 : vector<8x32xf32>
    %870 = vector.extract_strided_slice %855 {offsets = [0, 64], sizes = [8, 32], strides = [1, 1]} : vector<8x96xf32> to vector<8x32xf32>
    %871 = arith.mulf %862, %829 : vector<8x32xf32>
    %872 = arith.addf %870, %871 : vector<8x32xf32>
    %873 = math.tanh %872 : vector<8x32xf32>
    %cst_160 = arith.constant 1.000000e+00 : f32
    %874 = vector.broadcast %cst_160 : f32 to vector<8x32xf32>
    %875 = arith.subf %874, %869 : vector<8x32xf32>
    %876 = arith.mulf %875, %873 : vector<8x32xf32>
    %877 = arith.mulf %869, %822 : vector<8x32xf32>
    %878 = arith.addf %876, %877 : vector<8x32xf32>
    %879 = arith.truncf %878 : vector<8x32xf32> to vector<8x32xbf16>
    %cst_161 = arith.constant dense<0.000000e+00> : vector<8x128xf32>
    %880 = tpu.matmul %879, %707, %cst_161 {dimension_numbers = #tpu.dot_dimension_numbers<[1], [0], [0], [1], [0, 0, 1, 1], [], []>} : vector<8x32xbf16>, vector<32x128xbf16>, vector<8x128xf32> -> vector<8x128xf32>
    %881 = vector.broadcast %708 : vector<1x128xf32> to vector<8x128xf32>
    %882 = arith.addf %880, %881 : vector<8x128xf32>
    %883 = vector.extract_strided_slice %882 {offsets = [0, 0], sizes = [8, 32], strides = [1, 1]} : vector<8x128xf32> to vector<8x32xf32>
    %884 = vector.extract_strided_slice %882 {offsets = [0, 32], sizes = [8, 32], strides = [1, 1]} : vector<8x128xf32> to vector<8x32xf32>
    %885 = vector.extract_strided_slice %882 {offsets = [0, 64], sizes = [8, 32], strides = [1, 1]} : vector<8x128xf32> to vector<8x32xf32>
    %886 = vector.extract_strided_slice %882 {offsets = [0, 96], sizes = [8, 32], strides = [1, 1]} : vector<8x128xf32> to vector<8x32xf32>
    %887 = vector.shape_cast %886 : vector<8x32xf32> to vector<1x8x32xf32>
    %888 = vector.broadcast %887 : vector<1x8x32xf32> to vector<8x8x32xf32>
    %889 = arith.addf %704, %888 : vector<8x8x32xf32>
    %890 = math.tanh %889 : vector<8x8x32xf32>
    %891 = vector.broadcast %706 : vector<1x1x32xf32> to vector<8x8x32xf32>
    %892 = arith.mulf %890, %891 : vector<8x8x32xf32>
    %cst_162 = arith.constant dense<0.000000e+00> : vector<8x8xf32>
    %893 = vector.multi_reduction <add>, %892, %cst_162 [2] : vector<8x8x32xf32> to vector<8x8xf32>
    %894 = vector.shape_cast %893 : vector<8x8xf32> to vector<8x8x1xf32>
    %cst_163 = arith.constant dense<0xFF800000> : vector<8x1xf32>
    %895 = vector.multi_reduction <maximumf>, %894, %cst_163 [0] : vector<8x8x1xf32> to vector<8x1xf32>
    %896 = vector.shape_cast %895 : vector<8x1xf32> to vector<1x8x1xf32>
    %897 = vector.broadcast %896 : vector<1x8x1xf32> to vector<8x8x1xf32>
    %898 = arith.subf %894, %897 : vector<8x8x1xf32>
    %899 = math.exp %898 : vector<8x8x1xf32>
    %cst_164 = arith.constant dense<0.000000e+00> : vector<8x1xf32>
    %900 = vector.multi_reduction <add>, %899, %cst_164 [0] : vector<8x8x1xf32> to vector<8x1xf32>
    %901 = tpu.reciprocal %900 {approx = true} : vector<8x1xf32> -> vector<8x1xf32>
    %902 = vector.shape_cast %901 : vector<8x1xf32> to vector<1x8x1xf32>
    %903 = vector.broadcast %902 : vector<1x8x1xf32> to vector<8x8x1xf32>
    %904 = arith.mulf %899, %903 : vector<8x8x1xf32>
    %905 = vector.broadcast %904 : vector<8x8x1xf32> to vector<8x8x16xf32>
    %906 = arith.mulf %905, %703 : vector<8x8x16xf32>
    %cst_165 = arith.constant dense<0.000000e+00> : vector<8x16xf32>
    %907 = vector.multi_reduction <add>, %906, %cst_165 [0] : vector<8x8x16xf32> to vector<8x16xf32>
    %908 = arith.truncf %907 : vector<8x16xf32> to vector<8x16xbf16>
    %cst_166 = arith.constant dense<0.000000e+00> : vector<8x96xf32>
    %909 = tpu.matmul %908, %709, %cst_166 {dimension_numbers = #tpu.dot_dimension_numbers<[1], [0], [0], [1], [0, 0, 1, 1], [], []>} : vector<8x16xbf16>, vector<16x96xbf16>, vector<8x96xf32> -> vector<8x96xf32>
    %910 = vector.extract_strided_slice %7 {offsets = [24, 0], sizes = [8, 96], strides = [1, 1]} : vector<64x99xf32> to vector<8x96xf32>
    %911 = arith.addf %909, %910 : vector<8x96xf32>
    %912 = vector.extract_strided_slice %911 {offsets = [0, 0], sizes = [8, 32], strides = [1, 1]} : vector<8x96xf32> to vector<8x32xf32>
    %913 = arith.addf %912, %883 : vector<8x32xf32>
    %914 = arith.negf %913 : vector<8x32xf32>
    %915 = math.exp %914 : vector<8x32xf32>
    %cst_167 = arith.constant 1.000000e+00 : f32
    %916 = vector.broadcast %cst_167 : f32 to vector<8x32xf32>
    %917 = arith.addf %916, %915 : vector<8x32xf32>
    %918 = arith.divf %916, %917 : vector<8x32xf32>
    %919 = vector.extract_strided_slice %911 {offsets = [0, 32], sizes = [8, 32], strides = [1, 1]} : vector<8x96xf32> to vector<8x32xf32>
    %920 = arith.addf %919, %884 : vector<8x32xf32>
    %921 = arith.negf %920 : vector<8x32xf32>
    %922 = math.exp %921 : vector<8x32xf32>
    %cst_168 = arith.constant 1.000000e+00 : f32
    %923 = vector.broadcast %cst_168 : f32 to vector<8x32xf32>
    %924 = arith.addf %923, %922 : vector<8x32xf32>
    %925 = arith.divf %923, %924 : vector<8x32xf32>
    %926 = vector.extract_strided_slice %911 {offsets = [0, 64], sizes = [8, 32], strides = [1, 1]} : vector<8x96xf32> to vector<8x32xf32>
    %927 = arith.mulf %918, %885 : vector<8x32xf32>
    %928 = arith.addf %926, %927 : vector<8x32xf32>
    %929 = math.tanh %928 : vector<8x32xf32>
    %cst_169 = arith.constant 1.000000e+00 : f32
    %930 = vector.broadcast %cst_169 : f32 to vector<8x32xf32>
    %931 = arith.subf %930, %925 : vector<8x32xf32>
    %932 = arith.mulf %931, %929 : vector<8x32xf32>
    %933 = arith.mulf %925, %878 : vector<8x32xf32>
    %934 = arith.addf %932, %933 : vector<8x32xf32>
    %935 = arith.truncf %934 : vector<8x32xf32> to vector<8x32xbf16>
    %cst_170 = arith.constant dense<0.000000e+00> : vector<8x128xf32>
    %936 = tpu.matmul %935, %707, %cst_170 {dimension_numbers = #tpu.dot_dimension_numbers<[1], [0], [0], [1], [0, 0, 1, 1], [], []>} : vector<8x32xbf16>, vector<32x128xbf16>, vector<8x128xf32> -> vector<8x128xf32>
    %937 = vector.broadcast %708 : vector<1x128xf32> to vector<8x128xf32>
    %938 = arith.addf %936, %937 : vector<8x128xf32>
    %939 = vector.extract_strided_slice %938 {offsets = [0, 0], sizes = [8, 32], strides = [1, 1]} : vector<8x128xf32> to vector<8x32xf32>
    %940 = vector.extract_strided_slice %938 {offsets = [0, 32], sizes = [8, 32], strides = [1, 1]} : vector<8x128xf32> to vector<8x32xf32>
    %941 = vector.extract_strided_slice %938 {offsets = [0, 64], sizes = [8, 32], strides = [1, 1]} : vector<8x128xf32> to vector<8x32xf32>
    %942 = vector.extract_strided_slice %938 {offsets = [0, 96], sizes = [8, 32], strides = [1, 1]} : vector<8x128xf32> to vector<8x32xf32>
    %943 = vector.shape_cast %942 : vector<8x32xf32> to vector<1x8x32xf32>
    %944 = vector.broadcast %943 : vector<1x8x32xf32> to vector<8x8x32xf32>
    %945 = arith.addf %704, %944 : vector<8x8x32xf32>
    %946 = math.tanh %945 : vector<8x8x32xf32>
    %947 = vector.broadcast %706 : vector<1x1x32xf32> to vector<8x8x32xf32>
    %948 = arith.mulf %946, %947 : vector<8x8x32xf32>
    %cst_171 = arith.constant dense<0.000000e+00> : vector<8x8xf32>
    %949 = vector.multi_reduction <add>, %948, %cst_171 [2] : vector<8x8x32xf32> to vector<8x8xf32>
    %950 = vector.shape_cast %949 : vector<8x8xf32> to vector<8x8x1xf32>
    %cst_172 = arith.constant dense<0xFF800000> : vector<8x1xf32>
    %951 = vector.multi_reduction <maximumf>, %950, %cst_172 [0] : vector<8x8x1xf32> to vector<8x1xf32>
    %952 = vector.shape_cast %951 : vector<8x1xf32> to vector<1x8x1xf32>
    %953 = vector.broadcast %952 : vector<1x8x1xf32> to vector<8x8x1xf32>
    %954 = arith.subf %950, %953 : vector<8x8x1xf32>
    %955 = math.exp %954 : vector<8x8x1xf32>
    %cst_173 = arith.constant dense<0.000000e+00> : vector<8x1xf32>
    %956 = vector.multi_reduction <add>, %955, %cst_173 [0] : vector<8x8x1xf32> to vector<8x1xf32>
    %957 = tpu.reciprocal %956 {approx = true} : vector<8x1xf32> -> vector<8x1xf32>
    %958 = vector.shape_cast %957 : vector<8x1xf32> to vector<1x8x1xf32>
    %959 = vector.broadcast %958 : vector<1x8x1xf32> to vector<8x8x1xf32>
    %960 = arith.mulf %955, %959 : vector<8x8x1xf32>
    %961 = vector.broadcast %960 : vector<8x8x1xf32> to vector<8x8x16xf32>
    %962 = arith.mulf %961, %703 : vector<8x8x16xf32>
    %cst_174 = arith.constant dense<0.000000e+00> : vector<8x16xf32>
    %963 = vector.multi_reduction <add>, %962, %cst_174 [0] : vector<8x8x16xf32> to vector<8x16xf32>
    %964 = arith.truncf %963 : vector<8x16xf32> to vector<8x16xbf16>
    %cst_175 = arith.constant dense<0.000000e+00> : vector<8x96xf32>
    %965 = tpu.matmul %964, %709, %cst_175 {dimension_numbers = #tpu.dot_dimension_numbers<[1], [0], [0], [1], [0, 0, 1, 1], [], []>} : vector<8x16xbf16>, vector<16x96xbf16>, vector<8x96xf32> -> vector<8x96xf32>
    %966 = vector.extract_strided_slice %7 {offsets = [32, 0], sizes = [8, 96], strides = [1, 1]} : vector<64x99xf32> to vector<8x96xf32>
    %967 = arith.addf %965, %966 : vector<8x96xf32>
    %968 = vector.extract_strided_slice %967 {offsets = [0, 0], sizes = [8, 32], strides = [1, 1]} : vector<8x96xf32> to vector<8x32xf32>
    %969 = arith.addf %968, %939 : vector<8x32xf32>
    %970 = arith.negf %969 : vector<8x32xf32>
    %971 = math.exp %970 : vector<8x32xf32>
    %cst_176 = arith.constant 1.000000e+00 : f32
    %972 = vector.broadcast %cst_176 : f32 to vector<8x32xf32>
    %973 = arith.addf %972, %971 : vector<8x32xf32>
    %974 = arith.divf %972, %973 : vector<8x32xf32>
    %975 = vector.extract_strided_slice %967 {offsets = [0, 32], sizes = [8, 32], strides = [1, 1]} : vector<8x96xf32> to vector<8x32xf32>
    %976 = arith.addf %975, %940 : vector<8x32xf32>
    %977 = arith.negf %976 : vector<8x32xf32>
    %978 = math.exp %977 : vector<8x32xf32>
    %cst_177 = arith.constant 1.000000e+00 : f32
    %979 = vector.broadcast %cst_177 : f32 to vector<8x32xf32>
    %980 = arith.addf %979, %978 : vector<8x32xf32>
    %981 = arith.divf %979, %980 : vector<8x32xf32>
    %982 = vector.extract_strided_slice %967 {offsets = [0, 64], sizes = [8, 32], strides = [1, 1]} : vector<8x96xf32> to vector<8x32xf32>
    %983 = arith.mulf %974, %941 : vector<8x32xf32>
    %984 = arith.addf %982, %983 : vector<8x32xf32>
    %985 = math.tanh %984 : vector<8x32xf32>
    %cst_178 = arith.constant 1.000000e+00 : f32
    %986 = vector.broadcast %cst_178 : f32 to vector<8x32xf32>
    %987 = arith.subf %986, %981 : vector<8x32xf32>
    %988 = arith.mulf %987, %985 : vector<8x32xf32>
    %989 = arith.mulf %981, %934 : vector<8x32xf32>
    %990 = arith.addf %988, %989 : vector<8x32xf32>
    %991 = arith.truncf %990 : vector<8x32xf32> to vector<8x32xbf16>
    %cst_179 = arith.constant dense<0.000000e+00> : vector<8x128xf32>
    %992 = tpu.matmul %991, %707, %cst_179 {dimension_numbers = #tpu.dot_dimension_numbers<[1], [0], [0], [1], [0, 0, 1, 1], [], []>} : vector<8x32xbf16>, vector<32x128xbf16>, vector<8x128xf32> -> vector<8x128xf32>
    %993 = vector.broadcast %708 : vector<1x128xf32> to vector<8x128xf32>
    %994 = arith.addf %992, %993 : vector<8x128xf32>
    %995 = vector.extract_strided_slice %994 {offsets = [0, 0], sizes = [8, 32], strides = [1, 1]} : vector<8x128xf32> to vector<8x32xf32>
    %996 = vector.extract_strided_slice %994 {offsets = [0, 32], sizes = [8, 32], strides = [1, 1]} : vector<8x128xf32> to vector<8x32xf32>
    %997 = vector.extract_strided_slice %994 {offsets = [0, 64], sizes = [8, 32], strides = [1, 1]} : vector<8x128xf32> to vector<8x32xf32>
    %998 = vector.extract_strided_slice %994 {offsets = [0, 96], sizes = [8, 32], strides = [1, 1]} : vector<8x128xf32> to vector<8x32xf32>
    %999 = vector.shape_cast %998 : vector<8x32xf32> to vector<1x8x32xf32>
    %1000 = vector.broadcast %999 : vector<1x8x32xf32> to vector<8x8x32xf32>
    %1001 = arith.addf %704, %1000 : vector<8x8x32xf32>
    %1002 = math.tanh %1001 : vector<8x8x32xf32>
    %1003 = vector.broadcast %706 : vector<1x1x32xf32> to vector<8x8x32xf32>
    %1004 = arith.mulf %1002, %1003 : vector<8x8x32xf32>
    %cst_180 = arith.constant dense<0.000000e+00> : vector<8x8xf32>
    %1005 = vector.multi_reduction <add>, %1004, %cst_180 [2] : vector<8x8x32xf32> to vector<8x8xf32>
    %1006 = vector.shape_cast %1005 : vector<8x8xf32> to vector<8x8x1xf32>
    %cst_181 = arith.constant dense<0xFF800000> : vector<8x1xf32>
    %1007 = vector.multi_reduction <maximumf>, %1006, %cst_181 [0] : vector<8x8x1xf32> to vector<8x1xf32>
    %1008 = vector.shape_cast %1007 : vector<8x1xf32> to vector<1x8x1xf32>
    %1009 = vector.broadcast %1008 : vector<1x8x1xf32> to vector<8x8x1xf32>
    %1010 = arith.subf %1006, %1009 : vector<8x8x1xf32>
    %1011 = math.exp %1010 : vector<8x8x1xf32>
    %cst_182 = arith.constant dense<0.000000e+00> : vector<8x1xf32>
    %1012 = vector.multi_reduction <add>, %1011, %cst_182 [0] : vector<8x8x1xf32> to vector<8x1xf32>
    %1013 = tpu.reciprocal %1012 {approx = true} : vector<8x1xf32> -> vector<8x1xf32>
    %1014 = vector.shape_cast %1013 : vector<8x1xf32> to vector<1x8x1xf32>
    %1015 = vector.broadcast %1014 : vector<1x8x1xf32> to vector<8x8x1xf32>
    %1016 = arith.mulf %1011, %1015 : vector<8x8x1xf32>
    %1017 = vector.broadcast %1016 : vector<8x8x1xf32> to vector<8x8x16xf32>
    %1018 = arith.mulf %1017, %703 : vector<8x8x16xf32>
    %cst_183 = arith.constant dense<0.000000e+00> : vector<8x16xf32>
    %1019 = vector.multi_reduction <add>, %1018, %cst_183 [0] : vector<8x8x16xf32> to vector<8x16xf32>
    %1020 = arith.truncf %1019 : vector<8x16xf32> to vector<8x16xbf16>
    %cst_184 = arith.constant dense<0.000000e+00> : vector<8x96xf32>
    %1021 = tpu.matmul %1020, %709, %cst_184 {dimension_numbers = #tpu.dot_dimension_numbers<[1], [0], [0], [1], [0, 0, 1, 1], [], []>} : vector<8x16xbf16>, vector<16x96xbf16>, vector<8x96xf32> -> vector<8x96xf32>
    %1022 = vector.extract_strided_slice %7 {offsets = [40, 0], sizes = [8, 96], strides = [1, 1]} : vector<64x99xf32> to vector<8x96xf32>
    %1023 = arith.addf %1021, %1022 : vector<8x96xf32>
    %1024 = vector.extract_strided_slice %1023 {offsets = [0, 0], sizes = [8, 32], strides = [1, 1]} : vector<8x96xf32> to vector<8x32xf32>
    %1025 = arith.addf %1024, %995 : vector<8x32xf32>
    %1026 = arith.negf %1025 : vector<8x32xf32>
    %1027 = math.exp %1026 : vector<8x32xf32>
    %cst_185 = arith.constant 1.000000e+00 : f32
    %1028 = vector.broadcast %cst_185 : f32 to vector<8x32xf32>
    %1029 = arith.addf %1028, %1027 : vector<8x32xf32>
    %1030 = arith.divf %1028, %1029 : vector<8x32xf32>
    %1031 = vector.extract_strided_slice %1023 {offsets = [0, 32], sizes = [8, 32], strides = [1, 1]} : vector<8x96xf32> to vector<8x32xf32>
    %1032 = arith.addf %1031, %996 : vector<8x32xf32>
    %1033 = arith.negf %1032 : vector<8x32xf32>
    %1034 = math.exp %1033 : vector<8x32xf32>
    %cst_186 = arith.constant 1.000000e+00 : f32
    %1035 = vector.broadcast %cst_186 : f32 to vector<8x32xf32>
    %1036 = arith.addf %1035, %1034 : vector<8x32xf32>
    %1037 = arith.divf %1035, %1036 : vector<8x32xf32>
    %1038 = vector.extract_strided_slice %1023 {offsets = [0, 64], sizes = [8, 32], strides = [1, 1]} : vector<8x96xf32> to vector<8x32xf32>
    %1039 = arith.mulf %1030, %997 : vector<8x32xf32>
    %1040 = arith.addf %1038, %1039 : vector<8x32xf32>
    %1041 = math.tanh %1040 : vector<8x32xf32>
    %cst_187 = arith.constant 1.000000e+00 : f32
    %1042 = vector.broadcast %cst_187 : f32 to vector<8x32xf32>
    %1043 = arith.subf %1042, %1037 : vector<8x32xf32>
    %1044 = arith.mulf %1043, %1041 : vector<8x32xf32>
    %1045 = arith.mulf %1037, %990 : vector<8x32xf32>
    %1046 = arith.addf %1044, %1045 : vector<8x32xf32>
    %1047 = arith.truncf %1046 : vector<8x32xf32> to vector<8x32xbf16>
    %cst_188 = arith.constant dense<0.000000e+00> : vector<8x128xf32>
    %1048 = tpu.matmul %1047, %707, %cst_188 {dimension_numbers = #tpu.dot_dimension_numbers<[1], [0], [0], [1], [0, 0, 1, 1], [], []>} : vector<8x32xbf16>, vector<32x128xbf16>, vector<8x128xf32> -> vector<8x128xf32>
    %1049 = vector.broadcast %708 : vector<1x128xf32> to vector<8x128xf32>
    %1050 = arith.addf %1048, %1049 : vector<8x128xf32>
    %1051 = vector.extract_strided_slice %1050 {offsets = [0, 0], sizes = [8, 32], strides = [1, 1]} : vector<8x128xf32> to vector<8x32xf32>
    %1052 = vector.extract_strided_slice %1050 {offsets = [0, 32], sizes = [8, 32], strides = [1, 1]} : vector<8x128xf32> to vector<8x32xf32>
    %1053 = vector.extract_strided_slice %1050 {offsets = [0, 64], sizes = [8, 32], strides = [1, 1]} : vector<8x128xf32> to vector<8x32xf32>
    %1054 = vector.extract_strided_slice %1050 {offsets = [0, 96], sizes = [8, 32], strides = [1, 1]} : vector<8x128xf32> to vector<8x32xf32>
    %1055 = vector.shape_cast %1054 : vector<8x32xf32> to vector<1x8x32xf32>
    %1056 = vector.broadcast %1055 : vector<1x8x32xf32> to vector<8x8x32xf32>
    %1057 = arith.addf %704, %1056 : vector<8x8x32xf32>
    %1058 = math.tanh %1057 : vector<8x8x32xf32>
    %1059 = vector.broadcast %706 : vector<1x1x32xf32> to vector<8x8x32xf32>
    %1060 = arith.mulf %1058, %1059 : vector<8x8x32xf32>
    %cst_189 = arith.constant dense<0.000000e+00> : vector<8x8xf32>
    %1061 = vector.multi_reduction <add>, %1060, %cst_189 [2] : vector<8x8x32xf32> to vector<8x8xf32>
    %1062 = vector.shape_cast %1061 : vector<8x8xf32> to vector<8x8x1xf32>
    %cst_190 = arith.constant dense<0xFF800000> : vector<8x1xf32>
    %1063 = vector.multi_reduction <maximumf>, %1062, %cst_190 [0] : vector<8x8x1xf32> to vector<8x1xf32>
    %1064 = vector.shape_cast %1063 : vector<8x1xf32> to vector<1x8x1xf32>
    %1065 = vector.broadcast %1064 : vector<1x8x1xf32> to vector<8x8x1xf32>
    %1066 = arith.subf %1062, %1065 : vector<8x8x1xf32>
    %1067 = math.exp %1066 : vector<8x8x1xf32>
    %cst_191 = arith.constant dense<0.000000e+00> : vector<8x1xf32>
    %1068 = vector.multi_reduction <add>, %1067, %cst_191 [0] : vector<8x8x1xf32> to vector<8x1xf32>
    %1069 = tpu.reciprocal %1068 {approx = true} : vector<8x1xf32> -> vector<8x1xf32>
    %1070 = vector.shape_cast %1069 : vector<8x1xf32> to vector<1x8x1xf32>
    %1071 = vector.broadcast %1070 : vector<1x8x1xf32> to vector<8x8x1xf32>
    %1072 = arith.mulf %1067, %1071 : vector<8x8x1xf32>
    %1073 = vector.broadcast %1072 : vector<8x8x1xf32> to vector<8x8x16xf32>
    %1074 = arith.mulf %1073, %703 : vector<8x8x16xf32>
    %cst_192 = arith.constant dense<0.000000e+00> : vector<8x16xf32>
    %1075 = vector.multi_reduction <add>, %1074, %cst_192 [0] : vector<8x8x16xf32> to vector<8x16xf32>
    %1076 = arith.truncf %1075 : vector<8x16xf32> to vector<8x16xbf16>
    %cst_193 = arith.constant dense<0.000000e+00> : vector<8x96xf32>
    %1077 = tpu.matmul %1076, %709, %cst_193 {dimension_numbers = #tpu.dot_dimension_numbers<[1], [0], [0], [1], [0, 0, 1, 1], [], []>} : vector<8x16xbf16>, vector<16x96xbf16>, vector<8x96xf32> -> vector<8x96xf32>
    %1078 = vector.extract_strided_slice %7 {offsets = [48, 0], sizes = [8, 96], strides = [1, 1]} : vector<64x99xf32> to vector<8x96xf32>
    %1079 = arith.addf %1077, %1078 : vector<8x96xf32>
    %1080 = vector.extract_strided_slice %1079 {offsets = [0, 0], sizes = [8, 32], strides = [1, 1]} : vector<8x96xf32> to vector<8x32xf32>
    %1081 = arith.addf %1080, %1051 : vector<8x32xf32>
    %1082 = arith.negf %1081 : vector<8x32xf32>
    %1083 = math.exp %1082 : vector<8x32xf32>
    %cst_194 = arith.constant 1.000000e+00 : f32
    %1084 = vector.broadcast %cst_194 : f32 to vector<8x32xf32>
    %1085 = arith.addf %1084, %1083 : vector<8x32xf32>
    %1086 = arith.divf %1084, %1085 : vector<8x32xf32>
    %1087 = vector.extract_strided_slice %1079 {offsets = [0, 32], sizes = [8, 32], strides = [1, 1]} : vector<8x96xf32> to vector<8x32xf32>
    %1088 = arith.addf %1087, %1052 : vector<8x32xf32>
    %1089 = arith.negf %1088 : vector<8x32xf32>
    %1090 = math.exp %1089 : vector<8x32xf32>
    %cst_195 = arith.constant 1.000000e+00 : f32
    %1091 = vector.broadcast %cst_195 : f32 to vector<8x32xf32>
    %1092 = arith.addf %1091, %1090 : vector<8x32xf32>
    %1093 = arith.divf %1091, %1092 : vector<8x32xf32>
    %1094 = vector.extract_strided_slice %1079 {offsets = [0, 64], sizes = [8, 32], strides = [1, 1]} : vector<8x96xf32> to vector<8x32xf32>
    %1095 = arith.mulf %1086, %1053 : vector<8x32xf32>
    %1096 = arith.addf %1094, %1095 : vector<8x32xf32>
    %1097 = math.tanh %1096 : vector<8x32xf32>
    %cst_196 = arith.constant 1.000000e+00 : f32
    %1098 = vector.broadcast %cst_196 : f32 to vector<8x32xf32>
    %1099 = arith.subf %1098, %1093 : vector<8x32xf32>
    %1100 = arith.mulf %1099, %1097 : vector<8x32xf32>
    %1101 = arith.mulf %1093, %1046 : vector<8x32xf32>
    %1102 = arith.addf %1100, %1101 : vector<8x32xf32>
    %1103 = arith.truncf %1102 : vector<8x32xf32> to vector<8x32xbf16>
    %cst_197 = arith.constant dense<0.000000e+00> : vector<8x128xf32>
    %1104 = tpu.matmul %1103, %707, %cst_197 {dimension_numbers = #tpu.dot_dimension_numbers<[1], [0], [0], [1], [0, 0, 1, 1], [], []>} : vector<8x32xbf16>, vector<32x128xbf16>, vector<8x128xf32> -> vector<8x128xf32>
    %1105 = vector.broadcast %708 : vector<1x128xf32> to vector<8x128xf32>
    %1106 = arith.addf %1104, %1105 : vector<8x128xf32>
    %1107 = vector.extract_strided_slice %1106 {offsets = [0, 0], sizes = [8, 32], strides = [1, 1]} : vector<8x128xf32> to vector<8x32xf32>
    %1108 = vector.extract_strided_slice %1106 {offsets = [0, 32], sizes = [8, 32], strides = [1, 1]} : vector<8x128xf32> to vector<8x32xf32>
    %1109 = vector.extract_strided_slice %1106 {offsets = [0, 64], sizes = [8, 32], strides = [1, 1]} : vector<8x128xf32> to vector<8x32xf32>
    %1110 = vector.extract_strided_slice %1106 {offsets = [0, 96], sizes = [8, 32], strides = [1, 1]} : vector<8x128xf32> to vector<8x32xf32>
    %1111 = vector.shape_cast %1110 : vector<8x32xf32> to vector<1x8x32xf32>
    %1112 = vector.broadcast %1111 : vector<1x8x32xf32> to vector<8x8x32xf32>
    %1113 = arith.addf %704, %1112 : vector<8x8x32xf32>
    %1114 = math.tanh %1113 : vector<8x8x32xf32>
    %1115 = vector.broadcast %706 : vector<1x1x32xf32> to vector<8x8x32xf32>
    %1116 = arith.mulf %1114, %1115 : vector<8x8x32xf32>
    %cst_198 = arith.constant dense<0.000000e+00> : vector<8x8xf32>
    %1117 = vector.multi_reduction <add>, %1116, %cst_198 [2] : vector<8x8x32xf32> to vector<8x8xf32>
    %1118 = vector.shape_cast %1117 : vector<8x8xf32> to vector<8x8x1xf32>
    %cst_199 = arith.constant dense<0xFF800000> : vector<8x1xf32>
    %1119 = vector.multi_reduction <maximumf>, %1118, %cst_199 [0] : vector<8x8x1xf32> to vector<8x1xf32>
    %1120 = vector.shape_cast %1119 : vector<8x1xf32> to vector<1x8x1xf32>
    %1121 = vector.broadcast %1120 : vector<1x8x1xf32> to vector<8x8x1xf32>
    %1122 = arith.subf %1118, %1121 : vector<8x8x1xf32>
    %1123 = math.exp %1122 : vector<8x8x1xf32>
    %cst_200 = arith.constant dense<0.000000e+00> : vector<8x1xf32>
    %1124 = vector.multi_reduction <add>, %1123, %cst_200 [0] : vector<8x8x1xf32> to vector<8x1xf32>
    %1125 = tpu.reciprocal %1124 {approx = true} : vector<8x1xf32> -> vector<8x1xf32>
    %1126 = vector.shape_cast %1125 : vector<8x1xf32> to vector<1x8x1xf32>
    %1127 = vector.broadcast %1126 : vector<1x8x1xf32> to vector<8x8x1xf32>
    %1128 = arith.mulf %1123, %1127 : vector<8x8x1xf32>
    %1129 = vector.broadcast %1128 : vector<8x8x1xf32> to vector<8x8x16xf32>
    %1130 = arith.mulf %1129, %703 : vector<8x8x16xf32>
    %cst_201 = arith.constant dense<0.000000e+00> : vector<8x16xf32>
    %1131 = vector.multi_reduction <add>, %1130, %cst_201 [0] : vector<8x8x16xf32> to vector<8x16xf32>
    %1132 = arith.truncf %1131 : vector<8x16xf32> to vector<8x16xbf16>
    %cst_202 = arith.constant dense<0.000000e+00> : vector<8x96xf32>
    %1133 = tpu.matmul %1132, %709, %cst_202 {dimension_numbers = #tpu.dot_dimension_numbers<[1], [0], [0], [1], [0, 0, 1, 1], [], []>} : vector<8x16xbf16>, vector<16x96xbf16>, vector<8x96xf32> -> vector<8x96xf32>
    %1134 = vector.extract_strided_slice %7 {offsets = [56, 0], sizes = [8, 96], strides = [1, 1]} : vector<64x99xf32> to vector<8x96xf32>
    %1135 = arith.addf %1133, %1134 : vector<8x96xf32>
    %1136 = vector.extract_strided_slice %1135 {offsets = [0, 0], sizes = [8, 32], strides = [1, 1]} : vector<8x96xf32> to vector<8x32xf32>
    %1137 = arith.addf %1136, %1107 : vector<8x32xf32>
    %1138 = arith.negf %1137 : vector<8x32xf32>
    %1139 = math.exp %1138 : vector<8x32xf32>
    %cst_203 = arith.constant 1.000000e+00 : f32
    %1140 = vector.broadcast %cst_203 : f32 to vector<8x32xf32>
    %1141 = arith.addf %1140, %1139 : vector<8x32xf32>
    %1142 = arith.divf %1140, %1141 : vector<8x32xf32>
    %1143 = vector.extract_strided_slice %1135 {offsets = [0, 32], sizes = [8, 32], strides = [1, 1]} : vector<8x96xf32> to vector<8x32xf32>
    %1144 = arith.addf %1143, %1108 : vector<8x32xf32>
    %1145 = arith.negf %1144 : vector<8x32xf32>
    %1146 = math.exp %1145 : vector<8x32xf32>
    %cst_204 = arith.constant 1.000000e+00 : f32
    %1147 = vector.broadcast %cst_204 : f32 to vector<8x32xf32>
    %1148 = arith.addf %1147, %1146 : vector<8x32xf32>
    %1149 = arith.divf %1147, %1148 : vector<8x32xf32>
    %1150 = vector.extract_strided_slice %1135 {offsets = [0, 64], sizes = [8, 32], strides = [1, 1]} : vector<8x96xf32> to vector<8x32xf32>
    %1151 = arith.mulf %1142, %1109 : vector<8x32xf32>
    %1152 = arith.addf %1150, %1151 : vector<8x32xf32>
    %1153 = math.tanh %1152 : vector<8x32xf32>
    %cst_205 = arith.constant 1.000000e+00 : f32
    %1154 = vector.broadcast %cst_205 : f32 to vector<8x32xf32>
    %1155 = arith.subf %1154, %1149 : vector<8x32xf32>
    %1156 = arith.mulf %1155, %1153 : vector<8x32xf32>
    %1157 = arith.mulf %1149, %1102 : vector<8x32xf32>
    %1158 = arith.addf %1156, %1157 : vector<8x32xf32>
    %c0_206 = arith.constant 0 : index
    %c0_207 = arith.constant 0 : index
    %1159 = vector.load %arg16[%c0_206, %c0_207] : memref<32x3xbf16, #tpu.memory_space<vmem>>, vector<32x3xbf16>
    %1160 = arith.truncf %1158 : vector<8x32xf32> to vector<8x32xbf16>
    %cst_208 = arith.constant dense<0.000000e+00> : vector<8x3xf32>
    %1161 = tpu.matmul %1160, %1159, %cst_208 {dimension_numbers = #tpu.dot_dimension_numbers<[1], [0], [0], [1], [0, 0, 1, 1], [], []>} : vector<8x32xbf16>, vector<32x3xbf16>, vector<8x3xf32> -> vector<8x3xf32>
    %c0_209 = arith.constant 0 : index
    %c0_210 = arith.constant 0 : index
    %1162 = vector.load %arg17[%c0_209, %c0_210] : memref<1x3xf32, #tpu.memory_space<vmem>>, vector<1x3xf32>
    %1163 = vector.broadcast %1162 : vector<1x3xf32> to vector<8x3xf32>
    %1164 = arith.addf %1161, %1163 : vector<8x3xf32>
    %c0_211 = arith.constant 0 : index
    %c0_212 = arith.constant 0 : index
    %1165 = vector.load %arg18[%c0_211, %c0_212] : memref<8x3xf32, #tpu.memory_space<vmem>>, vector<8x3xf32>
    tpu.vector_store %arg18[%c0_211, %c0_212], %1164 {strides = array<i32>} : memref<8x3xf32, #tpu.memory_space<vmem>>, vector<8x3xf32>,
    return
  }
  func.func @transform_0(%arg0: i32) -> (i32, i32, i32) {
    %c0_i32 = arith.constant 0 : i32
    %c0_i32_0 = arith.constant 0 : i32
    %c0_i32_1 = arith.constant 0 : i32
    return %arg0, %c0_i32, %c0_i32_0 : i32, i32, i32
  }
  func.func @transform_1(%arg0: i32) -> (i32, i32) {
    %c0_i32 = arith.constant 0 : i32
    %c0_i32_0 = arith.constant 0 : i32
    return %arg0, %c0_i32 : i32, i32
  }
  func.func @transform_2(%arg0: i32) -> (i32, i32) {
    %c0_i32 = arith.constant 0 : i32
    %c0_i32_0 = arith.constant 0 : i32
    return %arg0, %c0_i32 : i32, i32
  }
  func.func @transform_3(%arg0: i32) -> (i32, i32) {
    %c0_i32 = arith.constant 0 : i32
    %c0_i32_0 = arith.constant 0 : i32
    %c0_i32_1 = arith.constant 0 : i32
    return %c0_i32, %c0_i32_0 : i32, i32
  }
  func.func @transform_4(%arg0: i32) -> (i32, i32) {
    %c0_i32 = arith.constant 0 : i32
    %c0_i32_0 = arith.constant 0 : i32
    %c0_i32_1 = arith.constant 0 : i32
    return %c0_i32, %c0_i32_0 : i32, i32
  }
  func.func @transform_5(%arg0: i32) -> (i32, i32) {
    %c0_i32 = arith.constant 0 : i32
    %c0_i32_0 = arith.constant 0 : i32
    %c0_i32_1 = arith.constant 0 : i32
    return %c0_i32, %c0_i32_0 : i32, i32
  }
  func.func @transform_6(%arg0: i32) -> (i32, i32) {
    %c0_i32 = arith.constant 0 : i32
    %c0_i32_0 = arith.constant 0 : i32
    %c0_i32_1 = arith.constant 0 : i32
    return %c0_i32, %c0_i32_0 : i32, i32
  }
  func.func @transform_7(%arg0: i32) -> (i32, i32) {
    %c0_i32 = arith.constant 0 : i32
    %c0_i32_0 = arith.constant 0 : i32
    %c0_i32_1 = arith.constant 0 : i32
    return %c0_i32, %c0_i32_0 : i32, i32
  }
  func.func @transform_8(%arg0: i32) -> (i32, i32) {
    %c0_i32 = arith.constant 0 : i32
    %c0_i32_0 = arith.constant 0 : i32
    %c0_i32_1 = arith.constant 0 : i32
    return %c0_i32, %c0_i32_0 : i32, i32
  }
  func.func @transform_9(%arg0: i32) -> (i32, i32) {
    %c0_i32 = arith.constant 0 : i32
    %c0_i32_0 = arith.constant 0 : i32
    %c0_i32_1 = arith.constant 0 : i32
    return %c0_i32, %c0_i32_0 : i32, i32
  }
  func.func @transform_10(%arg0: i32) -> (i32, i32) {
    %c0_i32 = arith.constant 0 : i32
    %c0_i32_0 = arith.constant 0 : i32
    %c0_i32_1 = arith.constant 0 : i32
    return %c0_i32, %c0_i32_0 : i32, i32
  }
  func.func @transform_11(%arg0: i32) -> (i32, i32) {
    %c0_i32 = arith.constant 0 : i32
    %c0_i32_0 = arith.constant 0 : i32
    %c0_i32_1 = arith.constant 0 : i32
    return %c0_i32, %c0_i32_0 : i32, i32
  }
  func.func @transform_12(%arg0: i32) -> (i32, i32) {
    %c0_i32 = arith.constant 0 : i32
    %c0_i32_0 = arith.constant 0 : i32
    %c0_i32_1 = arith.constant 0 : i32
    return %c0_i32, %c0_i32_0 : i32, i32
  }
  func.func @transform_13(%arg0: i32) -> (i32, i32) {
    %c0_i32 = arith.constant 0 : i32
    %c0_i32_0 = arith.constant 0 : i32
    %c0_i32_1 = arith.constant 0 : i32
    return %c0_i32, %c0_i32_0 : i32, i32
  }
  func.func @transform_14(%arg0: i32) -> (i32, i32) {
    %c0_i32 = arith.constant 0 : i32
    %c0_i32_0 = arith.constant 0 : i32
    %c0_i32_1 = arith.constant 0 : i32
    return %c0_i32, %c0_i32_0 : i32, i32
  }
  func.func @transform_15(%arg0: i32) -> (i32, i32) {
    %c0_i32 = arith.constant 0 : i32
    %c0_i32_0 = arith.constant 0 : i32
    %c0_i32_1 = arith.constant 0 : i32
    return %c0_i32, %c0_i32_0 : i32, i32
  }
  func.func @transform_16(%arg0: i32) -> (i32, i32) {
    %c0_i32 = arith.constant 0 : i32
    %c0_i32_0 = arith.constant 0 : i32
    %c0_i32_1 = arith.constant 0 : i32
    return %c0_i32, %c0_i32_0 : i32, i32
  }
  func.func @transform_17(%arg0: i32) -> (i32, i32) {
    %c0_i32 = arith.constant 0 : i32
    %c0_i32_0 = arith.constant 0 : i32
    return %arg0, %c0_i32 : i32, i32
  }
}

</mosaic_0001>

<llo_original>
// kernel: tpu_custom_call.1
$region0: #{tpu_custom_call.1}
  #allocation0 [shape = 'u32[]', space=smem, size = 0x4, offset = 0x4, fixed_abs, tag = 'smem constant byte address 0x4 - core index']
  #allocation1 [shape = 'u32[144,128]{1,0:T(1,128)}', space=vmem, size = 0x12000, scoped, tag = 'internal scratch']
  #allocation2 [shape = 'f32[8,8,16]{2,1,0:T(8,128)}', space=vmem, size = 0x8000, scoped, tag = 'scratch operand']
  #allocation3 [shape = 'f32[8,8,32]{2,1,0:T(8,128)}', space=vmem, size = 0x8000, scoped, tag = 'scratch operand']
  %s0 = inlined_call_operand.vmem [shape: f32[2,64,3], index: 0, kind: input, shape index: {}]
  %s1 = inlined_call_operand.vmem [shape: f32[16,16], index: 1, kind: input, shape index: {}]
  %s2 = inlined_call_operand.vmem [shape: f32[16,32], index: 2, kind: input, shape index: {}]
  %s3 = inlined_call_operand.vmem [shape: bf16[3,99], index: 3, kind: input, shape index: {}]
  %s4 = inlined_call_operand.vmem [shape: f32[1,99], index: 4, kind: input, shape index: {}]
  %s5 = inlined_call_operand.vmem [shape: f32[3,3], index: 5, kind: input, shape index: {}]
  %s6 = inlined_call_operand.vmem [shape: f32[1,3], index: 6, kind: input, shape index: {}]
  %s7 = inlined_call_operand.vmem [shape: f32[3,48], index: 7, kind: input, shape index: {}]
  %s8 = inlined_call_operand.vmem [shape: f32[1,48], index: 8, kind: input, shape index: {}]
  %s9 = inlined_call_operand.vmem [shape: bf16[16,99], index: 9, kind: input, shape index: {}]
  %s10 = inlined_call_operand.vmem [shape: f32[1,99], index: 10, kind: input, shape index: {}]
  %s11 = inlined_call_operand.vmem [shape: bf16[32,128], index: 11, kind: input, shape index: {}]
  %s12 = inlined_call_operand.vmem [shape: f32[1,128], index: 12, kind: input, shape index: {}]
  %s13 = inlined_call_operand.vmem [shape: bf16[16,96], index: 13, kind: input, shape index: {}]
  %s14 = inlined_call_operand.vmem [shape: f32[1,32], index: 14, kind: input, shape index: {}]
  %s15 = inlined_call_operand.vmem [shape: bf16[32,3], index: 15, kind: input, shape index: {}]
  %s16 = inlined_call_operand.vmem [shape: f32[1,3], index: 16, kind: input, shape index: {}]
  %s17 = inlined_call_operand.vmem [shape: f32[16,3], index: 17, kind: output, shape index: {}]
  %s18 = sld [smem:[#allocation0]]
  $region101: #{tpu_custom_call.1} parent=0
    _
  %s20 = ssub.s32 1, %s18
  %s21 = scalar_select 0, %s20, %s18
  loop: start=0, step=1, limit=4
  $region2: #{tpu_custom_call.1} parent=0 // loop_pre_header
    _
  $region3: #{tpu_custom_call.1} parent=0 // loop_header
    %s23 = sphi 0, %s27
    %p24 = scmp.ge.s32.totalorder %s23, 4
    %s33 = sphi 0, %s35
    %s36 = sphi 0, %s33
    %s37 = sphi 0, %s36
    %s53 = sphi 0, %s37
    %s59 = sphi 0, %s61
    %s62 = sphi 0, %s59
    %s63 = sphi 0, %s62
    %s79 = sphi 0, %s63
    %s85 = sphi 0, %s87
    %s88 = sphi 0, %s85
    %s89 = sphi 0, %s88
    %s105 = sphi 0, %s89
    %s109 = sphi 0, %s109
    %s111 = sphi 0, %s109
    %s112 = sphi 0, %s111
    %s126 = sphi 0, %s112
    %s130 = sphi 0, %s130
    %s132 = sphi 0, %s130
    %s133 = sphi 0, %s132
    %s147 = sphi 0, %s133
    %s151 = sphi 0, %s151
    %s153 = sphi 0, %s151
    %s154 = sphi 0, %s153
    %s168 = sphi 0, %s154
    %s172 = sphi 0, %s172
    %s174 = sphi 0, %s172
    %s175 = sphi 0, %s174
    %s189 = sphi 0, %s175
    %s193 = sphi 0, %s193
    %s195 = sphi 0, %s193
    %s196 = sphi 0, %s195
    %s210 = sphi 0, %s196
    %s214 = sphi 0, %s214
    %s216 = sphi 0, %s214
    %s217 = sphi 0, %s216
    %s231 = sphi 0, %s217
    %s235 = sphi 0, %s235
    %s237 = sphi 0, %s235
    %s238 = sphi 0, %s237
    %s252 = sphi 0, %s238
    %s256 = sphi 0, %s256
    %s258 = sphi 0, %s256
    %s259 = sphi 0, %s258
    %s273 = sphi 0, %s259
    %s277 = sphi 0, %s277
    %s279 = sphi 0, %s277
    %s280 = sphi 0, %s279
    %s294 = sphi 0, %s280
    %s298 = sphi 0, %s298
    %s300 = sphi 0, %s298
    %s301 = sphi 0, %s300
    %s315 = sphi 0, %s301
    %s319 = sphi 0, %s319
    %s321 = sphi 0, %s319
    %s322 = sphi 0, %s321
    %s336 = sphi 0, %s322
    %s340 = sphi 0, %s340
    %s342 = sphi 0, %s340
    %s343 = sphi 0, %s342
    %s357 = sphi 0, %s343
    %s361 = sphi 0, %s361
    %s363 = sphi 0, %s361
    %s364 = sphi 0, %s363
    %s378 = sphi 0, %s364
    %s382 = sphi 0, %s382
    %s384 = sphi 0, %s382
    %s385 = sphi 0, %s384
    %s399 = sphi 0, %s385
    %s405 = sphi 0, %s407
    %s408 = sphi 0, %s405
    %s409 = sphi 0, %s408
    %s425 = sphi 0, %s409
  $region4: #{tpu_custom_call.1} parent=0 // loop_header_branch
    %26 = sbr.rel (%p24) target = $region8
  $region5: #{tpu_custom_call.1} parent=0 // loop_body
    %s28 = ssub.s32 %s23, 1
    %s29 = ssub.s32 %s23, 2
    %s30 = sadd.s32 %s23, 1
    %s31 = ssub.s32 %s23, %s30
    %p32 = scmp.eq.s32.totalorder %s31, 0
    %s34 = sadd.s32 %s33, 1
    %s35 = scalar_select %p32, %s33, %s34
    %p38 = pneg %p32
    %p39 = scmp.eq.s32.totalorder %s23, 1
    %p40 = por %p38, %p39
    %p41 = scmp.ne.s32.totalorder %s33, %s36
    %p42 = scmp.eq.s32.totalorder %s23, 0
    %p43 = por %p41, %p42
    %p44 = scmp.ne.s32.totalorder %s33, %s36
    %p45 = scmp.eq.s32.totalorder %s28, 1
    %p46 = por %p44, %p45
    %p47 = scmp.ne.s32.totalorder %s36, %s37
    %p48 = scmp.eq.s32.totalorder %s28, 0
    %p49 = por %p47, %p48
    %p50 = scmp.ne.s32.totalorder %s36, %s37
    %p51 = scmp.eq.s32.totalorder %s29, 1
    %p52 = por %p50, %p51
    %p54 = scmp.ne.s32.totalorder %s37, %s53
    %p55 = scmp.eq.s32.totalorder %s29, 0
    %p56 = por %p54, %p55
    %s57 = ssub.s32 %s23, %s30
    %p58 = scmp.eq.s32.totalorder %s57, 0
    %s60 = sadd.s32 %s59, 1
    %s61 = scalar_select %p58, %s59, %s60
    %p64 = pneg %p58
    %p65 = scmp.eq.s32.totalorder %s23, 1
    %p66 = por %p64, %p65
    %p67 = scmp.ne.s32.totalorder %s59, %s62
    %p68 = scmp.eq.s32.totalorder %s23, 0
    %p69 = por %p67, %p68
    %p70 = scmp.ne.s32.totalorder %s59, %s62
    %p71 = scmp.eq.s32.totalorder %s28, 1
    %p72 = por %p70, %p71
    %p73 = scmp.ne.s32.totalorder %s62, %s63
    %p74 = scmp.eq.s32.totalorder %s28, 0
    %p75 = por %p73, %p74
    %p76 = scmp.ne.s32.totalorder %s62, %s63
    %p77 = scmp.eq.s32.totalorder %s29, 1
    %p78 = por %p76, %p77
    %p80 = scmp.ne.s32.totalorder %s63, %s79
    %p81 = scmp.eq.s32.totalorder %s29, 0
    %p82 = por %p80, %p81
    %s83 = ssub.s32 %s23, %s30
    %p84 = scmp.eq.s32.totalorder %s83, 0
    %s86 = sadd.s32 %s85, 1
    %s87 = scalar_select %p84, %s85, %s86
    %p90 = pneg %p84
    %p91 = scmp.eq.s32.totalorder %s23, 1
    %p92 = por %p90, %p91
    %p93 = scmp.ne.s32.totalorder %s85, %s88
    %p94 = scmp.eq.s32.totalorder %s23, 0
    %p95 = por %p93, %p94
    %p96 = scmp.ne.s32.totalorder %s85, %s88
    %p97 = scmp.eq.s32.totalorder %s28, 1
    %p98 = por %p96, %p97
    %p99 = scmp.ne.s32.totalorder %s88, %s89
    %p100 = scmp.eq.s32.totalorder %s28, 0
    %p101 = por %p99, %p100
    %p102 = scmp.ne.s32.totalorder %s88, %s89
    %p103 = scmp.eq.s32.totalorder %s29, 1
    %p104 = por %p102, %p103
    %p106 = scmp.ne.s32.totalorder %s89, %s105
    %p107 = scmp.eq.s32.totalorder %s29, 0
    %p108 = por %p106, %p107
    %s110 = sadd.s32 %s109, 1
    %p113 = scmp.eq.s32.totalorder %s23, 1
    %p114 = scmp.ne.s32.totalorder %s109, %s111
    %p115 = scmp.eq.s32.totalorder %s23, 0
    %p116 = por %p114, %p115
    %p117 = scmp.ne.s32.totalorder %s109, %s111
    %p118 = scmp.eq.s32.totalorder %s28, 1
    %p119 = por %p117, %p118
    %p120 = scmp.ne.s32.totalorder %s111, %s112
    %p121 = scmp.eq.s32.totalorder %s28, 0
    %p122 = por %p120, %p121
    %p123 = scmp.ne.s32.totalorder %s111, %s112
    %p124 = scmp.eq.s32.totalorder %s29, 1
    %p125 = por %p123, %p124
    %p127 = scmp.ne.s32.totalorder %s112, %s126
    %p128 = scmp.eq.s32.totalorder %s29, 0
    %p129 = por %p127, %p128
    %s131 = sadd.s32 %s130, 1
    %p134 = scmp.eq.s32.totalorder %s23, 1
    %p135 = scmp.ne.s32.totalorder %s130, %s132
    %p136 = scmp.eq.s32.totalorder %s23, 0
    %p137 = por %p135, %p136
    %p138 = scmp.ne.s32.totalorder %s130, %s132
    %p139 = scmp.eq.s32.totalorder %s28, 1
    %p140 = por %p138, %p139
    %p141 = scmp.ne.s32.totalorder %s132, %s133
    %p142 = scmp.eq.s32.totalorder %s28, 0
    %p143 = por %p141, %p142
    %p144 = scmp.ne.s32.totalorder %s132, %s133
    %p145 = scmp.eq.s32.totalorder %s29, 1
    %p146 = por %p144, %p145
    %p148 = scmp.ne.s32.totalorder %s133, %s147
    %p149 = scmp.eq.s32.totalorder %s29, 0
    %p150 = por %p148, %p149
    %s152 = sadd.s32 %s151, 1
    %p155 = scmp.eq.s32.totalorder %s23, 1
    %p156 = scmp.ne.s32.totalorder %s151, %s153
    %p157 = scmp.eq.s32.totalorder %s23, 0
    %p158 = por %p156, %p157
    %p159 = scmp.ne.s32.totalorder %s151, %s153
    %p160 = scmp.eq.s32.totalorder %s28, 1
    %p161 = por %p159, %p160
    %p162 = scmp.ne.s32.totalorder %s153, %s154
    %p163 = scmp.eq.s32.totalorder %s28, 0
    %p164 = por %p162, %p163
    %p165 = scmp.ne.s32.totalorder %s153, %s154
    %p166 = scmp.eq.s32.totalorder %s29, 1
    %p167 = por %p165, %p166
    %p169 = scmp.ne.s32.totalorder %s154, %s168
    %p170 = scmp.eq.s32.totalorder %s29, 0
    %p171 = por %p169, %p170
    %s173 = sadd.s32 %s172, 1
    %p176 = scmp.eq.s32.totalorder %s23, 1
    %p177 = scmp.ne.s32.totalorder %s172, %s174
    %p178 = scmp.eq.s32.totalorder %s23, 0
    %p179 = por %p177, %p178
    %p180 = scmp.ne.s32.totalorder %s172, %s174
    %p181 = scmp.eq.s32.totalorder %s28, 1
    %p182 = por %p180, %p181
    %p183 = scmp.ne.s32.totalorder %s174, %s175
    %p184 = scmp.eq.s32.totalorder %s28, 0
    %p185 = por %p183, %p184
    %p186 = scmp.ne.s32.totalorder %s174, %s175
    %p187 = scmp.eq.s32.totalorder %s29, 1
    %p188 = por %p186, %p187
    %p190 = scmp.ne.s32.totalorder %s175, %s189
    %p191 = scmp.eq.s32.totalorder %s29, 0
    %p192 = por %p190, %p191
    %s194 = sadd.s32 %s193, 1
    %p197 = scmp.eq.s32.totalorder %s23, 1
    %p198 = scmp.ne.s32.totalorder %s193, %s195
    %p199 = scmp.eq.s32.totalorder %s23, 0
    %p200 = por %p198, %p199
    %p201 = scmp.ne.s32.totalorder %s193, %s195
    %p202 = scmp.eq.s32.totalorder %s28, 1
    %p203 = por %p201, %p202
    %p204 = scmp.ne.s32.totalorder %s195, %s196
    %p205 = scmp.eq.s32.totalorder %s28, 0
    %p206 = por %p204, %p205
    %p207 = scmp.ne.s32.totalorder %s195, %s196
    %p208 = scmp.eq.s32.totalorder %s29, 1
    %p209 = por %p207, %p208
    %p211 = scmp.ne.s32.totalorder %s196, %s210
    %p212 = scmp.eq.s32.totalorder %s29, 0
    %p213 = por %p211, %p212
    %s215 = sadd.s32 %s214, 1
    %p218 = scmp.eq.s32.totalorder %s23, 1
    %p219 = scmp.ne.s32.totalorder %s214, %s216
    %p220 = scmp.eq.s32.totalorder %s23, 0
    %p221 = por %p219, %p220
    %p222 = scmp.ne.s32.totalorder %s214, %s216
    %p223 = scmp.eq.s32.totalorder %s28, 1
    %p224 = por %p222, %p223
    %p225 = scmp.ne.s32.totalorder %s216, %s217
    %p226 = scmp.eq.s32.totalorder %s28, 0
    %p227 = por %p225, %p226
    %p228 = scmp.ne.s32.totalorder %s216, %s217
    %p229 = scmp.eq.s32.totalorder %s29, 1
    %p230 = por %p228, %p229
    %p232 = scmp.ne.s32.totalorder %s217, %s231
    %p233 = scmp.eq.s32.totalorder %s29, 0
    %p234 = por %p232, %p233
    %s236 = sadd.s32 %s235, 1
    %p239 = scmp.eq.s32.totalorder %s23, 1
    %p240 = scmp.ne.s32.totalorder %s235, %s237
    %p241 = scmp.eq.s32.totalorder %s23, 0
    %p242 = por %p240, %p241
    %p243 = scmp.ne.s32.totalorder %s235, %s237
    %p244 = scmp.eq.s32.totalorder %s28, 1
    %p245 = por %p243, %p244
    %p246 = scmp.ne.s32.totalorder %s237, %s238
    %p247 = scmp.eq.s32.totalorder %s28, 0
    %p248 = por %p246, %p247
    %p249 = scmp.ne.s32.totalorder %s237, %s238
    %p250 = scmp.eq.s32.totalorder %s29, 1
    %p251 = por %p249, %p250
    %p253 = scmp.ne.s32.totalorder %s238, %s252
    %p254 = scmp.eq.s32.totalorder %s29, 0
    %p255 = por %p253, %p254
    %s257 = sadd.s32 %s256, 1
    %p260 = scmp.eq.s32.totalorder %s23, 1
    %p261 = scmp.ne.s32.totalorder %s256, %s258
    %p262 = scmp.eq.s32.totalorder %s23, 0
    %p263 = por %p261, %p262
    %p264 = scmp.ne.s32.totalorder %s256, %s258
    %p265 = scmp.eq.s32.totalorder %s28, 1
    %p266 = por %p264, %p265
    %p267 = scmp.ne.s32.totalorder %s258, %s259
    %p268 = scmp.eq.s32.totalorder %s28, 0
    %p269 = por %p267, %p268
    %p270 = scmp.ne.s32.totalorder %s258, %s259
    %p271 = scmp.eq.s32.totalorder %s29, 1
    %p272 = por %p270, %p271
    %p274 = scmp.ne.s32.totalorder %s259, %s273
    %p275 = scmp.eq.s32.totalorder %s29, 0
    %p276 = por %p274, %p275
    %s278 = sadd.s32 %s277, 1
    %p281 = scmp.eq.s32.totalorder %s23, 1
    %p282 = scmp.ne.s32.totalorder %s277, %s279
    %p283 = scmp.eq.s32.totalorder %s23, 0
    %p284 = por %p282, %p283
    %p285 = scmp.ne.s32.totalorder %s277, %s279
    %p286 = scmp.eq.s32.totalorder %s28, 1
    %p287 = por %p285, %p286
    %p288 = scmp.ne.s32.totalorder %s279, %s280
    %p289 = scmp.eq.s32.totalorder %s28, 0
    %p290 = por %p288, %p289
    %p291 = scmp.ne.s32.totalorder %s279, %s280
    %p292 = scmp.eq.s32.totalorder %s29, 1
    %p293 = por %p291, %p292
    %p295 = scmp.ne.s32.totalorder %s280, %s294
    %p296 = scmp.eq.s32.totalorder %s29, 0
    %p297 = por %p295, %p296
    %s299 = sadd.s32 %s298, 1
    %p302 = scmp.eq.s32.totalorder %s23, 1
    %p303 = scmp.ne.s32.totalorder %s298, %s300
    %p304 = scmp.eq.s32.totalorder %s23, 0
    %p305 = por %p303, %p304
    %p306 = scmp.ne.s32.totalorder %s298, %s300
    %p307 = scmp.eq.s32.totalorder %s28, 1
    %p308 = por %p306, %p307
    %p309 = scmp.ne.s32.totalorder %s300, %s301
    %p310 = scmp.eq.s32.totalorder %s28, 0
    %p311 = por %p309, %p310
    %p312 = scmp.ne.s32.totalorder %s300, %s301
    %p313 = scmp.eq.s32.totalorder %s29, 1
    %p314 = por %p312, %p313
    %p316 = scmp.ne.s32.totalorder %s301, %s315
    %p317 = scmp.eq.s32.totalorder %s29, 0
    %p318 = por %p316, %p317
    %s320 = sadd.s32 %s319, 1
    %p323 = scmp.eq.s32.totalorder %s23, 1
    %p324 = scmp.ne.s32.totalorder %s319, %s321
    %p325 = scmp.eq.s32.totalorder %s23, 0
    %p326 = por %p324, %p325
    %p327 = scmp.ne.s32.totalorder %s319, %s321
    %p328 = scmp.eq.s32.totalorder %s28, 1
    %p329 = por %p327, %p328
    %p330 = scmp.ne.s32.totalorder %s321, %s322
    %p331 = scmp.eq.s32.totalorder %s28, 0
    %p332 = por %p330, %p331
    %p333 = scmp.ne.s32.totalorder %s321, %s322
    %p334 = scmp.eq.s32.totalorder %s29, 1
    %p335 = por %p333, %p334
    %p337 = scmp.ne.s32.totalorder %s322, %s336
    %p338 = scmp.eq.s32.totalorder %s29, 0
    %p339 = por %p337, %p338
    %s341 = sadd.s32 %s340, 1
    %p344 = scmp.eq.s32.totalorder %s23, 1
    %p345 = scmp.ne.s32.totalorder %s340, %s342
    %p346 = scmp.eq.s32.totalorder %s23, 0
    %p347 = por %p345, %p346
    %p348 = scmp.ne.s32.totalorder %s340, %s342
    %p349 = scmp.eq.s32.totalorder %s28, 1
    %p350 = por %p348, %p349
    %p351 = scmp.ne.s32.totalorder %s342, %s343
    %p352 = scmp.eq.s32.totalorder %s28, 0
    %p353 = por %p351, %p352
    %p354 = scmp.ne.s32.totalorder %s342, %s343
    %p355 = scmp.eq.s32.totalorder %s29, 1
    %p356 = por %p354, %p355
    %p358 = scmp.ne.s32.totalorder %s343, %s357
    %p359 = scmp.eq.s32.totalorder %s29, 0
    %p360 = por %p358, %p359
    %s362 = sadd.s32 %s361, 1
    %p365 = scmp.eq.s32.totalorder %s23, 1
    %p366 = scmp.ne.s32.totalorder %s361, %s363
    %p367 = scmp.eq.s32.totalorder %s23, 0
    %p368 = por %p366, %p367
    %p369 = scmp.ne.s32.totalorder %s361, %s363
    %p370 = scmp.eq.s32.totalorder %s28, 1
    %p371 = por %p369, %p370
    %p372 = scmp.ne.s32.totalorder %s363, %s364
    %p373 = scmp.eq.s32.totalorder %s28, 0
    %p374 = por %p372, %p373
    %p375 = scmp.ne.s32.totalorder %s363, %s364
    %p376 = scmp.eq.s32.totalorder %s29, 1
    %p377 = por %p375, %p376
    %p379 = scmp.ne.s32.totalorder %s364, %s378
    %p380 = scmp.eq.s32.totalorder %s29, 0
    %p381 = por %p379, %p380
    %s383 = sadd.s32 %s382, 1
    %p386 = scmp.eq.s32.totalorder %s23, 1
    %p387 = scmp.ne.s32.totalorder %s382, %s384
    %p388 = scmp.eq.s32.totalorder %s23, 0
    %p389 = por %p387, %p388
    %p390 = scmp.ne.s32.totalorder %s382, %s384
    %p391 = scmp.eq.s32.totalorder %s28, 1
    %p392 = por %p390, %p391
    %p393 = scmp.ne.s32.totalorder %s384, %s385
    %p394 = scmp.eq.s32.totalorder %s28, 0
    %p395 = por %p393, %p394
    %p396 = scmp.ne.s32.totalorder %s384, %s385
    %p397 = scmp.eq.s32.totalorder %s29, 1
    %p398 = por %p396, %p397
    %p400 = scmp.ne.s32.totalorder %s385, %s399
    %p401 = scmp.eq.s32.totalorder %s29, 0
    %p402 = por %p400, %p401
    %s403 = ssub.s32 %s23, %s30
    %p404 = scmp.eq.s32.totalorder %s403, 0
    %s406 = sadd.s32 %s405, 1
    %s407 = scalar_select %p404, %s405, %s406
    %p410 = pneg %p404
    %p411 = scmp.eq.s32.totalorder %s23, 1
    %p412 = por %p410, %p411
    %p413 = scmp.ne.s32.totalorder %s405, %s408
    %p414 = scmp.eq.s32.totalorder %s23, 0
    %p415 = por %p413, %p414
    %p416 = scmp.ne.s32.totalorder %s405, %s408
    %p417 = scmp.eq.s32.totalorder %s28, 1
    %p418 = por %p416, %p417
    %p419 = scmp.ne.s32.totalorder %s408, %s409
    %p420 = scmp.eq.s32.totalorder %s28, 0
    %p421 = por %p419, %p420
    %p422 = scmp.ne.s32.totalorder %s408, %s409
    %p423 = scmp.eq.s32.totalorder %s29, 1
    %p424 = por %p422, %p423
    %p426 = scmp.ne.s32.totalorder %s409, %s425
    %p427 = scmp.eq.s32.totalorder %s29, 0
    %p428 = por %p426, %p427
    %p429 = scmp.le.s32.totalorder 1, %s23
    %p430 = scmp.lt.s32.totalorder %s23, 3
    %p431 = pnand %p429, %p430
    %p432 = pneg %p431
    // Predicated region
    $region9: #{tpu_custom_call.1} parent=5 // pred_check
      _
    $region10: #{tpu_custom_call.1} parent=5 // pred_check_branch
      %434 = sbr.rel (%p431) target = $region12
    $region11: #{tpu_custom_call.1} parent=5 // pred_region
      %s435 = ssub.s32 %s23, 1
      // Predicated region
      $region13: #{tpu_custom_call.1} parent=11 // pred_check
        %p436 = pneg %p122
      $region14: #{tpu_custom_call.1} parent=11 // pred_check_branch
        %438 = sbr.rel (%p436) target = $region16
      $region15: #{tpu_custom_call.1} parent=11 // pred_region
        _
      $region16: #{tpu_custom_call.1} parent=11 // pred_fallthru
        _
      // Predicated region
      $region17: #{tpu_custom_call.1} parent=11 // pred_check
        %p439 = pneg %p143
      $region18: #{tpu_custom_call.1} parent=11 // pred_check_branch
        %441 = sbr.rel (%p439) target = $region20
      $region19: #{tpu_custom_call.1} parent=11 // pred_region
        _
      $region20: #{tpu_custom_call.1} parent=11 // pred_fallthru
        _
      // Predicated region
      $region21: #{tpu_custom_call.1} parent=11 // pred_check
        %p442 = pneg %p164
      $region22: #{tpu_custom_call.1} parent=11 // pred_check_branch
        %444 = sbr.rel (%p442) target = $region24
      $region23: #{tpu_custom_call.1} parent=11 // pred_region
        _
      $region24: #{tpu_custom_call.1} parent=11 // pred_fallthru
        _
      // Predicated region
      $region25: #{tpu_custom_call.1} parent=11 // pred_check
        %p445 = pneg %p185
      $region26: #{tpu_custom_call.1} parent=11 // pred_check_branch
        %447 = sbr.rel (%p445) target = $region28
      $region27: #{tpu_custom_call.1} parent=11 // pred_region
        _
      $region28: #{tpu_custom_call.1} parent=11 // pred_fallthru
        _
      // Predicated region
      $region29: #{tpu_custom_call.1} parent=11 // pred_check
        %p448 = pneg %p206
      $region30: #{tpu_custom_call.1} parent=11 // pred_check_branch
        %450 = sbr.rel (%p448) target = $region32
      $region31: #{tpu_custom_call.1} parent=11 // pred_region
        _
      $region32: #{tpu_custom_call.1} parent=11 // pred_fallthru
        _
      // Predicated region
      $region33: #{tpu_custom_call.1} parent=11 // pred_check
        %p451 = pneg %p227
      $region34: #{tpu_custom_call.1} parent=11 // pred_check_branch
        %453 = sbr.rel (%p451) target = $region36
      $region35: #{tpu_custom_call.1} parent=11 // pred_region
        _
      $region36: #{tpu_custom_call.1} parent=11 // pred_fallthru
        _
      // Predicated region
      $region37: #{tpu_custom_call.1} parent=11 // pred_check
        %p454 = pneg %p248
      $region38: #{tpu_custom_call.1} parent=11 // pred_check_branch
        %456 = sbr.rel (%p454) target = $region40
      $region39: #{tpu_custom_call.1} parent=11 // pred_region
        _
      $region40: #{tpu_custom_call.1} parent=11 // pred_fallthru
        _
      // Predicated region
      $region41: #{tpu_custom_call.1} parent=11 // pred_check
        %p457 = pneg %p269
      $region42: #{tpu_custom_call.1} parent=11 // pred_check_branch
        %459 = sbr.rel (%p457) target = $region44
      $region43: #{tpu_custom_call.1} parent=11 // pred_region
        _
      $region44: #{tpu_custom_call.1} parent=11 // pred_fallthru
        _
      // Predicated region
      $region45: #{tpu_custom_call.1} parent=11 // pred_check
        %p460 = pneg %p290
      $region46: #{tpu_custom_call.1} parent=11 // pred_check_branch
        %462 = sbr.rel (%p460) target = $region48
      $region47: #{tpu_custom_call.1} parent=11 // pred_region
        _
      $region48: #{tpu_custom_call.1} parent=11 // pred_fallthru
        _
      // Predicated region
      $region49: #{tpu_custom_call.1} parent=11 // pred_check
        %p463 = pneg %p311
      $region50: #{tpu_custom_call.1} parent=11 // pred_check_branch
        %465 = sbr.rel (%p463) target = $region52
      $region51: #{tpu_custom_call.1} parent=11 // pred_region
        _
      $region52: #{tpu_custom_call.1} parent=11 // pred_fallthru
        _
      // Predicated region
      $region53: #{tpu_custom_call.1} parent=11 // pred_check
        %p466 = pneg %p332
      $region54: #{tpu_custom_call.1} parent=11 // pred_check_branch
        %468 = sbr.rel (%p466) target = $region56
      $region55: #{tpu_custom_call.1} parent=11 // pred_region
        _
      $region56: #{tpu_custom_call.1} parent=11 // pred_fallthru
        _
      // Predicated region
      $region57: #{tpu_custom_call.1} parent=11 // pred_check
        %p469 = pneg %p353
      $region58: #{tpu_custom_call.1} parent=11 // pred_check_branch
        %471 = sbr.rel (%p469) target = $region60
      $region59: #{tpu_custom_call.1} parent=11 // pred_region
        _
      $region60: #{tpu_custom_call.1} parent=11 // pred_fallthru
        _
      // Predicated region
      $region61: #{tpu_custom_call.1} parent=11 // pred_check
        %p472 = pneg %p374
      $region62: #{tpu_custom_call.1} parent=11 // pred_check_branch
        %474 = sbr.rel (%p472) target = $region64
      $region63: #{tpu_custom_call.1} parent=11 // pred_region
        _
      $region64: #{tpu_custom_call.1} parent=11 // pred_fallthru
        _
      // Predicated region
      $region65: #{tpu_custom_call.1} parent=11 // pred_check
        %p475 = pneg %p395
      $region66: #{tpu_custom_call.1} parent=11 // pred_check_branch
        %477 = sbr.rel (%p475) target = $region68
      $region67: #{tpu_custom_call.1} parent=11 // pred_region
        _
      $region68: #{tpu_custom_call.1} parent=11 // pred_fallthru
        _
    $region12: #{tpu_custom_call.1} parent=5 // pred_fallthru
      _
    %p478 = scmp.lt.s32.totalorder %s23, 2
    // Predicated region
    $region69: #{tpu_custom_call.1} parent=5 // pred_check
      %p479 = pneg %p478
    $region70: #{tpu_custom_call.1} parent=5 // pred_check_branch
      %481 = sbr.rel (%p479) target = $region72
    $region71: #{tpu_custom_call.1} parent=5 // pred_region
      // Predicated region
      $region73: #{tpu_custom_call.1} parent=71 // pred_check
        %p482 = pneg %p43
      $region74: #{tpu_custom_call.1} parent=71 // pred_check_branch
        %484 = sbr.rel (%p482) target = $region76
      $region75: #{tpu_custom_call.1} parent=71 // pred_region
        %p485 = scmp.lt.s32.totalorder %s23, 1
        %s486 = scalar_select %p485, %s23, 1
        %s487 = smul.addr %s486, 8
        %s488 = smul.addr %s487, 8
        %s489 = scalar_lea.vmem %s0, %s488
      $region76: #{tpu_custom_call.1} parent=71 // pred_fallthru
        _
      // Predicated region
      $region77: #{tpu_custom_call.1} parent=71 // pred_check
        %p490 = pneg %p69
      $region78: #{tpu_custom_call.1} parent=71 // pred_check_branch
        %492 = sbr.rel (%p490) target = $region80
      $region79: #{tpu_custom_call.1} parent=71 // pred_region
        %p493 = scmp.lt.s32.totalorder %s23, 1
        %s494 = scalar_select %p493, %s23, 1
        %s495 = smul.addr %s494, 8
        %s496 = scalar_lea.vmem %s1, %s495
      $region80: #{tpu_custom_call.1} parent=71 // pred_fallthru
        _
      // Predicated region
      $region81: #{tpu_custom_call.1} parent=71 // pred_check
        %p497 = pneg %p95
      $region82: #{tpu_custom_call.1} parent=71 // pred_check_branch
        %499 = sbr.rel (%p497) target = $region84
      $region83: #{tpu_custom_call.1} parent=71 // pred_region
        %p500 = scmp.lt.s32.totalorder %s23, 1
        %s501 = scalar_select %p500, %s23, 1
        %s502 = smul.addr %s501, 8
        %s503 = scalar_lea.vmem %s2, %s502
      $region84: #{tpu_custom_call.1} parent=71 // pred_fallthru
        _
    $region72: #{tpu_custom_call.1} parent=5 // pred_fallthru
      _
    %p504 = scmp.le.s32.totalorder 1, %s23
    %p505 = scmp.lt.s32.totalorder %s23, 3
    %p506 = pnand %p504, %p505
    %p507 = pneg %p506
    // Predicated region
    $region85: #{tpu_custom_call.1} parent=5 // pred_check
      _
    $region86: #{tpu_custom_call.1} parent=5 // pred_check_branch
      %509 = sbr.rel (%p506) target = $region88
    $region87: #{tpu_custom_call.1} parent=5 // pred_region
      %s510 = ssub.s32 %s23, 1
      %p511 = scmp.lt.s32.totalorder %s28, 1
      %s512 = scalar_select %p511, %s28, 1
      %s513 = smul.addr %s512, 8
      %s514 = smul.addr %s513, 8
      %s515 = scalar_lea.vmem %s0, %s514
      %p516 = pneg %p49
      %p517 = pneg %p46
      %p518 = scmp.lt.s32.totalorder %s28, 1
      %s519 = scalar_select %p518, %s28, 1
      %s520 = smul.addr %s519, 8
      %s521 = scalar_lea.vmem %s1, %s520
      %p522 = pneg %p75
      %p523 = pneg %p72
      %p524 = scmp.lt.s32.totalorder %s28, 1
      %s525 = scalar_select %p524, %s28, 1
      %s526 = smul.addr %s525, 8
      %s527 = scalar_lea.vmem %s2, %s526
      %p528 = pneg %p101
      %p529 = pneg %p98
      %p530 = pneg %p122
      %p531 = pneg %p119
      %p532 = pneg %p143
      %p533 = pneg %p140
      %p534 = pneg %p164
      %p535 = pneg %p161
      %p536 = pneg %p185
      %p537 = pneg %p182
      %p538 = pneg %p206
      %p539 = pneg %p203
      %p540 = pneg %p227
      %p541 = pneg %p224
      %p542 = pneg %p248
      %p543 = pneg %p245
      %p544 = pneg %p269
      %p545 = pneg %p266
      %p546 = pneg %p290
      %p547 = pneg %p287
      %p548 = pneg %p311
      %p549 = pneg %p308
      %p550 = pneg %p332
      %p551 = pneg %p329
      %p552 = pneg %p353
      %p553 = pneg %p350
      %p554 = pneg %p374
      %p555 = pneg %p371
      %p556 = pneg %p395
      %p557 = pneg %p392
      %p558 = pneg %p421
      %p559 = pneg %p418
      %p560 = scmp.lt.s32.totalorder %s28, 1
      %s561 = scalar_select %p560, %s28, 1
      %s562 = smul.addr %s561, 8
      %s563 = scalar_lea.vmem %s17, %s562
      %p564 = scmp.lt.s32.totalorder %s28, 1
      %s565 = scalar_select %p564, %s28, 1
      %s566 = smul.addr %s565, 8
      %s567 = smul.addr %s566, 8
      %s568 = scalar_lea.vmem %s0, %s567
      %p569 = scmp.lt.s32.totalorder %s28, 1
      %s570 = scalar_select %p569, %s28, 1
      %s571 = smul.addr %s570, 8
      %s572 = scalar_lea.vmem %s1, %s571
      %p573 = scmp.lt.s32.totalorder %s28, 1
      %s574 = scalar_select %p573, %s28, 1
      %s575 = smul.addr %s574, 8
      %s576 = scalar_lea.vmem %s2, %s575
      %p577 = scmp.lt.s32.totalorder %s28, 1
      %s578 = scalar_select %p577, %s28, 1
      %s579 = smul.addr %s578, 8
      %s580 = scalar_lea.vmem %s17, %s579
      %v582 = vld [vmem:[%s568] sm:$0xff]
      %v583 = vld [vmem:[%s568 + $0x8] sm:$0xff]
      %v584 = vld [vmem:[%s568 + $0x10] sm:$0xff]
      %v585 = vld [vmem:[%s568 + $0x18] sm:$0xff]
      %v586 = vld [vmem:[%s568 + $0x20] sm:$0xff]
      %v587 = vld [vmem:[%s568 + $0x28] sm:$0xff]
      %v588 = vld [vmem:[%s568 + $0x30] sm:$0xff]
      %v589 = vld [vmem:[%s568 + $0x38] sm:$0xff]
      %v590 = vld [vmem:[%s3] sm:$0x3]
      %v591 = vpack.c.bf16 %v583, %v582
      %v592 = vpack.c.bf16 %v585, %v584
      %v593 = vpack.c.bf16 %v587, %v586
      %v594 = vpack.c.bf16 %v589, %v588
      %v595 = vld [vmem:[%s4] sm:$0x1]
      %v597 = vlaneseq
      %v598 = vshrl.u32 %v597, 7
      %v599 = vsub.s32 0, %v598
      %v600 = vrot.slane %v595, %v599
      %vm602 = vcmask 23552
      %v604 = vsel %vm602, %v591, 0
      %v607 = vsel %vm602, %v592, 0
      %v610 = vsel %vm602, %v593, 0
      %v613 = vsel %vm602, %v594, 0
      %vm615 = vcmask 1040384
      %vm616 = vcmask 1041408
      %v617 = vsel %vm615, 4294967295, 65535
      %v618 = vsel %vm616, %v617, 0
      %v620 = vand.u32 %v590, %v618
      %622 = vmatprep.subr.bf16.mxu0 0
      %623 = vmatpush1.bf16.msra.mxu0 0
      %624 = vmatprep.subr.bf16.mxu0 0
      %625 = vmatpush1.bf16.msra.mxu0 0
      %626 = vmatprep.subr.bf16.mxu0 0
      %627 = vmatpush1.bf16.msra.mxu0 0
      %628 = vmatprep.subr.bf16.mxu0 0
      %629 = vmatpush1.bf16.msra.mxu0 0
      %630 = vmatprep.subr.bf16.mxu0 0
      %631 = vmatpush1.bf16.msra.mxu0 0
      %632 = vmatprep.subr.bf16.mxu0 0
      %633 = vmatpush1.bf16.msra.mxu0 0
      %634 = vmatprep.subr.bf16.mxu0 0
      %635 = vmatpush1.bf16.msra.mxu0 0
      %636 = vmatprep.subr.bf16.mxu0 0
      %637 = vmatpush1.bf16.msra.mxu0 %v620
      %638 = vmatprep.subr.bf16.mxu0 0
      %639 = vmatpush2.bf16.msra.mxu0 0
      %640 = vmatprep.subr.bf16.mxu0 0
      %641 = vmatpush2.bf16.msra.mxu0 0
      %642 = vmatprep.subr.bf16.mxu0 0
      %643 = vmatpush2.bf16.msra.mxu0 0
      %644 = vmatprep.subr.bf16.mxu0 0
      %645 = vmatpush2.bf16.msra.mxu0 0
      %646 = vmatprep.subr.bf16.mxu0 0
      %647 = vmatpush2.bf16.msra.mxu0 0
      %648 = vmatprep.subr.bf16.mxu0 0
      %649 = vmatpush2.bf16.msra.mxu0 0
      %650 = vmatprep.subr.bf16.mxu0 0
      %651 = vmatpush2.bf16.msra.mxu0 0
      %652 = vmatprep.subr.bf16.mxu0 0
      %653 = vmatpush2.bf16.msra.mxu0 0
      %654 = vmatprep.mubr.bf16.mxu0 0
      %655 = vmatmul.mubr.bf16.gmra.mxu0 %v604
      %v656 = vpop.f32.mrf.mxu0
      %v657 = vadd.f32 %v600, %v656
      %v658 = vpop.f32.mrf.mxu0
      %v659 = vpop.f32.mrf.mxu0
      %v660 = vadd.f32 %v600, %v659
      %v661 = vpop.f32.mrf.mxu0
      %662 = vmatprep.mubr.bf16.mxu0 0
      %663 = vmatmul.mubr.bf16.gmra.mxu0 %v607
      %v664 = vpop.f32.mrf.mxu0
      %v665 = vadd.f32 %v600, %v664
      %v666 = vpop.f32.mrf.mxu0
      %v667 = vpop.f32.mrf.mxu0
      %v668 = vadd.f32 %v600, %v667
      %v669 = vpop.f32.mrf.mxu0
      %670 = vmatprep.mubr.bf16.mxu0 0
      %671 = vmatmul.mubr.bf16.gmra.mxu0 %v610
      %v672 = vpop.f32.mrf.mxu0
      %v673 = vadd.f32 %v600, %v672
      %v674 = vpop.f32.mrf.mxu0
      %v675 = vpop.f32.mrf.mxu0
      %v676 = vadd.f32 %v600, %v675
      %v677 = vpop.f32.mrf.mxu0
      %678 = vmatprep.mubr.bf16.mxu0 0
      %679 = vmatmul.mubr.bf16.gmra.mxu0 %v613
      %v680 = vpop.f32.mrf.mxu0
      %v681 = vadd.f32 %v600, %v680
      %v682 = vpop.f32.mrf.mxu0
      %v683 = vpop.f32.mrf.mxu0
      %v684 = vadd.f32 %v600, %v683
      %v685 = vpop.f32.mrf.mxu0
      %686 = vdwg.mxu0
      %v687 = vld [vmem:[%s7] sm:$0x1]
      %v688 = vld [vmem:[%s7 + $0x1] sm:$0x1]
      %v689 = vld [vmem:[%s7 + $0x2] sm:$0x1]
      %v690 = vld [vmem:[%s5] sm:$0x1]
      %v691 = vld [vmem:[%s5 + $0x1] sm:$0x1]
      %v692 = vld [vmem:[%s5 + $0x2] sm:$0x1]
      %v693 = vld [vmem:[%s8] sm:$0x1]
      %v694 = vld [vmem:[%s6] sm:$0x1]
      %v695 = vld [vmem:[%s9] sm:$0xf]
      %v696 = vld [vmem:[%s9 + $0x4] sm:$0xf]
      %v697 = vld [vmem:[%s10] sm:$0x1]
      %v698 = vld [vmem:[%s572] sm:$0xff]
      %v699 = vpack.c.bf16 %v698, %v698
      %v701 = vlaneseq
      %v702 = vshrl.u32 %v701, 7
      %v703 = vsub.s32 0, %v702
      %v704 = vrot.slane %v697, %v703
      %v708 = vunpack.c.l.b16 %v695
      %v709 = vunpack.c.l.b16 %v696
      %v710 = vpack.c.b16 %v709, %v708
      %vm712 = vcmask 130048
      %v714 = vsel %vm712, %v699, 0
      %716 = vmatprep.subr.bf16.mxu0 0
      %717 = vmatpush1.bf16.msra.mxu0 0
      %718 = vmatprep.subr.bf16.mxu0 0
      %719 = vmatpush1.bf16.msra.mxu0 0
      %720 = vmatprep.subr.bf16.mxu0 0
      %721 = vmatpush1.bf16.msra.mxu0 0
      %722 = vmatprep.subr.bf16.mxu0 0
      %723 = vmatpush1.bf16.msra.mxu0 0
      %724 = vmatprep.subr.bf16.mxu0 0
      %725 = vmatpush1.bf16.msra.mxu0 0
      %726 = vmatprep.subr.bf16.mxu0 0
      %727 = vmatpush1.bf16.msra.mxu0 0
      %728 = vmatprep.subr.bf16.mxu0 0
      %729 = vmatpush1.bf16.msra.mxu0 0
      %730 = vmatprep.subr.bf16.mxu0 0
      %731 = vmatpush1.bf16.msra.mxu0 %v710
      %732 = vmatprep.subr.bf16.mxu0 0
      %733 = vmatpush2.bf16.msra.mxu0 0
      %734 = vmatprep.subr.bf16.mxu0 0
      %735 = vmatpush2.bf16.msra.mxu0 0
      %736 = vmatprep.subr.bf16.mxu0 0
      %737 = vmatpush2.bf16.msra.mxu0 0
      %738 = vmatprep.subr.bf16.mxu0 0
      %739 = vmatpush2.bf16.msra.mxu0 0
      %740 = vmatprep.subr.bf16.mxu0 0
      %741 = vmatpush2.bf16.msra.mxu0 0
      %742 = vmatprep.subr.bf16.mxu0 0
      %743 = vmatpush2.bf16.msra.mxu0 0
      %744 = vmatprep.subr.bf16.mxu0 0
      %745 = vmatpush2.bf16.msra.mxu0 0
      %746 = vmatprep.subr.bf16.mxu0 0
      %747 = vmatpush2.bf16.msra.mxu0 0
      %748 = vmatprep.mubr.bf16.mxu0 0
      %749 = vmatmul.mubr.bf16.gmra.mxu0 %v714
      %v750 = vpop.f32.mrf.mxu0
      %v751 = vadd.f32 %v704, %v750
      %v752 = vpop.f32.mrf.mxu0
      %v753 = vpop.f32.mrf.mxu0
      %v754 = vpop.f32.mrf.mxu0
      %755 = vdwg.mxu0
      %v756 = vadd.f32 %v751, %v657
      %v757 = vtanh.pop %v756
      %759 = vset.pattern.permute.xlu0 96
      %760 = vperm.xlu0 %759, %v757
      %v761 = vpop.permute.xlu0 %760
      %v763 = vlaneseq
      %v764 = vshrl.u32 %v763, 7
      %v765 = vsub.s32 0, %v764
      %v766 = vrot.slane %v690, %v765
      %v767 = vmul.f32 %v761, %v766
      %v769 = vlaneseq
      %v770 = vshrl.u32 %v769, 7
      %v771 = vsub.s32 0, %v770
      %v772 = vrot.slane %v694, %v771
      %v774 = vadd.f32 %v772, %v767
      %775 = vset.pattern.permute.xlu0 97
      %776 = vperm.xlu0 %775, %v757
      %v777 = vpop.permute.xlu0 %776
      %v779 = vlaneseq
      %v780 = vshrl.u32 %v779, 7
      %v781 = vsub.s32 0, %v780
      %v782 = vrot.slane %v691, %v781
      %v783 = vmul.f32 %v777, %v782
      %v784 = vadd.f32 %v774, %v783
      %785 = vset.pattern.permute.xlu0 98
      %786 = vperm.xlu0 %785, %v757
      %v787 = vpop.permute.xlu0 %786
      %v789 = vlaneseq
      %v790 = vshrl.u32 %v789, 7
      %v791 = vsub.s32 0, %v790
      %v792 = vrot.slane %v692, %v791
      %v793 = vmul.f32 %v787, %v792
      %v794 = vadd.f32 %v784, %v793
      %v795 = vsel %vm602, %v794, -inf
      %796 = vmax.xlane.f32.xlu0 %v795
      %v797 = vpop.xlane.xlu0 %796
      %v798 = vsub.f32 %v794, %v797
      %v799 = vmul.f32 %v798, 1.442695
      %v800 = vpow.pop %v799
      %v801 = vsel %vm602, %v800, 0.0
      %802 = vadd.xlane.f32.xlu0 %v801
      %v803 = vpop.xlane.xlu0 %802
      %v804 = vrcp.pop %v803
      %v805 = vmul.f32 %v800, %v804
      %v806 = vmul.f32 %v582, %v805
      %808 = vset.pattern.permute.xlu0 0
      %809 = vperm.xlu0 %808, %v806
      %v810 = vpop.permute.xlu0 %809
      %v812 = vlaneseq
      %v813 = vshrl.u32 %v812, 7
      %v814 = vsub.s32 0, %v813
      %v815 = vrot.slane %v687, %v814
      %v816 = vmul.f32 %v810, %v815
      %v818 = vlaneseq
      %v819 = vshrl.u32 %v818, 7
      %v820 = vsub.s32 0, %v819
      %v821 = vrot.slane %v693, %v820
      %v823 = vadd.f32 %v821, %v816
      %824 = vset.pattern.permute.xlu0 1
      %825 = vperm.xlu0 %824, %v806
      %v826 = vpop.permute.xlu0 %825
      %v828 = vlaneseq
      %v829 = vshrl.u32 %v828, 7
      %v830 = vsub.s32 0, %v829
      %v831 = vrot.slane %v688, %v830
      %v832 = vmul.f32 %v826, %v831
      %v833 = vadd.f32 %v823, %v832
      %834 = vset.pattern.permute.xlu0 2
      %835 = vperm.xlu0 %834, %v806
      %v836 = vpop.permute.xlu0 %835
      %v838 = vlaneseq
      %v839 = vshrl.u32 %v838, 7
      %v840 = vsub.s32 0, %v839
      %v841 = vrot.slane %v689, %v840
      %v842 = vmul.f32 %v836, %v841
      %v843 = vadd.f32 %v833, %v842
      %v844 = vadd.f32 %v843, %v751
      %v845 = vxor.u32 %v844, 2147483648
      %v846 = vmul.f32 %v845, 1.442695
      %v847 = vpow.pop %v846
      %v848 = vadd.f32 %v847, 1.0
      %v849 = vrcp.pop %v848
      %v850 = vmul.f32 1.0, %v849
      %852 = vrot.lane.b32.xlu0 %v751, 96
      %v853 = vpop.permute.xlu0 %852
      %v855 = vmul.f32 %v850, %v853
      %857 = vrot.lane.b32.xlu0 %v855, 32
      %v858 = vpop.permute.xlu0 %857
      %v860 = vadd.f32 %v843, %v858
      %v861 = vtanh.pop %v860
      %v862 = vsub.f32 1.0, %v850
      %864 = vrot.lane.b32.xlu0 %v861, 112
      %v865 = vpop.permute.xlu0 %864
      %v867 = vmul.f32 %v862, %v865
      %869 = vrot.lane.b32.xlu0 %v698, 16
      %v870 = vpop.permute.xlu0 %869
      %v872 = vmul.f32 %v850, %v870
      %v873 = vadd.f32 %v867, %v872
      %875 = vrot.lane.b32.xlu0 %v873, 112
      %v876 = vpop.permute.xlu0 %875
      %878 = vst.msk [vmem:[#allocation2] sm:$0xff] %vm712, %v876
      %v879 = vpack.c.bf16 %v873, %v873
      %881 = vrot.lane.b32.xlu0 %v879, 112
      %v882 = vpop.permute.xlu0 %881
      %v884 = vsel %vm712, %v882, 0
      %886 = vmatprep.subr.bf16.mxu0 0
      %887 = vmatpush1.bf16.msra.mxu0 0
      %888 = vmatprep.subr.bf16.mxu0 0
      %889 = vmatpush1.bf16.msra.mxu0 0
      %890 = vmatprep.subr.bf16.mxu0 0
      %891 = vmatpush1.bf16.msra.mxu0 0
      %892 = vmatprep.subr.bf16.mxu0 0
      %893 = vmatpush1.bf16.msra.mxu0 0
      %894 = vmatprep.subr.bf16.mxu0 0
      %895 = vmatpush1.bf16.msra.mxu0 0
      %896 = vmatprep.subr.bf16.mxu0 0
      %897 = vmatpush1.bf16.msra.mxu0 0
      %898 = vmatprep.subr.bf16.mxu0 0
      %899 = vmatpush1.bf16.msra.mxu0 0
      %900 = vmatprep.subr.bf16.mxu0 0
      %901 = vmatpush1.bf16.msra.mxu0 %v710
      %902 = vmatprep.subr.bf16.mxu0 0
      %903 = vmatpush2.bf16.msra.mxu0 0
      %904 = vmatprep.subr.bf16.mxu0 0
      %905 = vmatpush2.bf16.msra.mxu0 0
      %906 = vmatprep.subr.bf16.mxu0 0
      %907 = vmatpush2.bf16.msra.mxu0 0
      %908 = vmatprep.subr.bf16.mxu0 0
      %909 = vmatpush2.bf16.msra.mxu0 0
      %910 = vmatprep.subr.bf16.mxu0 0
      %911 = vmatpush2.bf16.msra.mxu0 0
      %912 = vmatprep.subr.bf16.mxu0 0
      %913 = vmatpush2.bf16.msra.mxu0 0
      %914 = vmatprep.subr.bf16.mxu0 0
      %915 = vmatpush2.bf16.msra.mxu0 0
      %916 = vmatprep.subr.bf16.mxu0 0
      %917 = vmatpush2.bf16.msra.mxu0 0
      %918 = vmatprep.mubr.bf16.mxu0 0
      %919 = vmatmul.mubr.bf16.gmra.mxu0 %v884
      %v920 = vpop.f32.mrf.mxu0
      %v921 = vadd.f32 %v704, %v920
      %v922 = vpop.f32.mrf.mxu0
      %v923 = vpop.f32.mrf.mxu0
      %v924 = vpop.f32.mrf.mxu0
      %925 = vdwg.mxu0
      %927 = vrot.lane.b32.xlu0 %v921, 80
      %v928 = vpop.permute.xlu0 %927
      %vm930 = vcmask 261120
      %931 = vst.msk [vmem:[#allocation3] sm:$0xff] %vm930, %v928
      %v932 = vadd.f32 %v921, %v660
      %v933 = vtanh.pop %v932
      %935 = vset.pattern.permute.xlu0 96
      %936 = vperm.xlu0 %935, %v933
      %v937 = vpop.permute.xlu0 %936
      %v939 = vmul.f32 %v937, %v766
      %v940 = vadd.f32 %v772, %v939
      %941 = vset.pattern.permute.xlu0 97
      %942 = vperm.xlu0 %941, %v933
      %v943 = vpop.permute.xlu0 %942
      %v945 = vmul.f32 %v943, %v782
      %v946 = vadd.f32 %v940, %v945
      %947 = vset.pattern.permute.xlu0 98
      %948 = vperm.xlu0 %947, %v933
      %v949 = vpop.permute.xlu0 %948
      %v951 = vmul.f32 %v949, %v792
      %v952 = vadd.f32 %v946, %v951
      %v953 = vsel %vm602, %v952, -inf
      %954 = vmax.xlane.f32.xlu0 %v953
      %v955 = vpop.xlane.xlu0 %954
      %v956 = vsub.f32 %v952, %v955
      %v957 = vmul.f32 %v956, 1.442695
      %v958 = vpow.pop %v957
      %v959 = vsel %vm602, %v958, 0.0
      %960 = vadd.xlane.f32.xlu0 %v959
      %v961 = vpop.xlane.xlu0 %960
      %v962 = vrcp.pop %v961
      %v963 = vmul.f32 %v958, %v962
      %v964 = vmul.f32 %v583, %v963
      %966 = vset.pattern.permute.xlu0 0
      %967 = vperm.xlu0 %966, %v964
      %v968 = vpop.permute.xlu0 %967
      %v970 = vmul.f32 %v968, %v815
      %v971 = vadd.f32 %v821, %v970
      %972 = vset.pattern.permute.xlu0 1
      %973 = vperm.xlu0 %972, %v964
      %v974 = vpop.permute.xlu0 %973
      %v976 = vmul.f32 %v974, %v831
      %v977 = vadd.f32 %v971, %v976
      %978 = vset.pattern.permute.xlu0 2
      %979 = vperm.xlu0 %978, %v964
      %v980 = vpop.permute.xlu0 %979
      %v982 = vmul.f32 %v980, %v841
      %v983 = vadd.f32 %v977, %v982
      %v984 = vadd.f32 %v983, %v921
      %v985 = vxor.u32 %v984, 2147483648
      %v986 = vmul.f32 %v985, 1.442695
      %v987 = vpow.pop %v986
      %v988 = vadd.f32 %v987, 1.0
      %v989 = vrcp.pop %v988
      %v990 = vmul.f32 1.0, %v989
      %991 = vrot.lane.b32.xlu0 %v921, 96
      %v992 = vpop.permute.xlu0 %991
      %v994 = vmul.f32 %v990, %v992
      %996 = vrot.lane.b32.xlu0 %v994, 32
      %v997 = vpop.permute.xlu0 %996
      %v999 = vadd.f32 %v983, %v997
      %v1000 = vtanh.pop %v999
      %v1001 = vsub.f32 1.0, %v990
      %1003 = vrot.lane.b32.xlu0 %v1000, 112
      %v1004 = vpop.permute.xlu0 %1003
      %v1006 = vmul.f32 %v1001, %v1004
      %v1007 = vmul.f32 %v990, %v873
      %v1008 = vadd.f32 %v1006, %v1007
      %1010 = vrot.lane.b32.xlu0 %v1008, 112
      %v1011 = vpop.permute.xlu0 %1010
      %s1013 = scalar_lea.vmem [#allocation2], 8
      %1014 = vst.msk [vmem:[%s1013] sm:$0xff] %vm712, %v1011
      %v1015 = vpack.c.bf16 %v1008, %v1008
      %1017 = vrot.lane.b32.xlu0 %v1015, 112
      %v1018 = vpop.permute.xlu0 %1017
      %v1020 = vsel %vm712, %v1018, 0
      %1022 = vmatprep.subr.bf16.mxu0 0
      %1023 = vmatpush1.bf16.msra.mxu0 0
      %1024 = vmatprep.subr.bf16.mxu0 0
      %1025 = vmatpush1.bf16.msra.mxu0 0
      %1026 = vmatprep.subr.bf16.mxu0 0
      %1027 = vmatpush1.bf16.msra.mxu0 0
      %1028 = vmatprep.subr.bf16.mxu0 0
      %1029 = vmatpush1.bf16.msra.mxu0 0
      %1030 = vmatprep.subr.bf16.mxu0 0
      %1031 = vmatpush1.bf16.msra.mxu0 0
      %1032 = vmatprep.subr.bf16.mxu0 0
      %1033 = vmatpush1.bf16.msra.mxu0 0
      %1034 = vmatprep.subr.bf16.mxu0 0
      %1035 = vmatpush1.bf16.msra.mxu0 0
      %1036 = vmatprep.subr.bf16.mxu0 0
      %1037 = vmatpush1.bf16.msra.mxu0 %v710
      %1038 = vmatprep.subr.bf16.mxu0 0
      %1039 = vmatpush2.bf16.msra.mxu0 0
      %1040 = vmatprep.subr.bf16.mxu0 0
      %1041 = vmatpush2.bf16.msra.mxu0 0
      %1042 = vmatprep.subr.bf16.mxu0 0
      %1043 = vmatpush2.bf16.msra.mxu0 0
      %1044 = vmatprep.subr.bf16.mxu0 0
      %1045 = vmatpush2.bf16.msra.mxu0 0
      %1046 = vmatprep.subr.bf16.mxu0 0
      %1047 = vmatpush2.bf16.msra.mxu0 0
      %1048 = vmatprep.subr.bf16.mxu0 0
      %1049 = vmatpush2.bf16.msra.mxu0 0
      %1050 = vmatprep.subr.bf16.mxu0 0
      %1051 = vmatpush2.bf16.msra.mxu0 0
      %1052 = vmatprep.subr.bf16.mxu0 0
      %1053 = vmatpush2.bf16.msra.mxu0 0
      %1054 = vmatprep.mubr.bf16.mxu0 0
      %1055 = vmatmul.mubr.bf16.gmra.mxu0 %v1020
      %v1056 = vpop.f32.mrf.mxu0
      %v1057 = vadd.f32 %v704, %v1056
      %v1058 = vpop.f32.mrf.mxu0
      %v1059 = vpop.f32.mrf.mxu0
      %v1060 = vpop.f32.mrf.mxu0
      %1061 = vdwg.mxu0
      %1063 = vrot.lane.b32.xlu0 %v1057, 80
      %v1064 = vpop.permute.xlu0 %1063
      %s1066 = scalar_lea.vmem [#allocation3], 8
      %1067 = vst.msk [vmem:[%s1066] sm:$0xff] %vm930, %v1064
      %v1068 = vadd.f32 %v1057, %v665
      %v1069 = vtanh.pop %v1068
      %1071 = vset.pattern.permute.xlu0 96
      %1072 = vperm.xlu0 %1071, %v1069
      %v1073 = vpop.permute.xlu0 %1072
      %v1075 = vmul.f32 %v1073, %v766
      %v1076 = vadd.f32 %v772, %v1075
      %1077 = vset.pattern.permute.xlu0 97
      %1078 = vperm.xlu0 %1077, %v1069
      %v1079 = vpop.permute.xlu0 %1078
      %v1081 = vmul.f32 %v1079, %v782
      %v1082 = vadd.f32 %v1076, %v1081
      %1083 = vset.pattern.permute.xlu0 98
      %1084 = vperm.xlu0 %1083, %v1069
      %v1085 = vpop.permute.xlu0 %1084
      %v1087 = vmul.f32 %v1085, %v792
      %v1088 = vadd.f32 %v1082, %v1087
      %v1089 = vsel %vm602, %v1088, -inf
      %1090 = vmax.xlane.f32.xlu0 %v1089
      %v1091 = vpop.xlane.xlu0 %1090
      %v1092 = vsub.f32 %v1088, %v1091
      %v1093 = vmul.f32 %v1092, 1.442695
      %v1094 = vpow.pop %v1093
      %v1095 = vsel %vm602, %v1094, 0.0
      %1096 = vadd.xlane.f32.xlu0 %v1095
      %v1097 = vpop.xlane.xlu0 %1096
      %v1098 = vrcp.pop %v1097
      %v1099 = vmul.f32 %v1094, %v1098
      %v1100 = vmul.f32 %v584, %v1099
      %1102 = vset.pattern.permute.xlu0 0
      %1103 = vperm.xlu0 %1102, %v1100
      %v1104 = vpop.permute.xlu0 %1103
      %v1106 = vmul.f32 %v1104, %v815
      %v1107 = vadd.f32 %v821, %v1106
      %1108 = vset.pattern.permute.xlu0 1
      %1109 = vperm.xlu0 %1108, %v1100
      %v1110 = vpop.permute.xlu0 %1109
      %v1112 = vmul.f32 %v1110, %v831
      %v1113 = vadd.f32 %v1107, %v1112
      %1114 = vset.pattern.permute.xlu0 2
      %1115 = vperm.xlu0 %1114, %v1100
      %v1116 = vpop.permute.xlu0 %1115
      %v1118 = vmul.f32 %v1116, %v841
      %v1119 = vadd.f32 %v1113, %v1118
      %v1120 = vadd.f32 %v1119, %v1057
      %v1121 = vxor.u32 %v1120, 2147483648
      %v1122 = vmul.f32 %v1121, 1.442695
      %v1123 = vpow.pop %v1122
      %v1124 = vadd.f32 %v1123, 1.0
      %v1125 = vrcp.pop %v1124
      %v1126 = vmul.f32 1.0, %v1125
      %1127 = vrot.lane.b32.xlu0 %v1057, 96
      %v1128 = vpop.permute.xlu0 %1127
      %v1130 = vmul.f32 %v1126, %v1128
      %1132 = vrot.lane.b32.xlu0 %v1130, 32
      %v1133 = vpop.permute.xlu0 %1132
      %v1135 = vadd.f32 %v1119, %v1133
      %v1136 = vtanh.pop %v1135
      %v1137 = vsub.f32 1.0, %v1126
      %1139 = vrot.lane.b32.xlu0 %v1136, 112
      %v1140 = vpop.permute.xlu0 %1139
      %v1142 = vmul.f32 %v1137, %v1140
      %v1143 = vmul.f32 %v1126, %v1008
      %v1144 = vadd.f32 %v1142, %v1143
      %1146 = vrot.lane.b32.xlu0 %v1144, 112
      %v1147 = vpop.permute.xlu0 %1146
      %s1149 = scalar_lea.vmem [#allocation2], 16
      %1150 = vst.msk [vmem:[%s1149] sm:$0xff] %vm712, %v1147
      %v1151 = vpack.c.bf16 %v1144, %v1144
      %1153 = vrot.lane.b32.xlu0 %v1151, 112
      %v1154 = vpop.permute.xlu0 %1153
      %v1156 = vsel %vm712, %v1154, 0
      %1158 = vmatprep.subr.bf16.mxu0 0
      %1159 = vmatpush1.bf16.msra.mxu0 0
      %1160 = vmatprep.subr.bf16.mxu0 0
      %1161 = vmatpush1.bf16.msra.mxu0 0
      %1162 = vmatprep.subr.bf16.mxu0 0
      %1163 = vmatpush1.bf16.msra.mxu0 0
      %1164 = vmatprep.subr.bf16.mxu0 0
      %1165 = vmatpush1.bf16.msra.mxu0 0
      %1166 = vmatprep.subr.bf16.mxu0 0
      %1167 = vmatpush1.bf16.msra.mxu0 0
      %1168 = vmatprep.subr.bf16.mxu0 0
      %1169 = vmatpush1.bf16.msra.mxu0 0
      %1170 = vmatprep.subr.bf16.mxu0 0
      %1171 = vmatpush1.bf16.msra.mxu0 0
      %1172 = vmatprep.subr.bf16.mxu0 0
      %1173 = vmatpush1.bf16.msra.mxu0 %v710
      %1174 = vmatprep.subr.bf16.mxu0 0
      %1175 = vmatpush2.bf16.msra.mxu0 0
      %1176 = vmatprep.subr.bf16.mxu0 0
      %1177 = vmatpush2.bf16.msra.mxu0 0
      %1178 = vmatprep.subr.bf16.mxu0 0
      %1179 = vmatpush2.bf16.msra.mxu0 0
      %1180 = vmatprep.subr.bf16.mxu0 0
      %1181 = vmatpush2.bf16.msra.mxu0 0
      %1182 = vmatprep.subr.bf16.mxu0 0
      %1183 = vmatpush2.bf16.msra.mxu0 0
      %1184 = vmatprep.subr.bf16.mxu0 0
      %1185 = vmatpush2.bf16.msra.mxu0 0
      %1186 = vmatprep.subr.bf16.mxu0 0
      %1187 = vmatpush2.bf16.msra.mxu0 0
      %1188 = vmatprep.subr.bf16.mxu0 0
      %1189 = vmatpush2.bf16.msra.mxu0 0
      %1190 = vmatprep.mubr.bf16.mxu0 0
      %1191 = vmatmul.mubr.bf16.gmra.mxu0 %v1156
      %v1192 = vpop.f32.mrf.mxu0
      %v1193 = vadd.f32 %v704, %v1192
      %v1194 = vpop.f32.mrf.mxu0
      %v1195 = vpop.f32.mrf.mxu0
      %v1196 = vpop.f32.mrf.mxu0
      %1197 = vdwg.mxu0
      %1199 = vrot.lane.b32.xlu0 %v1193, 80
      %v1200 = vpop.permute.xlu0 %1199
      %s1202 = scalar_lea.vmem [#allocation3], 16
      %1203 = vst.msk [vmem:[%s1202] sm:$0xff] %vm930, %v1200
      %v1204 = vadd.f32 %v1193, %v668
      %v1205 = vtanh.pop %v1204
      %1207 = vset.pattern.permute.xlu0 96
      %1208 = vperm.xlu0 %1207, %v1205
      %v1209 = vpop.permute.xlu0 %1208
      %v1211 = vmul.f32 %v1209, %v766
      %v1212 = vadd.f32 %v772, %v1211
      %1213 = vset.pattern.permute.xlu0 97
      %1214 = vperm.xlu0 %1213, %v1205
      %v1215 = vpop.permute.xlu0 %1214
      %v1217 = vmul.f32 %v1215, %v782
      %v1218 = vadd.f32 %v1212, %v1217
      %1219 = vset.pattern.permute.xlu0 98
      %1220 = vperm.xlu0 %1219, %v1205
      %v1221 = vpop.permute.xlu0 %1220
      %v1223 = vmul.f32 %v1221, %v792
      %v1224 = vadd.f32 %v1218, %v1223
      %v1225 = vsel %vm602, %v1224, -inf
      %1226 = vmax.xlane.f32.xlu0 %v1225
      %v1227 = vpop.xlane.xlu0 %1226
      %v1228 = vsub.f32 %v1224, %v1227
      %v1229 = vmul.f32 %v1228, 1.442695
      %v1230 = vpow.pop %v1229
      %v1231 = vsel %vm602, %v1230, 0.0
      %1232 = vadd.xlane.f32.xlu0 %v1231
      %v1233 = vpop.xlane.xlu0 %1232
      %v1234 = vrcp.pop %v1233
      %v1235 = vmul.f32 %v1230, %v1234
      %v1236 = vmul.f32 %v585, %v1235
      %1238 = vset.pattern.permute.xlu0 0
      %1239 = vperm.xlu0 %1238, %v1236
      %v1240 = vpop.permute.xlu0 %1239
      %v1242 = vmul.f32 %v1240, %v815
      %v1243 = vadd.f32 %v821, %v1242
      %1244 = vset.pattern.permute.xlu0 1
      %1245 = vperm.xlu0 %1244, %v1236
      %v1246 = vpop.permute.xlu0 %1245
      %v1248 = vmul.f32 %v1246, %v831
      %v1249 = vadd.f32 %v1243, %v1248
      %1250 = vset.pattern.permute.xlu0 2
      %1251 = vperm.xlu0 %1250, %v1236
      %v1252 = vpop.permute.xlu0 %1251
      %v1254 = vmul.f32 %v1252, %v841
      %v1255 = vadd.f32 %v1249, %v1254
      %v1256 = vadd.f32 %v1255, %v1193
      %v1257 = vxor.u32 %v1256, 2147483648
      %v1258 = vmul.f32 %v1257, 1.442695
      %v1259 = vpow.pop %v1258
      %v1260 = vadd.f32 %v1259, 1.0
      %v1261 = vrcp.pop %v1260
      %v1262 = vmul.f32 1.0, %v1261
      %1263 = vrot.lane.b32.xlu0 %v1193, 96
      %v1264 = vpop.permute.xlu0 %1263
      %v1266 = vmul.f32 %v1262, %v1264
      %1268 = vrot.lane.b32.xlu0 %v1266, 32
      %v1269 = vpop.permute.xlu0 %1268
      %v1271 = vadd.f32 %v1255, %v1269
      %v1272 = vtanh.pop %v1271
      %v1273 = vsub.f32 1.0, %v1262
      %1275 = vrot.lane.b32.xlu0 %v1272, 112
      %v1276 = vpop.permute.xlu0 %1275
      %v1278 = vmul.f32 %v1273, %v1276
      %v1279 = vmul.f32 %v1262, %v1144
      %v1280 = vadd.f32 %v1278, %v1279
      %1282 = vrot.lane.b32.xlu0 %v1280, 112
      %v1283 = vpop.permute.xlu0 %1282
      %s1285 = scalar_lea.vmem [#allocation2], 24
      %1286 = vst.msk [vmem:[%s1285] sm:$0xff] %vm712, %v1283
      %v1287 = vpack.c.bf16 %v1280, %v1280
      %1289 = vrot.lane.b32.xlu0 %v1287, 112
      %v1290 = vpop.permute.xlu0 %1289
      %v1292 = vsel %vm712, %v1290, 0
      %1294 = vmatprep.subr.bf16.mxu0 0
      %1295 = vmatpush1.bf16.msra.mxu0 0
      %1296 = vmatprep.subr.bf16.mxu0 0
      %1297 = vmatpush1.bf16.msra.mxu0 0
      %1298 = vmatprep.subr.bf16.mxu0 0
      %1299 = vmatpush1.bf16.msra.mxu0 0
      %1300 = vmatprep.subr.bf16.mxu0 0
      %1301 = vmatpush1.bf16.msra.mxu0 0
      %1302 = vmatprep.subr.bf16.mxu0 0
      %1303 = vmatpush1.bf16.msra.mxu0 0
      %1304 = vmatprep.subr.bf16.mxu0 0
      %1305 = vmatpush1.bf16.msra.mxu0 0
      %1306 = vmatprep.subr.bf16.mxu0 0
      %1307 = vmatpush1.bf16.msra.mxu0 0
      %1308 = vmatprep.subr.bf16.mxu0 0
      %1309 = vmatpush1.bf16.msra.mxu0 %v710
      %1310 = vmatprep.subr.bf16.mxu0 0
      %1311 = vmatpush2.bf16.msra.mxu0 0
      %1312 = vmatprep.subr.bf16.mxu0 0
      %1313 = vmatpush2.bf16.msra.mxu0 0
      %1314 = vmatprep.subr.bf16.mxu0 0
      %1315 = vmatpush2.bf16.msra.mxu0 0
      %1316 = vmatprep.subr.bf16.mxu0 0
      %1317 = vmatpush2.bf16.msra.mxu0 0
      %1318 = vmatprep.subr.bf16.mxu0 0
      %1319 = vmatpush2.bf16.msra.mxu0 0
      %1320 = vmatprep.subr.bf16.mxu0 0
      %1321 = vmatpush2.bf16.msra.mxu0 0
      %1322 = vmatprep.subr.bf16.mxu0 0
      %1323 = vmatpush2.bf16.msra.mxu0 0
      %1324 = vmatprep.subr.bf16.mxu0 0
      %1325 = vmatpush2.bf16.msra.mxu0 0
      %1326 = vmatprep.mubr.bf16.mxu0 0
      %1327 = vmatmul.mubr.bf16.gmra.mxu0 %v1292
      %v1328 = vpop.f32.mrf.mxu0
      %v1329 = vadd.f32 %v704, %v1328
      %v1330 = vpop.f32.mrf.mxu0
      %v1331 = vpop.f32.mrf.mxu0
      %v1332 = vpop.f32.mrf.mxu0
      %1333 = vdwg.mxu0
      %1335 = vrot.lane.b32.xlu0 %v1329, 80
      %v1336 = vpop.permute.xlu0 %1335
      %s1338 = scalar_lea.vmem [#allocation3], 24
      %1339 = vst.msk [vmem:[%s1338] sm:$0xff] %vm930, %v1336
      %v1340 = vadd.f32 %v1329, %v673
      %v1341 = vtanh.pop %v1340
      %1343 = vset.pattern.permute.xlu0 96
      %1344 = vperm.xlu0 %1343, %v1341
      %v1345 = vpop.permute.xlu0 %1344
      %v1347 = vmul.f32 %v1345, %v766
      %v1348 = vadd.f32 %v772, %v1347
      %1349 = vset.pattern.permute.xlu0 97
      %1350 = vperm.xlu0 %1349, %v1341
      %v1351 = vpop.permute.xlu0 %1350
      %v1353 = vmul.f32 %v1351, %v782
      %v1354 = vadd.f32 %v1348, %v1353
      %1355 = vset.pattern.permute.xlu0 98
      %1356 = vperm.xlu0 %1355, %v1341
      %v1357 = vpop.permute.xlu0 %1356
      %v1359 = vmul.f32 %v1357, %v792
      %v1360 = vadd.f32 %v1354, %v1359
      %v1361 = vsel %vm602, %v1360, -inf
      %1362 = vmax.xlane.f32.xlu0 %v1361
      %v1363 = vpop.xlane.xlu0 %1362
      %v1364 = vsub.f32 %v1360, %v1363
      %v1365 = vmul.f32 %v1364, 1.442695
      %v1366 = vpow.pop %v1365
      %v1367 = vsel %vm602, %v1366, 0.0
      %1368 = vadd.xlane.f32.xlu0 %v1367
      %v1369 = vpop.xlane.xlu0 %1368
      %v1370 = vrcp.pop %v1369
      %v1371 = vmul.f32 %v1366, %v1370
      %v1372 = vmul.f32 %v586, %v1371
      %1374 = vset.pattern.permute.xlu0 0
      %1375 = vperm.xlu0 %1374, %v1372
      %v1376 = vpop.permute.xlu0 %1375
      %v1378 = vmul.f32 %v1376, %v815
      %v1379 = vadd.f32 %v821, %v1378
      %1380 = vset.pattern.permute.xlu0 1
      %1381 = vperm.xlu0 %1380, %v1372
      %v1382 = vpop.permute.xlu0 %1381
      %v1384 = vmul.f32 %v1382, %v831
      %v1385 = vadd.f32 %v1379, %v1384
      %1386 = vset.pattern.permute.xlu0 2
      %1387 = vperm.xlu0 %1386, %v1372
      %v1388 = vpop.permute.xlu0 %1387
      %v1390 = vmul.f32 %v1388, %v841
      %v1391 = vadd.f32 %v1385, %v1390
      %v1392 = vadd.f32 %v1391, %v1329
      %v1393 = vxor.u32 %v1392, 2147483648
      %v1394 = vmul.f32 %v1393, 1.442695
      %v1395 = vpow.pop %v1394
      %v1396 = vadd.f32 %v1395, 1.0
      %v1397 = vrcp.pop %v1396
      %v1398 = vmul.f32 1.0, %v1397
      %1399 = vrot.lane.b32.xlu0 %v1329, 96
      %v1400 = vpop.permute.xlu0 %1399
      %v1402 = vmul.f32 %v1398, %v1400
      %1404 = vrot.lane.b32.xlu0 %v1402, 32
      %v1405 = vpop.permute.xlu0 %1404
      %v1407 = vadd.f32 %v1391, %v1405
      %v1408 = vtanh.pop %v1407
      %v1409 = vsub.f32 1.0, %v1398
      %1411 = vrot.lane.b32.xlu0 %v1408, 112
      %v1412 = vpop.permute.xlu0 %1411
      %v1414 = vmul.f32 %v1409, %v1412
      %v1415 = vmul.f32 %v1398, %v1280
      %v1416 = vadd.f32 %v1414, %v1415
      %1418 = vrot.lane.b32.xlu0 %v1416, 112
      %v1419 = vpop.permute.xlu0 %1418
      %s1421 = scalar_lea.vmem [#allocation2], 32
      %1422 = vst.msk [vmem:[%s1421] sm:$0xff] %vm712, %v1419
      %v1423 = vpack.c.bf16 %v1416, %v1416
      %1425 = vrot.lane.b32.xlu0 %v1423, 112
      %v1426 = vpop.permute.xlu0 %1425
      %v1428 = vsel %vm712, %v1426, 0
      %1430 = vmatprep.subr.bf16.mxu0 0
      %1431 = vmatpush1.bf16.msra.mxu0 0
      %1432 = vmatprep.subr.bf16.mxu0 0
      %1433 = vmatpush1.bf16.msra.mxu0 0
      %1434 = vmatprep.subr.bf16.mxu0 0
      %1435 = vmatpush1.bf16.msra.mxu0 0
      %1436 = vmatprep.subr.bf16.mxu0 0
      %1437 = vmatpush1.bf16.msra.mxu0 0
      %1438 = vmatprep.subr.bf16.mxu0 0
      %1439 = vmatpush1.bf16.msra.mxu0 0
      %1440 = vmatprep.subr.bf16.mxu0 0
      %1441 = vmatpush1.bf16.msra.mxu0 0
      %1442 = vmatprep.subr.bf16.mxu0 0
      %1443 = vmatpush1.bf16.msra.mxu0 0
      %1444 = vmatprep.subr.bf16.mxu0 0
      %1445 = vmatpush1.bf16.msra.mxu0 %v710
      %1446 = vmatprep.subr.bf16.mxu0 0
      %1447 = vmatpush2.bf16.msra.mxu0 0
      %1448 = vmatprep.subr.bf16.mxu0 0
      %1449 = vmatpush2.bf16.msra.mxu0 0
      %1450 = vmatprep.subr.bf16.mxu0 0
      %1451 = vmatpush2.bf16.msra.mxu0 0
      %1452 = vmatprep.subr.bf16.mxu0 0
      %1453 = vmatpush2.bf16.msra.mxu0 0
      %1454 = vmatprep.subr.bf16.mxu0 0
      %1455 = vmatpush2.bf16.msra.mxu0 0
      %1456 = vmatprep.subr.bf16.mxu0 0
      %1457 = vmatpush2.bf16.msra.mxu0 0
      %1458 = vmatprep.subr.bf16.mxu0 0
      %1459 = vmatpush2.bf16.msra.mxu0 0
      %1460 = vmatprep.subr.bf16.mxu0 0
      %1461 = vmatpush2.bf16.msra.mxu0 0
      %1462 = vmatprep.mubr.bf16.mxu0 0
      %1463 = vmatmul.mubr.bf16.gmra.mxu0 %v1428
      %v1464 = vpop.f32.mrf.mxu0
      %v1465 = vadd.f32 %v704, %v1464
      %v1466 = vpop.f32.mrf.mxu0
      %v1467 = vpop.f32.mrf.mxu0
      %v1468 = vpop.f32.mrf.mxu0
      %1469 = vdwg.mxu0
      %1471 = vrot.lane.b32.xlu0 %v1465, 80
      %v1472 = vpop.permute.xlu0 %1471
      %s1474 = scalar_lea.vmem [#allocation3], 32
      %1475 = vst.msk [vmem:[%s1474] sm:$0xff] %vm930, %v1472
      %v1476 = vadd.f32 %v1465, %v676
      %v1477 = vtanh.pop %v1476
      %1479 = vset.pattern.permute.xlu0 96
      %1480 = vperm.xlu0 %1479, %v1477
      %v1481 = vpop.permute.xlu0 %1480
      %v1483 = vmul.f32 %v1481, %v766
      %v1484 = vadd.f32 %v772, %v1483
      %1485 = vset.pattern.permute.xlu0 97
      %1486 = vperm.xlu0 %1485, %v1477
      %v1487 = vpop.permute.xlu0 %1486
      %v1489 = vmul.f32 %v1487, %v782
      %v1490 = vadd.f32 %v1484, %v1489
      %1491 = vset.pattern.permute.xlu0 98
      %1492 = vperm.xlu0 %1491, %v1477
      %v1493 = vpop.permute.xlu0 %1492
      %v1495 = vmul.f32 %v1493, %v792
      %v1496 = vadd.f32 %v1490, %v1495
      %v1497 = vsel %vm602, %v1496, -inf
      %1498 = vmax.xlane.f32.xlu0 %v1497
      %v1499 = vpop.xlane.xlu0 %1498
      %v1500 = vsub.f32 %v1496, %v1499
      %v1501 = vmul.f32 %v1500, 1.442695
      %v1502 = vpow.pop %v1501
      %v1503 = vsel %vm602, %v1502, 0.0
      %1504 = vadd.xlane.f32.xlu0 %v1503
      %v1505 = vpop.xlane.xlu0 %1504
      %v1506 = vrcp.pop %v1505
      %v1507 = vmul.f32 %v1502, %v1506
      %v1508 = vmul.f32 %v587, %v1507
      %1510 = vset.pattern.permute.xlu0 0
      %1511 = vperm.xlu0 %1510, %v1508
      %v1512 = vpop.permute.xlu0 %1511
      %v1514 = vmul.f32 %v1512, %v815
      %v1515 = vadd.f32 %v821, %v1514
      %1516 = vset.pattern.permute.xlu0 1
      %1517 = vperm.xlu0 %1516, %v1508
      %v1518 = vpop.permute.xlu0 %1517
      %v1520 = vmul.f32 %v1518, %v831
      %v1521 = vadd.f32 %v1515, %v1520
      %1522 = vset.pattern.permute.xlu0 2
      %1523 = vperm.xlu0 %1522, %v1508
      %v1524 = vpop.permute.xlu0 %1523
      %v1526 = vmul.f32 %v1524, %v841
      %v1527 = vadd.f32 %v1521, %v1526
      %v1528 = vadd.f32 %v1527, %v1465
      %v1529 = vxor.u32 %v1528, 2147483648
      %v1530 = vmul.f32 %v1529, 1.442695
      %v1531 = vpow.pop %v1530
      %v1532 = vadd.f32 %v1531, 1.0
      %v1533 = vrcp.pop %v1532
      %v1534 = vmul.f32 1.0, %v1533
      %1535 = vrot.lane.b32.xlu0 %v1465, 96
      %v1536 = vpop.permute.xlu0 %1535
      %v1538 = vmul.f32 %v1534, %v1536
      %1540 = vrot.lane.b32.xlu0 %v1538, 32
      %v1541 = vpop.permute.xlu0 %1540
      %v1543 = vadd.f32 %v1527, %v1541
      %v1544 = vtanh.pop %v1543
      %v1545 = vsub.f32 1.0, %v1534
      %1547 = vrot.lane.b32.xlu0 %v1544, 112
      %v1548 = vpop.permute.xlu0 %1547
      %v1550 = vmul.f32 %v1545, %v1548
      %v1551 = vmul.f32 %v1534, %v1416
      %v1552 = vadd.f32 %v1550, %v1551
      %1554 = vrot.lane.b32.xlu0 %v1552, 112
      %v1555 = vpop.permute.xlu0 %1554
      %s1557 = scalar_lea.vmem [#allocation2], 40
      %1558 = vst.msk [vmem:[%s1557] sm:$0xff] %vm712, %v1555
      %v1559 = vpack.c.bf16 %v1552, %v1552
      %1561 = vrot.lane.b32.xlu0 %v1559, 112
      %v1562 = vpop.permute.xlu0 %1561
      %v1564 = vsel %vm712, %v1562, 0
      %1566 = vmatprep.subr.bf16.mxu0 0
      %1567 = vmatpush1.bf16.msra.mxu0 0
      %1568 = vmatprep.subr.bf16.mxu0 0
      %1569 = vmatpush1.bf16.msra.mxu0 0
      %1570 = vmatprep.subr.bf16.mxu0 0
      %1571 = vmatpush1.bf16.msra.mxu0 0
      %1572 = vmatprep.subr.bf16.mxu0 0
      %1573 = vmatpush1.bf16.msra.mxu0 0
      %1574 = vmatprep.subr.bf16.mxu0 0
      %1575 = vmatpush1.bf16.msra.mxu0 0
      %1576 = vmatprep.subr.bf16.mxu0 0
      %1577 = vmatpush1.bf16.msra.mxu0 0
      %1578 = vmatprep.subr.bf16.mxu0 0
      %1579 = vmatpush1.bf16.msra.mxu0 0
      %1580 = vmatprep.subr.bf16.mxu0 0
      %1581 = vmatpush1.bf16.msra.mxu0 %v710
      %1582 = vmatprep.subr.bf16.mxu0 0
      %1583 = vmatpush2.bf16.msra.mxu0 0
      %1584 = vmatprep.subr.bf16.mxu0 0
      %1585 = vmatpush2.bf16.msra.mxu0 0
      %1586 = vmatprep.subr.bf16.mxu0 0
      %1587 = vmatpush2.bf16.msra.mxu0 0
      %1588 = vmatprep.subr.bf16.mxu0 0
      %1589 = vmatpush2.bf16.msra.mxu0 0
      %1590 = vmatprep.subr.bf16.mxu0 0
      %1591 = vmatpush2.bf16.msra.mxu0 0
      %1592 = vmatprep.subr.bf16.mxu0 0
      %1593 = vmatpush2.bf16.msra.mxu0 0
      %1594 = vmatprep.subr.bf16.mxu0 0
      %1595 = vmatpush2.bf16.msra.mxu0 0
      %1596 = vmatprep.subr.bf16.mxu0 0
      %1597 = vmatpush2.bf16.msra.mxu0 0
      %1598 = vmatprep.mubr.bf16.mxu0 0
      %1599 = vmatmul.mubr.bf16.gmra.mxu0 %v1564
      %v1600 = vpop.f32.mrf.mxu0
      %v1601 = vadd.f32 %v704, %v1600
      %v1602 = vpop.f32.mrf.mxu0
      %v1603 = vpop.f32.mrf.mxu0
      %v1604 = vpop.f32.mrf.mxu0
      %1605 = vdwg.mxu0
      %1607 = vrot.lane.b32.xlu0 %v1601, 80
      %v1608 = vpop.permute.xlu0 %1607
      %s1610 = scalar_lea.vmem [#allocation3], 40
      %1611 = vst.msk [vmem:[%s1610] sm:$0xff] %vm930, %v1608
      %v1612 = vadd.f32 %v1601, %v681
      %v1613 = vtanh.pop %v1612
      %1615 = vset.pattern.permute.xlu0 96
      %1616 = vperm.xlu0 %1615, %v1613
      %v1617 = vpop.permute.xlu0 %1616
      %v1619 = vmul.f32 %v1617, %v766
      %v1620 = vadd.f32 %v772, %v1619
      %1621 = vset.pattern.permute.xlu0 97
      %1622 = vperm.xlu0 %1621, %v1613
      %v1623 = vpop.permute.xlu0 %1622
      %v1625 = vmul.f32 %v1623, %v782
      %v1626 = vadd.f32 %v1620, %v1625
      %1627 = vset.pattern.permute.xlu0 98
      %1628 = vperm.xlu0 %1627, %v1613
      %v1629 = vpop.permute.xlu0 %1628
      %v1631 = vmul.f32 %v1629, %v792
      %v1632 = vadd.f32 %v1626, %v1631
      %v1633 = vsel %vm602, %v1632, -inf
      %1634 = vmax.xlane.f32.xlu0 %v1633
      %v1635 = vpop.xlane.xlu0 %1634
      %v1636 = vsub.f32 %v1632, %v1635
      %v1637 = vmul.f32 %v1636, 1.442695
      %v1638 = vpow.pop %v1637
      %v1639 = vsel %vm602, %v1638, 0.0
      %1640 = vadd.xlane.f32.xlu0 %v1639
      %v1641 = vpop.xlane.xlu0 %1640
      %v1642 = vrcp.pop %v1641
      %v1643 = vmul.f32 %v1638, %v1642
      %v1644 = vmul.f32 %v588, %v1643
      %1646 = vset.pattern.permute.xlu0 0
      %1647 = vperm.xlu0 %1646, %v1644
      %v1648 = vpop.permute.xlu0 %1647
      %v1650 = vmul.f32 %v1648, %v815
      %v1651 = vadd.f32 %v821, %v1650
      %1652 = vset.pattern.permute.xlu0 1
      %1653 = vperm.xlu0 %1652, %v1644
      %v1654 = vpop.permute.xlu0 %1653
      %v1656 = vmul.f32 %v1654, %v831
      %v1657 = vadd.f32 %v1651, %v1656
      %1658 = vset.pattern.permute.xlu0 2
      %1659 = vperm.xlu0 %1658, %v1644
      %v1660 = vpop.permute.xlu0 %1659
      %v1662 = vmul.f32 %v1660, %v841
      %v1663 = vadd.f32 %v1657, %v1662
      %v1664 = vadd.f32 %v1663, %v1601
      %v1665 = vxor.u32 %v1664, 2147483648
      %v1666 = vmul.f32 %v1665, 1.442695
      %v1667 = vpow.pop %v1666
      %v1668 = vadd.f32 %v1667, 1.0
      %v1669 = vrcp.pop %v1668
      %v1670 = vmul.f32 1.0, %v1669
      %1671 = vrot.lane.b32.xlu0 %v1601, 96
      %v1672 = vpop.permute.xlu0 %1671
      %v1674 = vmul.f32 %v1670, %v1672
      %1676 = vrot.lane.b32.xlu0 %v1674, 32
      %v1677 = vpop.permute.xlu0 %1676
      %v1679 = vadd.f32 %v1663, %v1677
      %v1680 = vtanh.pop %v1679
      %v1681 = vsub.f32 1.0, %v1670
      %1683 = vrot.lane.b32.xlu0 %v1680, 112
      %v1684 = vpop.permute.xlu0 %1683
      %v1686 = vmul.f32 %v1681, %v1684
      %v1687 = vmul.f32 %v1670, %v1552
      %v1688 = vadd.f32 %v1686, %v1687
      %1690 = vrot.lane.b32.xlu0 %v1688, 112
      %v1691 = vpop.permute.xlu0 %1690
      %s1693 = scalar_lea.vmem [#allocation2], 48
      %1694 = vst.msk [vmem:[%s1693] sm:$0xff] %vm712, %v1691
      %v1695 = vpack.c.bf16 %v1688, %v1688
      %1697 = vrot.lane.b32.xlu0 %v1695, 112
      %v1698 = vpop.permute.xlu0 %1697
      %v1700 = vsel %vm712, %v1698, 0
      %1702 = vmatprep.subr.bf16.mxu0 0
      %1703 = vmatpush1.bf16.msra.mxu0 0
      %1704 = vmatprep.subr.bf16.mxu0 0
      %1705 = vmatpush1.bf16.msra.mxu0 0
      %1706 = vmatprep.subr.bf16.mxu0 0
      %1707 = vmatpush1.bf16.msra.mxu0 0
      %1708 = vmatprep.subr.bf16.mxu0 0
      %1709 = vmatpush1.bf16.msra.mxu0 0
      %1710 = vmatprep.subr.bf16.mxu0 0
      %1711 = vmatpush1.bf16.msra.mxu0 0
      %1712 = vmatprep.subr.bf16.mxu0 0
      %1713 = vmatpush1.bf16.msra.mxu0 0
      %1714 = vmatprep.subr.bf16.mxu0 0
      %1715 = vmatpush1.bf16.msra.mxu0 0
      %1716 = vmatprep.subr.bf16.mxu0 0
      %1717 = vmatpush1.bf16.msra.mxu0 %v710
      %1718 = vmatprep.subr.bf16.mxu0 0
      %1719 = vmatpush2.bf16.msra.mxu0 0
      %1720 = vmatprep.subr.bf16.mxu0 0
      %1721 = vmatpush2.bf16.msra.mxu0 0
      %1722 = vmatprep.subr.bf16.mxu0 0
      %1723 = vmatpush2.bf16.msra.mxu0 0
      %1724 = vmatprep.subr.bf16.mxu0 0
      %1725 = vmatpush2.bf16.msra.mxu0 0
      %1726 = vmatprep.subr.bf16.mxu0 0
      %1727 = vmatpush2.bf16.msra.mxu0 0
      %1728 = vmatprep.subr.bf16.mxu0 0
      %1729 = vmatpush2.bf16.msra.mxu0 0
      %1730 = vmatprep.subr.bf16.mxu0 0
      %1731 = vmatpush2.bf16.msra.mxu0 0
      %1732 = vmatprep.subr.bf16.mxu0 0
      %1733 = vmatpush2.bf16.msra.mxu0 0
      %1734 = vmatprep.mubr.bf16.mxu0 0
      %1735 = vmatmul.mubr.bf16.gmra.mxu0 %v1700
      %v1736 = vpop.f32.mrf.mxu0
      %v1737 = vadd.f32 %v704, %v1736
      %v1738 = vpop.f32.mrf.mxu0
      %v1739 = vpop.f32.mrf.mxu0
      %v1740 = vpop.f32.mrf.mxu0
      %1741 = vdwg.mxu0
      %1743 = vrot.lane.b32.xlu0 %v1737, 80
      %v1744 = vpop.permute.xlu0 %1743
      %s1746 = scalar_lea.vmem [#allocation3], 48
      %1747 = vst.msk [vmem:[%s1746] sm:$0xff] %vm930, %v1744
      %v1748 = vadd.f32 %v1737, %v684
      %v1749 = vtanh.pop %v1748
      %1751 = vset.pattern.permute.xlu0 96
      %1752 = vperm.xlu0 %1751, %v1749
      %v1753 = vpop.permute.xlu0 %1752
      %v1755 = vmul.f32 %v1753, %v766
      %v1756 = vadd.f32 %v772, %v1755
      %1757 = vset.pattern.permute.xlu0 97
      %1758 = vperm.xlu0 %1757, %v1749
      %v1759 = vpop.permute.xlu0 %1758
      %v1761 = vmul.f32 %v1759, %v782
      %v1762 = vadd.f32 %v1756, %v1761
      %1763 = vset.pattern.permute.xlu0 98
      %1764 = vperm.xlu0 %1763, %v1749
      %v1765 = vpop.permute.xlu0 %1764
      %v1767 = vmul.f32 %v1765, %v792
      %v1768 = vadd.f32 %v1762, %v1767
      %v1769 = vsel %vm602, %v1768, -inf
      %1770 = vmax.xlane.f32.xlu0 %v1769
      %v1771 = vpop.xlane.xlu0 %1770
      %v1772 = vsub.f32 %v1768, %v1771
      %v1773 = vmul.f32 %v1772, 1.442695
      %v1774 = vpow.pop %v1773
      %v1775 = vsel %vm602, %v1774, 0.0
      %1776 = vadd.xlane.f32.xlu0 %v1775
      %v1777 = vpop.xlane.xlu0 %1776
      %v1778 = vrcp.pop %v1777
      %v1779 = vmul.f32 %v1774, %v1778
      %v1780 = vmul.f32 %v589, %v1779
      %1782 = vset.pattern.permute.xlu0 0
      %1783 = vperm.xlu0 %1782, %v1780
      %v1784 = vpop.permute.xlu0 %1783
      %v1786 = vmul.f32 %v1784, %v815
      %v1787 = vadd.f32 %v821, %v1786
      %1788 = vset.pattern.permute.xlu0 1
      %1789 = vperm.xlu0 %1788, %v1780
      %v1790 = vpop.permute.xlu0 %1789
      %v1792 = vmul.f32 %v1790, %v831
      %v1793 = vadd.f32 %v1787, %v1792
      %1794 = vset.pattern.permute.xlu0 2
      %1795 = vperm.xlu0 %1794, %v1780
      %v1796 = vpop.permute.xlu0 %1795
      %v1798 = vmul.f32 %v1796, %v841
      %v1799 = vadd.f32 %v1793, %v1798
      %v1800 = vadd.f32 %v1799, %v1737
      %v1801 = vxor.u32 %v1800, 2147483648
      %v1802 = vmul.f32 %v1801, 1.442695
      %v1803 = vpow.pop %v1802
      %v1804 = vadd.f32 %v1803, 1.0
      %v1805 = vrcp.pop %v1804
      %v1806 = vmul.f32 1.0, %v1805
      %1807 = vrot.lane.b32.xlu0 %v1737, 96
      %v1808 = vpop.permute.xlu0 %1807
      %v1810 = vmul.f32 %v1806, %v1808
      %1812 = vrot.lane.b32.xlu0 %v1810, 32
      %v1813 = vpop.permute.xlu0 %1812
      %v1815 = vadd.f32 %v1799, %v1813
      %v1816 = vtanh.pop %v1815
      %v1817 = vsub.f32 1.0, %v1806
      %1819 = vrot.lane.b32.xlu0 %v1816, 112
      %v1820 = vpop.permute.xlu0 %1819
      %v1822 = vmul.f32 %v1817, %v1820
      %v1823 = vmul.f32 %v1806, %v1688
      %v1824 = vadd.f32 %v1822, %v1823
      %1826 = vrot.lane.b32.xlu0 %v1824, 112
      %v1827 = vpop.permute.xlu0 %1826
      %s1829 = scalar_lea.vmem [#allocation2], 56
      %1830 = vst.msk [vmem:[%s1829] sm:$0xff] %vm712, %v1827
      %v1831 = vpack.c.bf16 %v1824, %v1824
      %1833 = vrot.lane.b32.xlu0 %v1831, 112
      %v1834 = vpop.permute.xlu0 %1833
      %v1836 = vsel %vm712, %v1834, 0
      %1838 = vmatprep.subr.bf16.mxu0 0
      %1839 = vmatpush1.bf16.msra.mxu0 0
      %1840 = vmatprep.subr.bf16.mxu0 0
      %1841 = vmatpush1.bf16.msra.mxu0 0
      %1842 = vmatprep.subr.bf16.mxu0 0
      %1843 = vmatpush1.bf16.msra.mxu0 0
      %1844 = vmatprep.subr.bf16.mxu0 0
      %1845 = vmatpush1.bf16.msra.mxu0 0
      %1846 = vmatprep.subr.bf16.mxu0 0
      %1847 = vmatpush1.bf16.msra.mxu0 0
      %1848 = vmatprep.subr.bf16.mxu0 0
      %1849 = vmatpush1.bf16.msra.mxu0 0
      %1850 = vmatprep.subr.bf16.mxu0 0
      %1851 = vmatpush1.bf16.msra.mxu0 0
      %1852 = vmatprep.subr.bf16.mxu0 0
      %1853 = vmatpush1.bf16.msra.mxu0 %v710
      %1854 = vmatprep.subr.bf16.mxu0 0
      %1855 = vmatpush2.bf16.msra.mxu0 0
      %1856 = vmatprep.subr.bf16.mxu0 0
      %1857 = vmatpush2.bf16.msra.mxu0 0
      %1858 = vmatprep.subr.bf16.mxu0 0
      %1859 = vmatpush2.bf16.msra.mxu0 0
      %1860 = vmatprep.subr.bf16.mxu0 0
      %1861 = vmatpush2.bf16.msra.mxu0 0
      %1862 = vmatprep.subr.bf16.mxu0 0
      %1863 = vmatpush2.bf16.msra.mxu0 0
      %1864 = vmatprep.subr.bf16.mxu0 0
      %1865 = vmatpush2.bf16.msra.mxu0 0
      %1866 = vmatprep.subr.bf16.mxu0 0
      %1867 = vmatpush2.bf16.msra.mxu0 0
      %1868 = vmatprep.subr.bf16.mxu0 0
      %1869 = vmatpush2.bf16.msra.mxu0 0
      %1870 = vmatprep.mubr.bf16.mxu0 0
      %1871 = vmatmul.mubr.bf16.gmra.mxu0 %v1836
      %v1872 = vpop.f32.mrf.mxu0
      %v1873 = vadd.f32 %v704, %v1872
      %v1874 = vpop.f32.mrf.mxu0
      %v1875 = vpop.f32.mrf.mxu0
      %v1876 = vpop.f32.mrf.mxu0
      %1877 = vdwg.mxu0
      %1879 = vrot.lane.b32.xlu0 %v1873, 80
      %v1880 = vpop.permute.xlu0 %1879
      %s1882 = scalar_lea.vmem [#allocation3], 56
      %1883 = vst.msk [vmem:[%s1882] sm:$0xff] %vm930, %v1880
      %v1884 = vld [vmem:[#allocation2] sm:$0xff]
      %v1885 = vld [vmem:[#allocation2 + $0x8] sm:$0xff]
      %v1886 = vld [vmem:[#allocation2 + $0x10] sm:$0xff]
      %v1887 = vld [vmem:[#allocation2 + $0x18] sm:$0xff]
      %v1888 = vld [vmem:[#allocation2 + $0x20] sm:$0xff]
      %v1889 = vld [vmem:[#allocation2 + $0x28] sm:$0xff]
      %v1890 = vld [vmem:[#allocation2 + $0x30] sm:$0xff]
      %v1891 = vld [vmem:[#allocation2 + $0x38] sm:$0xff]
      %v1892 = vld [vmem:[#allocation3] sm:$0xff]
      %v1893 = vld [vmem:[#allocation3 + $0x8] sm:$0xff]
      %v1894 = vld [vmem:[#allocation3 + $0x10] sm:$0xff]
      %v1895 = vld [vmem:[#allocation3 + $0x18] sm:$0xff]
      %v1896 = vld [vmem:[#allocation3 + $0x20] sm:$0xff]
      %v1897 = vld [vmem:[#allocation3 + $0x28] sm:$0xff]
      %v1898 = vld [vmem:[#allocation3 + $0x30] sm:$0xff]
      %v1899 = vld [vmem:[#allocation3 + $0x38] sm:$0xff]
      %v1900 = vld [vmem:[%s14] sm:$0x1]
      %v1901 = vld [vmem:[%s11] sm:$0xf]
      %v1902 = vld [vmem:[%s11 + $0x4] sm:$0xf]
      %v1903 = vld [vmem:[%s11 + $0x8] sm:$0xf]
      %v1904 = vld [vmem:[%s11 + $0xc] sm:$0xf]
      %v1905 = vld [vmem:[%s12] sm:$0x1]
      %v1906 = vld [vmem:[%s13] sm:$0xf]
      %v1907 = vld [vmem:[%s13 + $0x4] sm:$0xf]
      %v1908 = vld [vmem:[%s576] sm:$0xff]
      %v1909 = vpack.c.bf16 %v1908, %v1908
      %v1911 = vlaneseq
      %v1912 = vshrl.u32 %v1911, 7
      %v1913 = vsub.s32 0, %v1912
      %v1914 = vrot.slane %v1905, %v1913
      %v1920 = vunpack.c.l.b16 %v1901
      %v1921 = vunpack.c.l.b16 %v1902
      %v1922 = vunpack.c.l.b16 %v1903
      %v1923 = vunpack.c.l.b16 %v1904
      %v1924 = vpack.c.b16 %v1921, %v1920
      %v1925 = vpack.c.b16 %v1923, %v1922
      %v1929 = vsel %vm930, %v1909, 0
      %1931 = vmatprep.subr.bf16.mxu0 0
      %1932 = vmatpush1.bf16.msra.mxu0 0
      %1933 = vmatprep.subr.bf16.mxu0 0
      %1934 = vmatpush1.bf16.msra.mxu0 0
      %1935 = vmatprep.subr.bf16.mxu0 0
      %1936 = vmatpush1.bf16.msra.mxu0 0
      %1937 = vmatprep.subr.bf16.mxu0 0
      %1938 = vmatpush1.bf16.msra.mxu0 0
      %1939 = vmatprep.subr.bf16.mxu0 0
      %1940 = vmatpush1.bf16.msra.mxu0 0
      %1941 = vmatprep.subr.bf16.mxu0 0
      %1942 = vmatpush1.bf16.msra.mxu0 0
      %1943 = vmatprep.subr.bf16.mxu0 0
      %1944 = vmatpush1.bf16.msra.mxu0 %v1925
      %1945 = vmatprep.subr.bf16.mxu0 0
      %1946 = vmatpush1.bf16.msra.mxu0 %v1924
      %1947 = vmatprep.subr.bf16.mxu0 0
      %1948 = vmatpush2.bf16.msra.mxu0 0
      %1949 = vmatprep.subr.bf16.mxu0 0
      %1950 = vmatpush2.bf16.msra.mxu0 0
      %1951 = vmatprep.subr.bf16.mxu0 0
      %1952 = vmatpush2.bf16.msra.mxu0 0
      %1953 = vmatprep.subr.bf16.mxu0 0
      %1954 = vmatpush2.bf16.msra.mxu0 0
      %1955 = vmatprep.subr.bf16.mxu0 0
      %1956 = vmatpush2.bf16.msra.mxu0 0
      %1957 = vmatprep.subr.bf16.mxu0 0
      %1958 = vmatpush2.bf16.msra.mxu0 0
      %1959 = vmatprep.subr.bf16.mxu0 0
      %1960 = vmatpush2.bf16.msra.mxu0 0
      %1961 = vmatprep.subr.bf16.mxu0 0
      %1962 = vmatpush2.bf16.msra.mxu0 0
      %1963 = vmatprep.mubr.bf16.mxu0 0
      %1964 = vmatmul.mubr.bf16.gmra.mxu0 %v1929
      %v1965 = vpop.f32.mrf.mxu0
      %v1966 = vadd.f32 %v1914, %v1965
      %v1967 = vpop.f32.mrf.mxu0
      %v1968 = vpop.f32.mrf.mxu0
      %v1969 = vpop.f32.mrf.mxu0
      %1970 = vdwg.mxu0
      %1972 = vrot.lane.b32.xlu0 %v1966, 32
      %v1973 = vpop.permute.xlu0 %1972
      %v1975 = vadd.f32 %v1892, %v1973
      %v1976 = vadd.f32 %v1893, %v1973
      %v1977 = vadd.f32 %v1894, %v1973
      %v1978 = vadd.f32 %v1895, %v1973
      %v1979 = vadd.f32 %v1896, %v1973
      %v1980 = vadd.f32 %v1897, %v1973
      %v1981 = vadd.f32 %v1898, %v1973
      %v1982 = vadd.f32 %v1899, %v1973
      %v1983 = vtanh.pop %v1975
      %v1984 = vtanh.pop %v1976
      %v1985 = vtanh.pop %v1977
      %v1986 = vtanh.pop %v1978
      %v1987 = vtanh.pop %v1979
      %v1988 = vtanh.pop %v1980
      %v1989 = vtanh.pop %v1981
      %v1990 = vtanh.pop %v1982
      %v1992 = vlaneseq
      %v1993 = vshrl.u32 %v1992, 7
      %v1994 = vsub.s32 0, %v1993
      %v1995 = vrot.slane %v1900, %v1994
      %v1997 = vmul.f32 %v1983, %v1995
      %v1998 = vmul.f32 %v1984, %v1995
      %v1999 = vmul.f32 %v1985, %v1995
      %v2000 = vmul.f32 %v1986, %v1995
      %v2001 = vmul.f32 %v1987, %v1995
      %v2002 = vmul.f32 %v1988, %v1995
      %v2003 = vmul.f32 %v1989, %v1995
      %v2004 = vmul.f32 %v1990, %v1995
      %v2005 = vsel %vm930, %v1997, 0.0
      %2006 = vadd.xlane.f32.xlu0 %v2005
      %v2007 = vpop.xlane.xlu0 %2006
      %v2008 = vsel %vm930, %v1998, 0.0
      %2009 = vadd.xlane.f32.xlu0 %v2008
      %v2010 = vpop.xlane.xlu0 %2009
      %v2011 = vsel %vm930, %v1999, 0.0
      %2012 = vadd.xlane.f32.xlu0 %v2011
      %v2013 = vpop.xlane.xlu0 %2012
      %v2014 = vsel %vm930, %v2000, 0.0
      %2015 = vadd.xlane.f32.xlu0 %v2014
      %v2016 = vpop.xlane.xlu0 %2015
      %v2017 = vsel %vm930, %v2001, 0.0
      %2018 = vadd.xlane.f32.xlu0 %v2017
      %v2019 = vpop.xlane.xlu0 %2018
      %v2020 = vsel %vm930, %v2002, 0.0
      %2021 = vadd.xlane.f32.xlu0 %v2020
      %v2022 = vpop.xlane.xlu0 %2021
      %v2023 = vsel %vm930, %v2003, 0.0
      %2024 = vadd.xlane.f32.xlu0 %v2023
      %v2025 = vpop.xlane.xlu0 %2024
      %v2026 = vsel %vm930, %v2004, 0.0
      %2027 = vadd.xlane.f32.xlu0 %v2026
      %v2028 = vpop.xlane.xlu0 %2027
      %v2029 = vmax.f32 %v2007, %v2019
      %v2030 = vmax.f32 %v2010, %v2022
      %v2031 = vmax.f32 %v2013, %v2025
      %v2032 = vmax.f32 %v2016, %v2028
      %v2033 = vmax.f32 %v2029, %v2030
      %v2034 = vmax.f32 %v2031, %v2032
      %v2035 = vmax.f32 %v2033, %v2034
      %v2036 = vsub.f32 %v2007, %v2035
      %v2037 = vsub.f32 %v2010, %v2035
      %v2038 = vsub.f32 %v2013, %v2035
      %v2039 = vsub.f32 %v2016, %v2035
      %v2040 = vsub.f32 %v2019, %v2035
      %v2041 = vsub.f32 %v2022, %v2035
      %v2042 = vsub.f32 %v2025, %v2035
      %v2043 = vsub.f32 %v2028, %v2035
      %v2044 = vmul.f32 %v2036, 1.442695
      %v2045 = vpow.pop %v2044
      %v2046 = vmul.f32 %v2037, 1.442695
      %v2047 = vpow.pop %v2046
      %v2048 = vmul.f32 %v2038, 1.442695
      %v2049 = vpow.pop %v2048
      %v2050 = vmul.f32 %v2039, 1.442695
      %v2051 = vpow.pop %v2050
      %v2052 = vmul.f32 %v2040, 1.442695
      %v2053 = vpow.pop %v2052
      %v2054 = vmul.f32 %v2041, 1.442695
      %v2055 = vpow.pop %v2054
      %v2056 = vmul.f32 %v2042, 1.442695
      %v2057 = vpow.pop %v2056
      %v2058 = vmul.f32 %v2043, 1.442695
      %v2059 = vpow.pop %v2058
      %v2060 = vadd.f32 %v2045, %v2047
      %v2061 = vadd.f32 %v2060, %v2049
      %v2062 = vadd.f32 %v2061, %v2051
      %v2063 = vadd.f32 %v2062, %v2053
      %v2064 = vadd.f32 %v2063, %v2055
      %v2065 = vadd.f32 %v2064, %v2057
      %v2066 = vadd.f32 %v2065, %v2059
      %v2067 = vrcp.pop %v2066
      %v2068 = vmul.f32 %v2045, %v2067
      %v2069 = vmul.f32 %v2047, %v2067
      %v2070 = vmul.f32 %v2049, %v2067
      %v2071 = vmul.f32 %v2051, %v2067
      %v2072 = vmul.f32 %v2053, %v2067
      %v2073 = vmul.f32 %v2055, %v2067
      %v2074 = vmul.f32 %v2057, %v2067
      %v2075 = vmul.f32 %v2059, %v2067
      %v2076 = vmul.f32 %v2068, %v1884
      %v2077 = vmul.f32 %v2069, %v1885
      %v2078 = vmul.f32 %v2070, %v1886
      %v2079 = vmul.f32 %v2071, %v1887
      %v2080 = vmul.f32 %v2072, %v1888
      %v2081 = vmul.f32 %v2073, %v1889
      %v2082 = vmul.f32 %v2074, %v1890
      %v2083 = vmul.f32 %v2075, %v1891
      %v2084 = vsel %vm712, %v2076, 0.0
      %v2085 = vsel %vm712, %v2077, 0.0
      %v2086 = vadd.f32 %v2084, %v2085
      %v2087 = vsel %vm712, %v2078, 0.0
      %v2088 = vadd.f32 %v2086, %v2087
      %v2089 = vsel %vm712, %v2079, 0.0
      %v2090 = vadd.f32 %v2088, %v2089
      %v2091 = vsel %vm712, %v2080, 0.0
      %v2092 = vadd.f32 %v2090, %v2091
      %v2093 = vsel %vm712, %v2081, 0.0
      %v2094 = vadd.f32 %v2092, %v2093
      %v2095 = vsel %vm712, %v2082, 0.0
      %v2096 = vadd.f32 %v2094, %v2095
      %v2097 = vsel %vm712, %v2083, 0.0
      %v2098 = vadd.f32 %v2096, %v2097
      %v2099 = vpack.c.bf16 %v2098, %v2098
      %v2102 = vunpack.c.l.b16 %v1906
      %v2103 = vunpack.c.l.b16 %v1907
      %v2104 = vpack.c.b16 %v2103, %v2102
      %v2107 = vsel %vm712, %v2099, 0
      %2109 = vmatprep.subr.bf16.mxu0 0
      %2110 = vmatpush1.bf16.msra.mxu0 0
      %2111 = vmatprep.subr.bf16.mxu0 0
      %2112 = vmatpush1.bf16.msra.mxu0 0
      %2113 = vmatprep.subr.bf16.mxu0 0
      %2114 = vmatpush1.bf16.msra.mxu0 0
      %2115 = vmatprep.subr.bf16.mxu0 0
      %2116 = vmatpush1.bf16.msra.mxu0 0
      %2117 = vmatprep.subr.bf16.mxu0 0
      %2118 = vmatpush1.bf16.msra.mxu0 0
      %2119 = vmatprep.subr.bf16.mxu0 0
      %2120 = vmatpush1.bf16.msra.mxu0 0
      %2121 = vmatprep.subr.bf16.mxu0 0
      %2122 = vmatpush1.bf16.msra.mxu0 0
      %2123 = vmatprep.subr.bf16.mxu0 0
      %2124 = vmatpush1.bf16.msra.mxu0 %v2104
      %2125 = vmatprep.subr.bf16.mxu0 0
      %2126 = vmatpush2.bf16.msra.mxu0 0
      %2127 = vmatprep.subr.bf16.mxu0 0
      %2128 = vmatpush2.bf16.msra.mxu0 0
      %2129 = vmatprep.subr.bf16.mxu0 0
      %2130 = vmatpush2.bf16.msra.mxu0 0
      %2131 = vmatprep.subr.bf16.mxu0 0
      %2132 = vmatpush2.bf16.msra.mxu0 0
      %2133 = vmatprep.subr.bf16.mxu0 0
      %2134 = vmatpush2.bf16.msra.mxu0 0
      %2135 = vmatprep.subr.bf16.mxu0 0
      %2136 = vmatpush2.bf16.msra.mxu0 0
      %2137 = vmatprep.subr.bf16.mxu0 0
      %2138 = vmatpush2.bf16.msra.mxu0 0
      %2139 = vmatprep.subr.bf16.mxu0 0
      %2140 = vmatpush2.bf16.msra.mxu0 0
      %2141 = vmatprep.mubr.bf16.mxu0 0
      %2142 = vmatmul.mubr.bf16.gmra.mxu0 %v2107
      %v2143 = vpop.f32.mrf.mxu0
      %v2144 = vadd.f32 %v657, %v2143
      %v2145 = vpop.f32.mrf.mxu0
      %v2146 = vpop.f32.mrf.mxu0
      %v2147 = vpop.f32.mrf.mxu0
      %2148 = vdwg.mxu0
      %v2149 = vadd.f32 %v2144, %v1966
      %v2150 = vxor.u32 %v2149, 2147483648
      %v2151 = vmul.f32 %v2150, 1.442695
      %v2152 = vpow.pop %v2151
      %v2153 = vadd.f32 %v2152, 1.0
      %v2154 = vrcp.pop %v2153
      %v2155 = vmul.f32 1.0, %v2154
      %2156 = vrot.lane.b32.xlu0 %v1966, 64
      %v2157 = vpop.permute.xlu0 %2156
      %v2159 = vmul.f32 %v2155, %v2157
      %2161 = vrot.lane.b32.xlu0 %v2159, 64
      %v2162 = vpop.permute.xlu0 %2161
      %v2164 = vadd.f32 %v2144, %v2162
      %v2165 = vtanh.pop %v2164
      %v2166 = vsub.f32 1.0, %v2155
      %2168 = vrot.lane.b32.xlu0 %v2165, 96
      %v2169 = vpop.permute.xlu0 %2168
      %v2171 = vmul.f32 %v2166, %v2169
      %2173 = vrot.lane.b32.xlu0 %v1908, 32
      %v2174 = vpop.permute.xlu0 %2173
      %v2176 = vmul.f32 %v2155, %v2174
      %v2177 = vadd.f32 %v2171, %v2176
      %v2178 = vpack.c.bf16 %v2177, %v2177
      %2180 = vrot.lane.b32.xlu0 %v2178, 96
      %v2181 = vpop.permute.xlu0 %2180
      %v2183 = vsel %vm930, %v2181, 0
      %2185 = vmatprep.subr.bf16.mxu0 0
      %2186 = vmatpush1.bf16.msra.mxu0 0
      %2187 = vmatprep.subr.bf16.mxu0 0
      %2188 = vmatpush1.bf16.msra.mxu0 0
      %2189 = vmatprep.subr.bf16.mxu0 0
      %2190 = vmatpush1.bf16.msra.mxu0 0
      %2191 = vmatprep.subr.bf16.mxu0 0
      %2192 = vmatpush1.bf16.msra.mxu0 0
      %2193 = vmatprep.subr.bf16.mxu0 0
      %2194 = vmatpush1.bf16.msra.mxu0 0
      %2195 = vmatprep.subr.bf16.mxu0 0
      %2196 = vmatpush1.bf16.msra.mxu0 0
      %2197 = vmatprep.subr.bf16.mxu0 0
      %2198 = vmatpush1.bf16.msra.mxu0 %v1925
      %2199 = vmatprep.subr.bf16.mxu0 0
      %2200 = vmatpush1.bf16.msra.mxu0 %v1924
      %2201 = vmatprep.subr.bf16.mxu0 0
      %2202 = vmatpush2.bf16.msra.mxu0 0
      %2203 = vmatprep.subr.bf16.mxu0 0
      %2204 = vmatpush2.bf16.msra.mxu0 0
      %2205 = vmatprep.subr.bf16.mxu0 0
      %2206 = vmatpush2.bf16.msra.mxu0 0
      %2207 = vmatprep.subr.bf16.mxu0 0
      %2208 = vmatpush2.bf16.msra.mxu0 0
      %2209 = vmatprep.subr.bf16.mxu0 0
      %2210 = vmatpush2.bf16.msra.mxu0 0
      %2211 = vmatprep.subr.bf16.mxu0 0
      %2212 = vmatpush2.bf16.msra.mxu0 0
      %2213 = vmatprep.subr.bf16.mxu0 0
      %2214 = vmatpush2.bf16.msra.mxu0 0
      %2215 = vmatprep.subr.bf16.mxu0 0
      %2216 = vmatpush2.bf16.msra.mxu0 0
      %2217 = vmatprep.mubr.bf16.mxu0 0
      %2218 = vmatmul.mubr.bf16.gmra.mxu0 %v2183
      %v2219 = vpop.f32.mrf.mxu0
      %v2220 = vadd.f32 %v1914, %v2219
      %v2221 = vpop.f32.mrf.mxu0
      %v2222 = vpop.f32.mrf.mxu0
      %v2223 = vpop.f32.mrf.mxu0
      %2224 = vdwg.mxu0
      %2226 = vrot.lane.b32.xlu0 %v2220, 32
      %v2227 = vpop.permute.xlu0 %2226
      %v2229 = vadd.f32 %v1892, %v2227
      %v2230 = vadd.f32 %v1893, %v2227
      %v2231 = vadd.f32 %v1894, %v2227
      %v2232 = vadd.f32 %v1895, %v2227
      %v2233 = vadd.f32 %v1896, %v2227
      %v2234 = vadd.f32 %v1897, %v2227
      %v2235 = vadd.f32 %v1898, %v2227
      %v2236 = vadd.f32 %v1899, %v2227
      %v2237 = vtanh.pop %v2229
      %v2238 = vtanh.pop %v2230
      %v2239 = vtanh.pop %v2231
      %v2240 = vtanh.pop %v2232
      %v2241 = vtanh.pop %v2233
      %v2242 = vtanh.pop %v2234
      %v2243 = vtanh.pop %v2235
      %v2244 = vtanh.pop %v2236
      %v2245 = vmul.f32 %v2237, %v1995
      %v2246 = vmul.f32 %v2238, %v1995
      %v2247 = vmul.f32 %v2239, %v1995
      %v2248 = vmul.f32 %v2240, %v1995
      %v2249 = vmul.f32 %v2241, %v1995
      %v2250 = vmul.f32 %v2242, %v1995
      %v2251 = vmul.f32 %v2243, %v1995
      %v2252 = vmul.f32 %v2244, %v1995
      %v2253 = vsel %vm930, %v2245, 0.0
      %2254 = vadd.xlane.f32.xlu0 %v2253
      %v2255 = vpop.xlane.xlu0 %2254
      %v2256 = vsel %vm930, %v2246, 0.0
      %2257 = vadd.xlane.f32.xlu0 %v2256
      %v2258 = vpop.xlane.xlu0 %2257
      %v2259 = vsel %vm930, %v2247, 0.0
      %2260 = vadd.xlane.f32.xlu0 %v2259
      %v2261 = vpop.xlane.xlu0 %2260
      %v2262 = vsel %vm930, %v2248, 0.0
      %2263 = vadd.xlane.f32.xlu0 %v2262
      %v2264 = vpop.xlane.xlu0 %2263
      %v2265 = vsel %vm930, %v2249, 0.0
      %2266 = vadd.xlane.f32.xlu0 %v2265
      %v2267 = vpop.xlane.xlu0 %2266
      %v2268 = vsel %vm930, %v2250, 0.0
      %2269 = vadd.xlane.f32.xlu0 %v2268
      %v2270 = vpop.xlane.xlu0 %2269
      %v2271 = vsel %vm930, %v2251, 0.0
      %2272 = vadd.xlane.f32.xlu0 %v2271
      %v2273 = vpop.xlane.xlu0 %2272
      %v2274 = vsel %vm930, %v2252, 0.0
      %2275 = vadd.xlane.f32.xlu0 %v2274
      %v2276 = vpop.xlane.xlu0 %2275
      %v2277 = vmax.f32 %v2255, %v2267
      %v2278 = vmax.f32 %v2258, %v2270
      %v2279 = vmax.f32 %v2261, %v2273
      %v2280 = vmax.f32 %v2264, %v2276
      %v2281 = vmax.f32 %v2277, %v2278
      %v2282 = vmax.f32 %v2279, %v2280
      %v2283 = vmax.f32 %v2281, %v2282
      %v2284 = vsub.f32 %v2255, %v2283
      %v2285 = vsub.f32 %v2258, %v2283
      %v2286 = vsub.f32 %v2261, %v2283
      %v2287 = vsub.f32 %v2264, %v2283
      %v2288 = vsub.f32 %v2267, %v2283
      %v2289 = vsub.f32 %v2270, %v2283
      %v2290 = vsub.f32 %v2273, %v2283
      %v2291 = vsub.f32 %v2276, %v2283
      %v2292 = vmul.f32 %v2284, 1.442695
      %v2293 = vpow.pop %v2292
      %v2294 = vmul.f32 %v2285, 1.442695
      %v2295 = vpow.pop %v2294
      %v2296 = vmul.f32 %v2286, 1.442695
      %v2297 = vpow.pop %v2296
      %v2298 = vmul.f32 %v2287, 1.442695
      %v2299 = vpow.pop %v2298
      %v2300 = vmul.f32 %v2288, 1.442695
      %v2301 = vpow.pop %v2300
      %v2302 = vmul.f32 %v2289, 1.442695
      %v2303 = vpow.pop %v2302
      %v2304 = vmul.f32 %v2290, 1.442695
      %v2305 = vpow.pop %v2304
      %v2306 = vmul.f32 %v2291, 1.442695
      %v2307 = vpow.pop %v2306
      %v2308 = vadd.f32 %v2293, %v2295
      %v2309 = vadd.f32 %v2308, %v2297
      %v2310 = vadd.f32 %v2309, %v2299
      %v2311 = vadd.f32 %v2310, %v2301
      %v2312 = vadd.f32 %v2311, %v2303
      %v2313 = vadd.f32 %v2312, %v2305
      %v2314 = vadd.f32 %v2313, %v2307
      %v2315 = vrcp.pop %v2314
      %v2316 = vmul.f32 %v2293, %v2315
      %v2317 = vmul.f32 %v2295, %v2315
      %v2318 = vmul.f32 %v2297, %v2315
      %v2319 = vmul.f32 %v2299, %v2315
      %v2320 = vmul.f32 %v2301, %v2315
      %v2321 = vmul.f32 %v2303, %v2315
      %v2322 = vmul.f32 %v2305, %v2315
      %v2323 = vmul.f32 %v2307, %v2315
      %v2324 = vmul.f32 %v2316, %v1884
      %v2325 = vmul.f32 %v2317, %v1885
      %v2326 = vmul.f32 %v2318, %v1886
      %v2327 = vmul.f32 %v2319, %v1887
      %v2328 = vmul.f32 %v2320, %v1888
      %v2329 = vmul.f32 %v2321, %v1889
      %v2330 = vmul.f32 %v2322, %v1890
      %v2331 = vmul.f32 %v2323, %v1891
      %v2332 = vsel %vm712, %v2324, 0.0
      %v2333 = vsel %vm712, %v2325, 0.0
      %v2334 = vadd.f32 %v2332, %v2333
      %v2335 = vsel %vm712, %v2326, 0.0
      %v2336 = vadd.f32 %v2334, %v2335
      %v2337 = vsel %vm712, %v2327, 0.0
      %v2338 = vadd.f32 %v2336, %v2337
      %v2339 = vsel %vm712, %v2328, 0.0
      %v2340 = vadd.f32 %v2338, %v2339
      %v2341 = vsel %vm712, %v2329, 0.0
      %v2342 = vadd.f32 %v2340, %v2341
      %v2343 = vsel %vm712, %v2330, 0.0
      %v2344 = vadd.f32 %v2342, %v2343
      %v2345 = vsel %vm712, %v2331, 0.0
      %v2346 = vadd.f32 %v2344, %v2345
      %v2347 = vpack.c.bf16 %v2346, %v2346
      %v2349 = vsel %vm712, %v2347, 0
      %2351 = vmatprep.subr.bf16.mxu0 0
      %2352 = vmatpush1.bf16.msra.mxu0 0
      %2353 = vmatprep.subr.bf16.mxu0 0
      %2354 = vmatpush1.bf16.msra.mxu0 0
      %2355 = vmatprep.subr.bf16.mxu0 0
      %2356 = vmatpush1.bf16.msra.mxu0 0
      %2357 = vmatprep.subr.bf16.mxu0 0
      %2358 = vmatpush1.bf16.msra.mxu0 0
      %2359 = vmatprep.subr.bf16.mxu0 0
      %2360 = vmatpush1.bf16.msra.mxu0 0
      %2361 = vmatprep.subr.bf16.mxu0 0
      %2362 = vmatpush1.bf16.msra.mxu0 0
      %2363 = vmatprep.subr.bf16.mxu0 0
      %2364 = vmatpush1.bf16.msra.mxu0 0
      %2365 = vmatprep.subr.bf16.mxu0 0
      %2366 = vmatpush1.bf16.msra.mxu0 %v2104
      %2367 = vmatprep.subr.bf16.mxu0 0
      %2368 = vmatpush2.bf16.msra.mxu0 0
      %2369 = vmatprep.subr.bf16.mxu0 0
      %2370 = vmatpush2.bf16.msra.mxu0 0
      %2371 = vmatprep.subr.bf16.mxu0 0
      %2372 = vmatpush2.bf16.msra.mxu0 0
      %2373 = vmatprep.subr.bf16.mxu0 0
      %2374 = vmatpush2.bf16.msra.mxu0 0
      %2375 = vmatprep.subr.bf16.mxu0 0
      %2376 = vmatpush2.bf16.msra.mxu0 0
      %2377 = vmatprep.subr.bf16.mxu0 0
      %2378 = vmatpush2.bf16.msra.mxu0 0
      %2379 = vmatprep.subr.bf16.mxu0 0
      %2380 = vmatpush2.bf16.msra.mxu0 0
      %2381 = vmatprep.subr.bf16.mxu0 0
      %2382 = vmatpush2.bf16.msra.mxu0 0
      %2383 = vmatprep.mubr.bf16.mxu0 0
      %2384 = vmatmul.mubr.bf16.gmra.mxu0 %v2349
      %v2385 = vpop.f32.mrf.mxu0
      %v2386 = vadd.f32 %v660, %v2385
      %v2387 = vpop.f32.mrf.mxu0
      %v2388 = vpop.f32.mrf.mxu0
      %v2389 = vpop.f32.mrf.mxu0
      %2390 = vdwg.mxu0
      %v2391 = vadd.f32 %v2386, %v2220
      %v2392 = vxor.u32 %v2391, 2147483648
      %v2393 = vmul.f32 %v2392, 1.442695
      %v2394 = vpow.pop %v2393
      %v2395 = vadd.f32 %v2394, 1.0
      %v2396 = vrcp.pop %v2395
      %v2397 = vmul.f32 1.0, %v2396
      %2398 = vrot.lane.b32.xlu0 %v2220, 64
      %v2399 = vpop.permute.xlu0 %2398
      %v2401 = vmul.f32 %v2397, %v2399
      %2403 = vrot.lane.b32.xlu0 %v2401, 64
      %v2404 = vpop.permute.xlu0 %2403
      %v2406 = vadd.f32 %v2386, %v2404
      %v2407 = vtanh.pop %v2406
      %v2408 = vsub.f32 1.0, %v2397
      %2410 = vrot.lane.b32.xlu0 %v2407, 96
      %v2411 = vpop.permute.xlu0 %2410
      %v2413 = vmul.f32 %v2408, %v2411
      %v2414 = vmul.f32 %v2397, %v2177
      %v2415 = vadd.f32 %v2413, %v2414
      %v2416 = vpack.c.bf16 %v2415, %v2415
      %2418 = vrot.lane.b32.xlu0 %v2416, 96
      %v2419 = vpop.permute.xlu0 %2418
      %v2421 = vsel %vm930, %v2419, 0
      %2423 = vmatprep.subr.bf16.mxu0 0
      %2424 = vmatpush1.bf16.msra.mxu0 0
      %2425 = vmatprep.subr.bf16.mxu0 0
      %2426 = vmatpush1.bf16.msra.mxu0 0
      %2427 = vmatprep.subr.bf16.mxu0 0
      %2428 = vmatpush1.bf16.msra.mxu0 0
      %2429 = vmatprep.subr.bf16.mxu0 0
      %2430 = vmatpush1.bf16.msra.mxu0 0
      %2431 = vmatprep.subr.bf16.mxu0 0
      %2432 = vmatpush1.bf16.msra.mxu0 0
      %2433 = vmatprep.subr.bf16.mxu0 0
      %2434 = vmatpush1.bf16.msra.mxu0 0
      %2435 = vmatprep.subr.bf16.mxu0 0
      %2436 = vmatpush1.bf16.msra.mxu0 %v1925
      %2437 = vmatprep.subr.bf16.mxu0 0
      %2438 = vmatpush1.bf16.msra.mxu0 %v1924
      %2439 = vmatprep.subr.bf16.mxu0 0
      %2440 = vmatpush2.bf16.msra.mxu0 0
      %2441 = vmatprep.subr.bf16.mxu0 0
      %2442 = vmatpush2.bf16.msra.mxu0 0
      %2443 = vmatprep.subr.bf16.mxu0 0
      %2444 = vmatpush2.bf16.msra.mxu0 0
      %2445 = vmatprep.subr.bf16.mxu0 0
      %2446 = vmatpush2.bf16.msra.mxu0 0
      %2447 = vmatprep.subr.bf16.mxu0 0
      %2448 = vmatpush2.bf16.msra.mxu0 0
      %2449 = vmatprep.subr.bf16.mxu0 0
      %2450 = vmatpush2.bf16.msra.mxu0 0
      %2451 = vmatprep.subr.bf16.mxu0 0
      %2452 = vmatpush2.bf16.msra.mxu0 0
      %2453 = vmatprep.subr.bf16.mxu0 0
      %2454 = vmatpush2.bf16.msra.mxu0 0
      %2455 = vmatprep.mubr.bf16.mxu0 0
      %2456 = vmatmul.mubr.bf16.gmra.mxu0 %v2421
      %v2457 = vpop.f32.mrf.mxu0
      %v2458 = vadd.f32 %v1914, %v2457
      %v2459 = vpop.f32.mrf.mxu0
      %v2460 = vpop.f32.mrf.mxu0
      %v2461 = vpop.f32.mrf.mxu0
      %2462 = vdwg.mxu0
      %2464 = vrot.lane.b32.xlu0 %v2458, 32
      %v2465 = vpop.permute.xlu0 %2464
      %v2467 = vadd.f32 %v1892, %v2465
      %v2468 = vadd.f32 %v1893, %v2465
      %v2469 = vadd.f32 %v1894, %v2465
      %v2470 = vadd.f32 %v1895, %v2465
      %v2471 = vadd.f32 %v1896, %v2465
      %v2472 = vadd.f32 %v1897, %v2465
      %v2473 = vadd.f32 %v1898, %v2465
      %v2474 = vadd.f32 %v1899, %v2465
      %v2475 = vtanh.pop %v2467
      %v2476 = vtanh.pop %v2468
      %v2477 = vtanh.pop %v2469
      %v2478 = vtanh.pop %v2470
      %v2479 = vtanh.pop %v2471
      %v2480 = vtanh.pop %v2472
      %v2481 = vtanh.pop %v2473
      %v2482 = vtanh.pop %v2474
      %v2483 = vmul.f32 %v2475, %v1995
      %v2484 = vmul.f32 %v2476, %v1995
      %v2485 = vmul.f32 %v2477, %v1995
      %v2486 = vmul.f32 %v2478, %v1995
      %v2487 = vmul.f32 %v2479, %v1995
      %v2488 = vmul.f32 %v2480, %v1995
      %v2489 = vmul.f32 %v2481, %v1995
      %v2490 = vmul.f32 %v2482, %v1995
      %v2491 = vsel %vm930, %v2483, 0.0
      %2492 = vadd.xlane.f32.xlu0 %v2491
      %v2493 = vpop.xlane.xlu0 %2492
      %v2494 = vsel %vm930, %v2484, 0.0
      %2495 = vadd.xlane.f32.xlu0 %v2494
      %v2496 = vpop.xlane.xlu0 %2495
      %v2497 = vsel %vm930, %v2485, 0.0
      %2498 = vadd.xlane.f32.xlu0 %v2497
      %v2499 = vpop.xlane.xlu0 %2498
      %v2500 = vsel %vm930, %v2486, 0.0
      %2501 = vadd.xlane.f32.xlu0 %v2500
      %v2502 = vpop.xlane.xlu0 %2501
      %v2503 = vsel %vm930, %v2487, 0.0
      %2504 = vadd.xlane.f32.xlu0 %v2503
      %v2505 = vpop.xlane.xlu0 %2504
      %v2506 = vsel %vm930, %v2488, 0.0
      %2507 = vadd.xlane.f32.xlu0 %v2506
      %v2508 = vpop.xlane.xlu0 %2507
      %v2509 = vsel %vm930, %v2489, 0.0
      %2510 = vadd.xlane.f32.xlu0 %v2509
      %v2511 = vpop.xlane.xlu0 %2510
      %v2512 = vsel %vm930, %v2490, 0.0
      %2513 = vadd.xlane.f32.xlu0 %v2512
      %v2514 = vpop.xlane.xlu0 %2513
      %v2515 = vmax.f32 %v2493, %v2505
      %v2516 = vmax.f32 %v2496, %v2508
      %v2517 = vmax.f32 %v2499, %v2511
      %v2518 = vmax.f32 %v2502, %v2514
      %v2519 = vmax.f32 %v2515, %v2516
      %v2520 = vmax.f32 %v2517, %v2518
      %v2521 = vmax.f32 %v2519, %v2520
      %v2522 = vsub.f32 %v2493, %v2521
      %v2523 = vsub.f32 %v2496, %v2521
      %v2524 = vsub.f32 %v2499, %v2521
      %v2525 = vsub.f32 %v2502, %v2521
      %v2526 = vsub.f32 %v2505, %v2521
      %v2527 = vsub.f32 %v2508, %v2521
      %v2528 = vsub.f32 %v2511, %v2521
      %v2529 = vsub.f32 %v2514, %v2521
      %v2530 = vmul.f32 %v2522, 1.442695
      %v2531 = vpow.pop %v2530
      %v2532 = vmul.f32 %v2523, 1.442695
      %v2533 = vpow.pop %v2532
      %v2534 = vmul.f32 %v2524, 1.442695
      %v2535 = vpow.pop %v2534
      %v2536 = vmul.f32 %v2525, 1.442695
      %v2537 = vpow.pop %v2536
      %v2538 = vmul.f32 %v2526, 1.442695
      %v2539 = vpow.pop %v2538
      %v2540 = vmul.f32 %v2527, 1.442695
      %v2541 = vpow.pop %v2540
      %v2542 = vmul.f32 %v2528, 1.442695
      %v2543 = vpow.pop %v2542
      %v2544 = vmul.f32 %v2529, 1.442695
      %v2545 = vpow.pop %v2544
      %v2546 = vadd.f32 %v2531, %v2533
      %v2547 = vadd.f32 %v2546, %v2535
      %v2548 = vadd.f32 %v2547, %v2537
      %v2549 = vadd.f32 %v2548, %v2539
      %v2550 = vadd.f32 %v2549, %v2541
      %v2551 = vadd.f32 %v2550, %v2543
      %v2552 = vadd.f32 %v2551, %v2545
      %v2553 = vrcp.pop %v2552
      %v2554 = vmul.f32 %v2531, %v2553
      %v2555 = vmul.f32 %v2533, %v2553
      %v2556 = vmul.f32 %v2535, %v2553
      %v2557 = vmul.f32 %v2537, %v2553
      %v2558 = vmul.f32 %v2539, %v2553
      %v2559 = vmul.f32 %v2541, %v2553
      %v2560 = vmul.f32 %v2543, %v2553
      %v2561 = vmul.f32 %v2545, %v2553
      %v2562 = vmul.f32 %v2554, %v1884
      %v2563 = vmul.f32 %v2555, %v1885
      %v2564 = vmul.f32 %v2556, %v1886
      %v2565 = vmul.f32 %v2557, %v1887
      %v2566 = vmul.f32 %v2558, %v1888
      %v2567 = vmul.f32 %v2559, %v1889
      %v2568 = vmul.f32 %v2560, %v1890
      %v2569 = vmul.f32 %v2561, %v1891
      %v2570 = vsel %vm712, %v2562, 0.0
      %v2571 = vsel %vm712, %v2563, 0.0
      %v2572 = vadd.f32 %v2570, %v2571
      %v2573 = vsel %vm712, %v2564, 0.0
      %v2574 = vadd.f32 %v2572, %v2573
      %v2575 = vsel %vm712, %v2565, 0.0
      %v2576 = vadd.f32 %v2574, %v2575
      %v2577 = vsel %vm712, %v2566, 0.0
      %v2578 = vadd.f32 %v2576, %v2577
      %v2579 = vsel %vm712, %v2567, 0.0
      %v2580 = vadd.f32 %v2578, %v2579
      %v2581 = vsel %vm712, %v2568, 0.0
      %v2582 = vadd.f32 %v2580, %v2581
      %v2583 = vsel %vm712, %v2569, 0.0
      %v2584 = vadd.f32 %v2582, %v2583
      %v2585 = vpack.c.bf16 %v2584, %v2584
      %v2587 = vsel %vm712, %v2585, 0
      %2589 = vmatprep.subr.bf16.mxu0 0
      %2590 = vmatpush1.bf16.msra.mxu0 0
      %2591 = vmatprep.subr.bf16.mxu0 0
      %2592 = vmatpush1.bf16.msra.mxu0 0
      %2593 = vmatprep.subr.bf16.mxu0 0
      %2594 = vmatpush1.bf16.msra.mxu0 0
      %2595 = vmatprep.subr.bf16.mxu0 0
      %2596 = vmatpush1.bf16.msra.mxu0 0
      %2597 = vmatprep.subr.bf16.mxu0 0
      %2598 = vmatpush1.bf16.msra.mxu0 0
      %2599 = vmatprep.subr.bf16.mxu0 0
      %2600 = vmatpush1.bf16.msra.mxu0 0
      %2601 = vmatprep.subr.bf16.mxu0 0
      %2602 = vmatpush1.bf16.msra.mxu0 0
      %2603 = vmatprep.subr.bf16.mxu0 0
      %2604 = vmatpush1.bf16.msra.mxu0 %v2104
      %2605 = vmatprep.subr.bf16.mxu0 0
      %2606 = vmatpush2.bf16.msra.mxu0 0
      %2607 = vmatprep.subr.bf16.mxu0 0
      %2608 = vmatpush2.bf16.msra.mxu0 0
      %2609 = vmatprep.subr.bf16.mxu0 0
      %2610 = vmatpush2.bf16.msra.mxu0 0
      %2611 = vmatprep.subr.bf16.mxu0 0
      %2612 = vmatpush2.bf16.msra.mxu0 0
      %2613 = vmatprep.subr.bf16.mxu0 0
      %2614 = vmatpush2.bf16.msra.mxu0 0
      %2615 = vmatprep.subr.bf16.mxu0 0
      %2616 = vmatpush2.bf16.msra.mxu0 0
      %2617 = vmatprep.subr.bf16.mxu0 0
      %2618 = vmatpush2.bf16.msra.mxu0 0
      %2619 = vmatprep.subr.bf16.mxu0 0
      %2620 = vmatpush2.bf16.msra.mxu0 0
      %2621 = vmatprep.mubr.bf16.mxu0 0
      %2622 = vmatmul.mubr.bf16.gmra.mxu0 %v2587
      %v2623 = vpop.f32.mrf.mxu0
      %v2624 = vadd.f32 %v665, %v2623
      %v2625 = vpop.f32.mrf.mxu0
      %v2626 = vpop.f32.mrf.mxu0
      %v2627 = vpop.f32.mrf.mxu0
      %2628 = vdwg.mxu0
      %v2629 = vadd.f32 %v2624, %v2458
      %v2630 = vxor.u32 %v2629, 2147483648
      %v2631 = vmul.f32 %v2630, 1.442695
      %v2632 = vpow.pop %v2631
      %v2633 = vadd.f32 %v2632, 1.0
      %v2634 = vrcp.pop %v2633
      %v2635 = vmul.f32 1.0, %v2634
      %2636 = vrot.lane.b32.xlu0 %v2458, 64
      %v2637 = vpop.permute.xlu0 %2636
      %v2639 = vmul.f32 %v2635, %v2637
      %2641 = vrot.lane.b32.xlu0 %v2639, 64
      %v2642 = vpop.permute.xlu0 %2641
      %v2644 = vadd.f32 %v2624, %v2642
      %v2645 = vtanh.pop %v2644
      %v2646 = vsub.f32 1.0, %v2635
      %2648 = vrot.lane.b32.xlu0 %v2645, 96
      %v2649 = vpop.permute.xlu0 %2648
      %v2651 = vmul.f32 %v2646, %v2649
      %v2652 = vmul.f32 %v2635, %v2415
      %v2653 = vadd.f32 %v2651, %v2652
      %v2654 = vpack.c.bf16 %v2653, %v2653
      %2656 = vrot.lane.b32.xlu0 %v2654, 96
      %v2657 = vpop.permute.xlu0 %2656
      %v2659 = vsel %vm930, %v2657, 0
      %2661 = vmatprep.subr.bf16.mxu0 0
      %2662 = vmatpush1.bf16.msra.mxu0 0
      %2663 = vmatprep.subr.bf16.mxu0 0
      %2664 = vmatpush1.bf16.msra.mxu0 0
      %2665 = vmatprep.subr.bf16.mxu0 0
      %2666 = vmatpush1.bf16.msra.mxu0 0
      %2667 = vmatprep.subr.bf16.mxu0 0
      %2668 = vmatpush1.bf16.msra.mxu0 0
      %2669 = vmatprep.subr.bf16.mxu0 0
      %2670 = vmatpush1.bf16.msra.mxu0 0
      %2671 = vmatprep.subr.bf16.mxu0 0
      %2672 = vmatpush1.bf16.msra.mxu0 0
      %2673 = vmatprep.subr.bf16.mxu0 0
      %2674 = vmatpush1.bf16.msra.mxu0 %v1925
      %2675 = vmatprep.subr.bf16.mxu0 0
      %2676 = vmatpush1.bf16.msra.mxu0 %v1924
      %2677 = vmatprep.subr.bf16.mxu0 0
      %2678 = vmatpush2.bf16.msra.mxu0 0
      %2679 = vmatprep.subr.bf16.mxu0 0
      %2680 = vmatpush2.bf16.msra.mxu0 0
      %2681 = vmatprep.subr.bf16.mxu0 0
      %2682 = vmatpush2.bf16.msra.mxu0 0
      %2683 = vmatprep.subr.bf16.mxu0 0
      %2684 = vmatpush2.bf16.msra.mxu0 0
      %2685 = vmatprep.subr.bf16.mxu0 0
      %2686 = vmatpush2.bf16.msra.mxu0 0
      %2687 = vmatprep.subr.bf16.mxu0 0
      %2688 = vmatpush2.bf16.msra.mxu0 0
      %2689 = vmatprep.subr.bf16.mxu0 0
      %2690 = vmatpush2.bf16.msra.mxu0 0
      %2691 = vmatprep.subr.bf16.mxu0 0
      %2692 = vmatpush2.bf16.msra.mxu0 0
      %2693 = vmatprep.mubr.bf16.mxu0 0
      %2694 = vmatmul.mubr.bf16.gmra.mxu0 %v2659
      %v2695 = vpop.f32.mrf.mxu0
      %v2696 = vadd.f32 %v1914, %v2695
      %v2697 = vpop.f32.mrf.mxu0
      %v2698 = vpop.f32.mrf.mxu0
      %v2699 = vpop.f32.mrf.mxu0
      %2700 = vdwg.mxu0
      %2702 = vrot.lane.b32.xlu0 %v2696, 32
      %v2703 = vpop.permute.xlu0 %2702
      %v2705 = vadd.f32 %v1892, %v2703
      %v2706 = vadd.f32 %v1893, %v2703
      %v2707 = vadd.f32 %v1894, %v2703
      %v2708 = vadd.f32 %v1895, %v2703
      %v2709 = vadd.f32 %v1896, %v2703
      %v2710 = vadd.f32 %v1897, %v2703
      %v2711 = vadd.f32 %v1898, %v2703
      %v2712 = vadd.f32 %v1899, %v2703
      %v2713 = vtanh.pop %v2705
      %v2714 = vtanh.pop %v2706
      %v2715 = vtanh.pop %v2707
      %v2716 = vtanh.pop %v2708
      %v2717 = vtanh.pop %v2709
      %v2718 = vtanh.pop %v2710
      %v2719 = vtanh.pop %v2711
      %v2720 = vtanh.pop %v2712
      %v2721 = vmul.f32 %v2713, %v1995
      %v2722 = vmul.f32 %v2714, %v1995
      %v2723 = vmul.f32 %v2715, %v1995
      %v2724 = vmul.f32 %v2716, %v1995
      %v2725 = vmul.f32 %v2717, %v1995
      %v2726 = vmul.f32 %v2718, %v1995
      %v2727 = vmul.f32 %v2719, %v1995
      %v2728 = vmul.f32 %v2720, %v1995
      %v2729 = vsel %vm930, %v2721, 0.0
      %2730 = vadd.xlane.f32.xlu0 %v2729
      %v2731 = vpop.xlane.xlu0 %2730
      %v2732 = vsel %vm930, %v2722, 0.0
      %2733 = vadd.xlane.f32.xlu0 %v2732
      %v2734 = vpop.xlane.xlu0 %2733
      %v2735 = vsel %vm930, %v2723, 0.0
      %2736 = vadd.xlane.f32.xlu0 %v2735
      %v2737 = vpop.xlane.xlu0 %2736
      %v2738 = vsel %vm930, %v2724, 0.0
      %2739 = vadd.xlane.f32.xlu0 %v2738
      %v2740 = vpop.xlane.xlu0 %2739
      %v2741 = vsel %vm930, %v2725, 0.0
      %2742 = vadd.xlane.f32.xlu0 %v2741
      %v2743 = vpop.xlane.xlu0 %2742
      %v2744 = vsel %vm930, %v2726, 0.0
      %2745 = vadd.xlane.f32.xlu0 %v2744
      %v2746 = vpop.xlane.xlu0 %2745
      %v2747 = vsel %vm930, %v2727, 0.0
      %2748 = vadd.xlane.f32.xlu0 %v2747
      %v2749 = vpop.xlane.xlu0 %2748
      %v2750 = vsel %vm930, %v2728, 0.0
      %2751 = vadd.xlane.f32.xlu0 %v2750
      %v2752 = vpop.xlane.xlu0 %2751
      %v2753 = vmax.f32 %v2731, %v2743
      %v2754 = vmax.f32 %v2734, %v2746
      %v2755 = vmax.f32 %v2737, %v2749
      %v2756 = vmax.f32 %v2740, %v2752
      %v2757 = vmax.f32 %v2753, %v2754
      %v2758 = vmax.f32 %v2755, %v2756
      %v2759 = vmax.f32 %v2757, %v2758
      %v2760 = vsub.f32 %v2731, %v2759
      %v2761 = vsub.f32 %v2734, %v2759
      %v2762 = vsub.f32 %v2737, %v2759
      %v2763 = vsub.f32 %v2740, %v2759
      %v2764 = vsub.f32 %v2743, %v2759
      %v2765 = vsub.f32 %v2746, %v2759
      %v2766 = vsub.f32 %v2749, %v2759
      %v2767 = vsub.f32 %v2752, %v2759
      %v2768 = vmul.f32 %v2760, 1.442695
      %v2769 = vpow.pop %v2768
      %v2770 = vmul.f32 %v2761, 1.442695
      %v2771 = vpow.pop %v2770
      %v2772 = vmul.f32 %v2762, 1.442695
      %v2773 = vpow.pop %v2772
      %v2774 = vmul.f32 %v2763, 1.442695
      %v2775 = vpow.pop %v2774
      %v2776 = vmul.f32 %v2764, 1.442695
      %v2777 = vpow.pop %v2776
      %v2778 = vmul.f32 %v2765, 1.442695
      %v2779 = vpow.pop %v2778
      %v2780 = vmul.f32 %v2766, 1.442695
      %v2781 = vpow.pop %v2780
      %v2782 = vmul.f32 %v2767, 1.442695
      %v2783 = vpow.pop %v2782
      %v2784 = vadd.f32 %v2769, %v2771
      %v2785 = vadd.f32 %v2784, %v2773
      %v2786 = vadd.f32 %v2785, %v2775
      %v2787 = vadd.f32 %v2786, %v2777
      %v2788 = vadd.f32 %v2787, %v2779
      %v2789 = vadd.f32 %v2788, %v2781
      %v2790 = vadd.f32 %v2789, %v2783
      %v2791 = vrcp.pop %v2790
      %v2792 = vmul.f32 %v2769, %v2791
      %v2793 = vmul.f32 %v2771, %v2791
      %v2794 = vmul.f32 %v2773, %v2791
      %v2795 = vmul.f32 %v2775, %v2791
      %v2796 = vmul.f32 %v2777, %v2791
      %v2797 = vmul.f32 %v2779, %v2791
      %v2798 = vmul.f32 %v2781, %v2791
      %v2799 = vmul.f32 %v2783, %v2791
      %v2800 = vmul.f32 %v2792, %v1884
      %v2801 = vmul.f32 %v2793, %v1885
      %v2802 = vmul.f32 %v2794, %v1886
      %v2803 = vmul.f32 %v2795, %v1887
      %v2804 = vmul.f32 %v2796, %v1888
      %v2805 = vmul.f32 %v2797, %v1889
      %v2806 = vmul.f32 %v2798, %v1890
      %v2807 = vmul.f32 %v2799, %v1891
      %v2808 = vsel %vm712, %v2800, 0.0
      %v2809 = vsel %vm712, %v2801, 0.0
      %v2810 = vadd.f32 %v2808, %v2809
      %v2811 = vsel %vm712, %v2802, 0.0
      %v2812 = vadd.f32 %v2810, %v2811
      %v2813 = vsel %vm712, %v2803, 0.0
      %v2814 = vadd.f32 %v2812, %v2813
      %v2815 = vsel %vm712, %v2804, 0.0
      %v2816 = vadd.f32 %v2814, %v2815
      %v2817 = vsel %vm712, %v2805, 0.0
      %v2818 = vadd.f32 %v2816, %v2817
      %v2819 = vsel %vm712, %v2806, 0.0
      %v2820 = vadd.f32 %v2818, %v2819
      %v2821 = vsel %vm712, %v2807, 0.0
      %v2822 = vadd.f32 %v2820, %v2821
      %v2823 = vpack.c.bf16 %v2822, %v2822
      %v2825 = vsel %vm712, %v2823, 0
      %2827 = vmatprep.subr.bf16.mxu0 0
      %2828 = vmatpush1.bf16.msra.mxu0 0
      %2829 = vmatprep.subr.bf16.mxu0 0
      %2830 = vmatpush1.bf16.msra.mxu0 0
      %2831 = vmatprep.subr.bf16.mxu0 0
      %2832 = vmatpush1.bf16.msra.mxu0 0
      %2833 = vmatprep.subr.bf16.mxu0 0
      %2834 = vmatpush1.bf16.msra.mxu0 0
      %2835 = vmatprep.subr.bf16.mxu0 0
      %2836 = vmatpush1.bf16.msra.mxu0 0
      %2837 = vmatprep.subr.bf16.mxu0 0
      %2838 = vmatpush1.bf16.msra.mxu0 0
      %2839 = vmatprep.subr.bf16.mxu0 0
      %2840 = vmatpush1.bf16.msra.mxu0 0
      %2841 = vmatprep.subr.bf16.mxu0 0
      %2842 = vmatpush1.bf16.msra.mxu0 %v2104
      %2843 = vmatprep.subr.bf16.mxu0 0
      %2844 = vmatpush2.bf16.msra.mxu0 0
      %2845 = vmatprep.subr.bf16.mxu0 0
      %2846 = vmatpush2.bf16.msra.mxu0 0
      %2847 = vmatprep.subr.bf16.mxu0 0
      %2848 = vmatpush2.bf16.msra.mxu0 0
      %2849 = vmatprep.subr.bf16.mxu0 0
      %2850 = vmatpush2.bf16.msra.mxu0 0
      %2851 = vmatprep.subr.bf16.mxu0 0
      %2852 = vmatpush2.bf16.msra.mxu0 0
      %2853 = vmatprep.subr.bf16.mxu0 0
      %2854 = vmatpush2.bf16.msra.mxu0 0
      %2855 = vmatprep.subr.bf16.mxu0 0
      %2856 = vmatpush2.bf16.msra.mxu0 0
      %2857 = vmatprep.subr.bf16.mxu0 0
      %2858 = vmatpush2.bf16.msra.mxu0 0
      %2859 = vmatprep.mubr.bf16.mxu0 0
      %2860 = vmatmul.mubr.bf16.gmra.mxu0 %v2825
      %v2861 = vpop.f32.mrf.mxu0
      %v2862 = vadd.f32 %v668, %v2861
      %v2863 = vpop.f32.mrf.mxu0
      %v2864 = vpop.f32.mrf.mxu0
      %v2865 = vpop.f32.mrf.mxu0
      %2866 = vdwg.mxu0
      %v2867 = vadd.f32 %v2862, %v2696
      %v2868 = vxor.u32 %v2867, 2147483648
      %v2869 = vmul.f32 %v2868, 1.442695
      %v2870 = vpow.pop %v2869
      %v2871 = vadd.f32 %v2870, 1.0
      %v2872 = vrcp.pop %v2871
      %v2873 = vmul.f32 1.0, %v2872
      %2874 = vrot.lane.b32.xlu0 %v2696, 64
      %v2875 = vpop.permute.xlu0 %2874
      %v2877 = vmul.f32 %v2873, %v2875
      %2879 = vrot.lane.b32.xlu0 %v2877, 64
      %v2880 = vpop.permute.xlu0 %2879
      %v2882 = vadd.f32 %v2862, %v2880
      %v2883 = vtanh.pop %v2882
      %v2884 = vsub.f32 1.0, %v2873
      %2886 = vrot.lane.b32.xlu0 %v2883, 96
      %v2887 = vpop.permute.xlu0 %2886
      %v2889 = vmul.f32 %v2884, %v2887
      %v2890 = vmul.f32 %v2873, %v2653
      %v2891 = vadd.f32 %v2889, %v2890
      %v2892 = vpack.c.bf16 %v2891, %v2891
      %2894 = vrot.lane.b32.xlu0 %v2892, 96
      %v2895 = vpop.permute.xlu0 %2894
      %v2897 = vsel %vm930, %v2895, 0
      %2899 = vmatprep.subr.bf16.mxu0 0
      %2900 = vmatpush1.bf16.msra.mxu0 0
      %2901 = vmatprep.subr.bf16.mxu0 0
      %2902 = vmatpush1.bf16.msra.mxu0 0
      %2903 = vmatprep.subr.bf16.mxu0 0
      %2904 = vmatpush1.bf16.msra.mxu0 0
      %2905 = vmatprep.subr.bf16.mxu0 0
      %2906 = vmatpush1.bf16.msra.mxu0 0
      %2907 = vmatprep.subr.bf16.mxu0 0
      %2908 = vmatpush1.bf16.msra.mxu0 0
      %2909 = vmatprep.subr.bf16.mxu0 0
      %2910 = vmatpush1.bf16.msra.mxu0 0
      %2911 = vmatprep.subr.bf16.mxu0 0
      %2912 = vmatpush1.bf16.msra.mxu0 %v1925
      %2913 = vmatprep.subr.bf16.mxu0 0
      %2914 = vmatpush1.bf16.msra.mxu0 %v1924
      %2915 = vmatprep.subr.bf16.mxu0 0
      %2916 = vmatpush2.bf16.msra.mxu0 0
      %2917 = vmatprep.subr.bf16.mxu0 0
      %2918 = vmatpush2.bf16.msra.mxu0 0
      %2919 = vmatprep.subr.bf16.mxu0 0
      %2920 = vmatpush2.bf16.msra.mxu0 0
      %2921 = vmatprep.subr.bf16.mxu0 0
      %2922 = vmatpush2.bf16.msra.mxu0 0
      %2923 = vmatprep.subr.bf16.mxu0 0
      %2924 = vmatpush2.bf16.msra.mxu0 0
      %2925 = vmatprep.subr.bf16.mxu0 0
      %2926 = vmatpush2.bf16.msra.mxu0 0
      %2927 = vmatprep.subr.bf16.mxu0 0
      %2928 = vmatpush2.bf16.msra.mxu0 0
      %2929 = vmatprep.subr.bf16.mxu0 0
      %2930 = vmatpush2.bf16.msra.mxu0 0
      %2931 = vmatprep.mubr.bf16.mxu0 0
      %2932 = vmatmul.mubr.bf16.gmra.mxu0 %v2897
      %v2933 = vpop.f32.mrf.mxu0
      %v2934 = vadd.f32 %v1914, %v2933
      %v2935 = vpop.f32.mrf.mxu0
      %v2936 = vpop.f32.mrf.mxu0
      %v2937 = vpop.f32.mrf.mxu0
      %2938 = vdwg.mxu0
      %2940 = vrot.lane.b32.xlu0 %v2934, 32
      %v2941 = vpop.permute.xlu0 %2940
      %v2943 = vadd.f32 %v1892, %v2941
      %v2944 = vadd.f32 %v1893, %v2941
      %v2945 = vadd.f32 %v1894, %v2941
      %v2946 = vadd.f32 %v1895, %v2941
      %v2947 = vadd.f32 %v1896, %v2941
      %v2948 = vadd.f32 %v1897, %v2941
      %v2949 = vadd.f32 %v1898, %v2941
      %v2950 = vadd.f32 %v1899, %v2941
      %v2951 = vtanh.pop %v2943
      %v2952 = vtanh.pop %v2944
      %v2953 = vtanh.pop %v2945
      %v2954 = vtanh.pop %v2946
      %v2955 = vtanh.pop %v2947
      %v2956 = vtanh.pop %v2948
      %v2957 = vtanh.pop %v2949
      %v2958 = vtanh.pop %v2950
      %v2959 = vmul.f32 %v2951, %v1995
      %v2960 = vmul.f32 %v2952, %v1995
      %v2961 = vmul.f32 %v2953, %v1995
      %v2962 = vmul.f32 %v2954, %v1995
      %v2963 = vmul.f32 %v2955, %v1995
      %v2964 = vmul.f32 %v2956, %v1995
      %v2965 = vmul.f32 %v2957, %v1995
      %v2966 = vmul.f32 %v2958, %v1995
      %v2967 = vsel %vm930, %v2959, 0.0
      %2968 = vadd.xlane.f32.xlu0 %v2967
      %v2969 = vpop.xlane.xlu0 %2968
      %v2970 = vsel %vm930, %v2960, 0.0
      %2971 = vadd.xlane.f32.xlu0 %v2970
      %v2972 = vpop.xlane.xlu0 %2971
      %v2973 = vsel %vm930, %v2961, 0.0
      %2974 = vadd.xlane.f32.xlu0 %v2973
      %v2975 = vpop.xlane.xlu0 %2974
      %v2976 = vsel %vm930, %v2962, 0.0
      %2977 = vadd.xlane.f32.xlu0 %v2976
      %v2978 = vpop.xlane.xlu0 %2977
      %v2979 = vsel %vm930, %v2963, 0.0
      %2980 = vadd.xlane.f32.xlu0 %v2979
      %v2981 = vpop.xlane.xlu0 %2980
      %v2982 = vsel %vm930, %v2964, 0.0
      %2983 = vadd.xlane.f32.xlu0 %v2982
      %v2984 = vpop.xlane.xlu0 %2983
      %v2985 = vsel %vm930, %v2965, 0.0
      %2986 = vadd.xlane.f32.xlu0 %v2985
      %v2987 = vpop.xlane.xlu0 %2986
      %v2988 = vsel %vm930, %v2966, 0.0
      %2989 = vadd.xlane.f32.xlu0 %v2988
      %v2990 = vpop.xlane.xlu0 %2989
      %v2991 = vmax.f32 %v2969, %v2981
      %v2992 = vmax.f32 %v2972, %v2984
      %v2993 = vmax.f32 %v2975, %v2987
      %v2994 = vmax.f32 %v2978, %v2990
      %v2995 = vmax.f32 %v2991, %v2992
      %v2996 = vmax.f32 %v2993, %v2994
      %v2997 = vmax.f32 %v2995, %v2996
      %v2998 = vsub.f32 %v2969, %v2997
      %v2999 = vsub.f32 %v2972, %v2997
      %v3000 = vsub.f32 %v2975, %v2997
      %v3001 = vsub.f32 %v2978, %v2997
      %v3002 = vsub.f32 %v2981, %v2997
      %v3003 = vsub.f32 %v2984, %v2997
      %v3004 = vsub.f32 %v2987, %v2997
      %v3005 = vsub.f32 %v2990, %v2997
      %v3006 = vmul.f32 %v2998, 1.442695
      %v3007 = vpow.pop %v3006
      %v3008 = vmul.f32 %v2999, 1.442695
      %v3009 = vpow.pop %v3008
      %v3010 = vmul.f32 %v3000, 1.442695
      %v3011 = vpow.pop %v3010
      %v3012 = vmul.f32 %v3001, 1.442695
      %v3013 = vpow.pop %v3012
      %v3014 = vmul.f32 %v3002, 1.442695
      %v3015 = vpow.pop %v3014
      %v3016 = vmul.f32 %v3003, 1.442695
      %v3017 = vpow.pop %v3016
      %v3018 = vmul.f32 %v3004, 1.442695
      %v3019 = vpow.pop %v3018
      %v3020 = vmul.f32 %v3005, 1.442695
      %v3021 = vpow.pop %v3020
      %v3022 = vadd.f32 %v3007, %v3009
      %v3023 = vadd.f32 %v3022, %v3011
      %v3024 = vadd.f32 %v3023, %v3013
      %v3025 = vadd.f32 %v3024, %v3015
      %v3026 = vadd.f32 %v3025, %v3017
      %v3027 = vadd.f32 %v3026, %v3019
      %v3028 = vadd.f32 %v3027, %v3021
      %v3029 = vrcp.pop %v3028
      %v3030 = vmul.f32 %v3007, %v3029
      %v3031 = vmul.f32 %v3009, %v3029
      %v3032 = vmul.f32 %v3011, %v3029
      %v3033 = vmul.f32 %v3013, %v3029
      %v3034 = vmul.f32 %v3015, %v3029
      %v3035 = vmul.f32 %v3017, %v3029
      %v3036 = vmul.f32 %v3019, %v3029
      %v3037 = vmul.f32 %v3021, %v3029
      %v3038 = vmul.f32 %v3030, %v1884
      %v3039 = vmul.f32 %v3031, %v1885
      %v3040 = vmul.f32 %v3032, %v1886
      %v3041 = vmul.f32 %v3033, %v1887
      %v3042 = vmul.f32 %v3034, %v1888
      %v3043 = vmul.f32 %v3035, %v1889
      %v3044 = vmul.f32 %v3036, %v1890
      %v3045 = vmul.f32 %v3037, %v1891
      %v3046 = vsel %vm712, %v3038, 0.0
      %v3047 = vsel %vm712, %v3039, 0.0
      %v3048 = vadd.f32 %v3046, %v3047
      %v3049 = vsel %vm712, %v3040, 0.0
      %v3050 = vadd.f32 %v3048, %v3049
      %v3051 = vsel %vm712, %v3041, 0.0
      %v3052 = vadd.f32 %v3050, %v3051
      %v3053 = vsel %vm712, %v3042, 0.0
      %v3054 = vadd.f32 %v3052, %v3053
      %v3055 = vsel %vm712, %v3043, 0.0
      %v3056 = vadd.f32 %v3054, %v3055
      %v3057 = vsel %vm712, %v3044, 0.0
      %v3058 = vadd.f32 %v3056, %v3057
      %v3059 = vsel %vm712, %v3045, 0.0
      %v3060 = vadd.f32 %v3058, %v3059
      %v3061 = vpack.c.bf16 %v3060, %v3060
      %v3063 = vsel %vm712, %v3061, 0
      %3065 = vmatprep.subr.bf16.mxu0 0
      %3066 = vmatpush1.bf16.msra.mxu0 0
      %3067 = vmatprep.subr.bf16.mxu0 0
      %3068 = vmatpush1.bf16.msra.mxu0 0
      %3069 = vmatprep.subr.bf16.mxu0 0
      %3070 = vmatpush1.bf16.msra.mxu0 0
      %3071 = vmatprep.subr.bf16.mxu0 0
      %3072 = vmatpush1.bf16.msra.mxu0 0
      %3073 = vmatprep.subr.bf16.mxu0 0
      %3074 = vmatpush1.bf16.msra.mxu0 0
      %3075 = vmatprep.subr.bf16.mxu0 0
      %3076 = vmatpush1.bf16.msra.mxu0 0
      %3077 = vmatprep.subr.bf16.mxu0 0
      %3078 = vmatpush1.bf16.msra.mxu0 0
      %3079 = vmatprep.subr.bf16.mxu0 0
      %3080 = vmatpush1.bf16.msra.mxu0 %v2104
      %3081 = vmatprep.subr.bf16.mxu0 0
      %3082 = vmatpush2.bf16.msra.mxu0 0
      %3083 = vmatprep.subr.bf16.mxu0 0
      %3084 = vmatpush2.bf16.msra.mxu0 0
      %3085 = vmatprep.subr.bf16.mxu0 0
      %3086 = vmatpush2.bf16.msra.mxu0 0
      %3087 = vmatprep.subr.bf16.mxu0 0
      %3088 = vmatpush2.bf16.msra.mxu0 0
      %3089 = vmatprep.subr.bf16.mxu0 0
      %3090 = vmatpush2.bf16.msra.mxu0 0
      %3091 = vmatprep.subr.bf16.mxu0 0
      %3092 = vmatpush2.bf16.msra.mxu0 0
      %3093 = vmatprep.subr.bf16.mxu0 0
      %3094 = vmatpush2.bf16.msra.mxu0 0
      %3095 = vmatprep.subr.bf16.mxu0 0
      %3096 = vmatpush2.bf16.msra.mxu0 0
      %3097 = vmatprep.mubr.bf16.mxu0 0
      %3098 = vmatmul.mubr.bf16.gmra.mxu0 %v3063
      %v3099 = vpop.f32.mrf.mxu0
      %v3100 = vadd.f32 %v673, %v3099
      %v3101 = vpop.f32.mrf.mxu0
      %v3102 = vpop.f32.mrf.mxu0
      %v3103 = vpop.f32.mrf.mxu0
      %3104 = vdwg.mxu0
      %v3105 = vadd.f32 %v3100, %v2934
      %v3106 = vxor.u32 %v3105, 2147483648
      %v3107 = vmul.f32 %v3106, 1.442695
      %v3108 = vpow.pop %v3107
      %v3109 = vadd.f32 %v3108, 1.0
      %v3110 = vrcp.pop %v3109
      %v3111 = vmul.f32 1.0, %v3110
      %3112 = vrot.lane.b32.xlu0 %v2934, 64
      %v3113 = vpop.permute.xlu0 %3112
      %v3115 = vmul.f32 %v3111, %v3113
      %3117 = vrot.lane.b32.xlu0 %v3115, 64
      %v3118 = vpop.permute.xlu0 %3117
      %v3120 = vadd.f32 %v3100, %v3118
      %v3121 = vtanh.pop %v3120
      %v3122 = vsub.f32 1.0, %v3111
      %3124 = vrot.lane.b32.xlu0 %v3121, 96
      %v3125 = vpop.permute.xlu0 %3124
      %v3127 = vmul.f32 %v3122, %v3125
      %v3128 = vmul.f32 %v3111, %v2891
      %v3129 = vadd.f32 %v3127, %v3128
      %v3130 = vpack.c.bf16 %v3129, %v3129
      %3132 = vrot.lane.b32.xlu0 %v3130, 96
      %v3133 = vpop.permute.xlu0 %3132
      %v3135 = vsel %vm930, %v3133, 0
      %3137 = vmatprep.subr.bf16.mxu0 0
      %3138 = vmatpush1.bf16.msra.mxu0 0
      %3139 = vmatprep.subr.bf16.mxu0 0
      %3140 = vmatpush1.bf16.msra.mxu0 0
      %3141 = vmatprep.subr.bf16.mxu0 0
      %3142 = vmatpush1.bf16.msra.mxu0 0
      %3143 = vmatprep.subr.bf16.mxu0 0
      %3144 = vmatpush1.bf16.msra.mxu0 0
      %3145 = vmatprep.subr.bf16.mxu0 0
      %3146 = vmatpush1.bf16.msra.mxu0 0
      %3147 = vmatprep.subr.bf16.mxu0 0
      %3148 = vmatpush1.bf16.msra.mxu0 0
      %3149 = vmatprep.subr.bf16.mxu0 0
      %3150 = vmatpush1.bf16.msra.mxu0 %v1925
      %3151 = vmatprep.subr.bf16.mxu0 0
      %3152 = vmatpush1.bf16.msra.mxu0 %v1924
      %3153 = vmatprep.subr.bf16.mxu0 0
      %3154 = vmatpush2.bf16.msra.mxu0 0
      %3155 = vmatprep.subr.bf16.mxu0 0
      %3156 = vmatpush2.bf16.msra.mxu0 0
      %3157 = vmatprep.subr.bf16.mxu0 0
      %3158 = vmatpush2.bf16.msra.mxu0 0
      %3159 = vmatprep.subr.bf16.mxu0 0
      %3160 = vmatpush2.bf16.msra.mxu0 0
      %3161 = vmatprep.subr.bf16.mxu0 0
      %3162 = vmatpush2.bf16.msra.mxu0 0
      %3163 = vmatprep.subr.bf16.mxu0 0
      %3164 = vmatpush2.bf16.msra.mxu0 0
      %3165 = vmatprep.subr.bf16.mxu0 0
      %3166 = vmatpush2.bf16.msra.mxu0 0
      %3167 = vmatprep.subr.bf16.mxu0 0
      %3168 = vmatpush2.bf16.msra.mxu0 0
      %3169 = vmatprep.mubr.bf16.mxu0 0
      %3170 = vmatmul.mubr.bf16.gmra.mxu0 %v3135
      %v3171 = vpop.f32.mrf.mxu0
      %v3172 = vadd.f32 %v1914, %v3171
      %v3173 = vpop.f32.mrf.mxu0
      %v3174 = vpop.f32.mrf.mxu0
      %v3175 = vpop.f32.mrf.mxu0
      %3176 = vdwg.mxu0
      %3178 = vrot.lane.b32.xlu0 %v3172, 32
      %v3179 = vpop.permute.xlu0 %3178
      %v3181 = vadd.f32 %v1892, %v3179
      %v3182 = vadd.f32 %v1893, %v3179
      %v3183 = vadd.f32 %v1894, %v3179
      %v3184 = vadd.f32 %v1895, %v3179
      %v3185 = vadd.f32 %v1896, %v3179
      %v3186 = vadd.f32 %v1897, %v3179
      %v3187 = vadd.f32 %v1898, %v3179
      %v3188 = vadd.f32 %v1899, %v3179
      %v3189 = vtanh.pop %v3181
      %v3190 = vtanh.pop %v3182
      %v3191 = vtanh.pop %v3183
      %v3192 = vtanh.pop %v3184
      %v3193 = vtanh.pop %v3185
      %v3194 = vtanh.pop %v3186
      %v3195 = vtanh.pop %v3187
      %v3196 = vtanh.pop %v3188
      %v3197 = vmul.f32 %v3189, %v1995
      %v3198 = vmul.f32 %v3190, %v1995
      %v3199 = vmul.f32 %v3191, %v1995
      %v3200 = vmul.f32 %v3192, %v1995
      %v3201 = vmul.f32 %v3193, %v1995
      %v3202 = vmul.f32 %v3194, %v1995
      %v3203 = vmul.f32 %v3195, %v1995
      %v3204 = vmul.f32 %v3196, %v1995
      %v3205 = vsel %vm930, %v3197, 0.0
      %3206 = vadd.xlane.f32.xlu0 %v3205
      %v3207 = vpop.xlane.xlu0 %3206
      %v3208 = vsel %vm930, %v3198, 0.0
      %3209 = vadd.xlane.f32.xlu0 %v3208
      %v3210 = vpop.xlane.xlu0 %3209
      %v3211 = vsel %vm930, %v3199, 0.0
      %3212 = vadd.xlane.f32.xlu0 %v3211
      %v3213 = vpop.xlane.xlu0 %3212
      %v3214 = vsel %vm930, %v3200, 0.0
      %3215 = vadd.xlane.f32.xlu0 %v3214
      %v3216 = vpop.xlane.xlu0 %3215
      %v3217 = vsel %vm930, %v3201, 0.0
      %3218 = vadd.xlane.f32.xlu0 %v3217
      %v3219 = vpop.xlane.xlu0 %3218
      %v3220 = vsel %vm930, %v3202, 0.0
      %3221 = vadd.xlane.f32.xlu0 %v3220
      %v3222 = vpop.xlane.xlu0 %3221
      %v3223 = vsel %vm930, %v3203, 0.0
      %3224 = vadd.xlane.f32.xlu0 %v3223
      %v3225 = vpop.xlane.xlu0 %3224
      %v3226 = vsel %vm930, %v3204, 0.0
      %3227 = vadd.xlane.f32.xlu0 %v3226
      %v3228 = vpop.xlane.xlu0 %3227
      %v3229 = vmax.f32 %v3207, %v3219
      %v3230 = vmax.f32 %v3210, %v3222
      %v3231 = vmax.f32 %v3213, %v3225
      %v3232 = vmax.f32 %v3216, %v3228
      %v3233 = vmax.f32 %v3229, %v3230
      %v3234 = vmax.f32 %v3231, %v3232
      %v3235 = vmax.f32 %v3233, %v3234
      %v3236 = vsub.f32 %v3207, %v3235
      %v3237 = vsub.f32 %v3210, %v3235
      %v3238 = vsub.f32 %v3213, %v3235
      %v3239 = vsub.f32 %v3216, %v3235
      %v3240 = vsub.f32 %v3219, %v3235
      %v3241 = vsub.f32 %v3222, %v3235
      %v3242 = vsub.f32 %v3225, %v3235
      %v3243 = vsub.f32 %v3228, %v3235
      %v3244 = vmul.f32 %v3236, 1.442695
      %v3245 = vpow.pop %v3244
      %v3246 = vmul.f32 %v3237, 1.442695
      %v3247 = vpow.pop %v3246
      %v3248 = vmul.f32 %v3238, 1.442695
      %v3249 = vpow.pop %v3248
      %v3250 = vmul.f32 %v3239, 1.442695
      %v3251 = vpow.pop %v3250
      %v3252 = vmul.f32 %v3240, 1.442695
      %v3253 = vpow.pop %v3252
      %v3254 = vmul.f32 %v3241, 1.442695
      %v3255 = vpow.pop %v3254
      %v3256 = vmul.f32 %v3242, 1.442695
      %v3257 = vpow.pop %v3256
      %v3258 = vmul.f32 %v3243, 1.442695
      %v3259 = vpow.pop %v3258
      %v3260 = vadd.f32 %v3245, %v3247
      %v3261 = vadd.f32 %v3260, %v3249
      %v3262 = vadd.f32 %v3261, %v3251
      %v3263 = vadd.f32 %v3262, %v3253
      %v3264 = vadd.f32 %v3263, %v3255
      %v3265 = vadd.f32 %v3264, %v3257
      %v3266 = vadd.f32 %v3265, %v3259
      %v3267 = vrcp.pop %v3266
      %v3268 = vmul.f32 %v3245, %v3267
      %v3269 = vmul.f32 %v3247, %v3267
      %v3270 = vmul.f32 %v3249, %v3267
      %v3271 = vmul.f32 %v3251, %v3267
      %v3272 = vmul.f32 %v3253, %v3267
      %v3273 = vmul.f32 %v3255, %v3267
      %v3274 = vmul.f32 %v3257, %v3267
      %v3275 = vmul.f32 %v3259, %v3267
      %v3276 = vmul.f32 %v3268, %v1884
      %v3277 = vmul.f32 %v3269, %v1885
      %v3278 = vmul.f32 %v3270, %v1886
      %v3279 = vmul.f32 %v3271, %v1887
      %v3280 = vmul.f32 %v3272, %v1888
      %v3281 = vmul.f32 %v3273, %v1889
      %v3282 = vmul.f32 %v3274, %v1890
      %v3283 = vmul.f32 %v3275, %v1891
      %v3284 = vsel %vm712, %v3276, 0.0
      %v3285 = vsel %vm712, %v3277, 0.0
      %v3286 = vadd.f32 %v3284, %v3285
      %v3287 = vsel %vm712, %v3278, 0.0
      %v3288 = vadd.f32 %v3286, %v3287
      %v3289 = vsel %vm712, %v3279, 0.0
      %v3290 = vadd.f32 %v3288, %v3289
      %v3291 = vsel %vm712, %v3280, 0.0
      %v3292 = vadd.f32 %v3290, %v3291
      %v3293 = vsel %vm712, %v3281, 0.0
      %v3294 = vadd.f32 %v3292, %v3293
      %v3295 = vsel %vm712, %v3282, 0.0
      %v3296 = vadd.f32 %v3294, %v3295
      %v3297 = vsel %vm712, %v3283, 0.0
      %v3298 = vadd.f32 %v3296, %v3297
      %v3299 = vpack.c.bf16 %v3298, %v3298
      %v3301 = vsel %vm712, %v3299, 0
      %3303 = vmatprep.subr.bf16.mxu0 0
      %3304 = vmatpush1.bf16.msra.mxu0 0
      %3305 = vmatprep.subr.bf16.mxu0 0
      %3306 = vmatpush1.bf16.msra.mxu0 0
      %3307 = vmatprep.subr.bf16.mxu0 0
      %3308 = vmatpush1.bf16.msra.mxu0 0
      %3309 = vmatprep.subr.bf16.mxu0 0
      %3310 = vmatpush1.bf16.msra.mxu0 0
      %3311 = vmatprep.subr.bf16.mxu0 0
      %3312 = vmatpush1.bf16.msra.mxu0 0
      %3313 = vmatprep.subr.bf16.mxu0 0
      %3314 = vmatpush1.bf16.msra.mxu0 0
      %3315 = vmatprep.subr.bf16.mxu0 0
      %3316 = vmatpush1.bf16.msra.mxu0 0
      %3317 = vmatprep.subr.bf16.mxu0 0
      %3318 = vmatpush1.bf16.msra.mxu0 %v2104
      %3319 = vmatprep.subr.bf16.mxu0 0
      %3320 = vmatpush2.bf16.msra.mxu0 0
      %3321 = vmatprep.subr.bf16.mxu0 0
      %3322 = vmatpush2.bf16.msra.mxu0 0
      %3323 = vmatprep.subr.bf16.mxu0 0
      %3324 = vmatpush2.bf16.msra.mxu0 0
      %3325 = vmatprep.subr.bf16.mxu0 0
      %3326 = vmatpush2.bf16.msra.mxu0 0
      %3327 = vmatprep.subr.bf16.mxu0 0
      %3328 = vmatpush2.bf16.msra.mxu0 0
      %3329 = vmatprep.subr.bf16.mxu0 0
      %3330 = vmatpush2.bf16.msra.mxu0 0
      %3331 = vmatprep.subr.bf16.mxu0 0
      %3332 = vmatpush2.bf16.msra.mxu0 0
      %3333 = vmatprep.subr.bf16.mxu0 0
      %3334 = vmatpush2.bf16.msra.mxu0 0
      %3335 = vmatprep.mubr.bf16.mxu0 0
      %3336 = vmatmul.mubr.bf16.gmra.mxu0 %v3301
      %v3337 = vpop.f32.mrf.mxu0
      %v3338 = vadd.f32 %v676, %v3337
      %v3339 = vpop.f32.mrf.mxu0
      %v3340 = vpop.f32.mrf.mxu0
      %v3341 = vpop.f32.mrf.mxu0
      %3342 = vdwg.mxu0
      %v3343 = vadd.f32 %v3338, %v3172
      %v3344 = vxor.u32 %v3343, 2147483648
      %v3345 = vmul.f32 %v3344, 1.442695
      %v3346 = vpow.pop %v3345
      %v3347 = vadd.f32 %v3346, 1.0
      %v3348 = vrcp.pop %v3347
      %v3349 = vmul.f32 1.0, %v3348
      %3350 = vrot.lane.b32.xlu0 %v3172, 64
      %v3351 = vpop.permute.xlu0 %3350
      %v3353 = vmul.f32 %v3349, %v3351
      %3355 = vrot.lane.b32.xlu0 %v3353, 64
      %v3356 = vpop.permute.xlu0 %3355
      %v3358 = vadd.f32 %v3338, %v3356
      %v3359 = vtanh.pop %v3358
      %v3360 = vsub.f32 1.0, %v3349
      %3362 = vrot.lane.b32.xlu0 %v3359, 96
      %v3363 = vpop.permute.xlu0 %3362
      %v3365 = vmul.f32 %v3360, %v3363
      %v3366 = vmul.f32 %v3349, %v3129
      %v3367 = vadd.f32 %v3365, %v3366
      %v3368 = vpack.c.bf16 %v3367, %v3367
      %3370 = vrot.lane.b32.xlu0 %v3368, 96
      %v3371 = vpop.permute.xlu0 %3370
      %v3373 = vsel %vm930, %v3371, 0
      %3375 = vmatprep.subr.bf16.mxu0 0
      %3376 = vmatpush1.bf16.msra.mxu0 0
      %3377 = vmatprep.subr.bf16.mxu0 0
      %3378 = vmatpush1.bf16.msra.mxu0 0
      %3379 = vmatprep.subr.bf16.mxu0 0
      %3380 = vmatpush1.bf16.msra.mxu0 0
      %3381 = vmatprep.subr.bf16.mxu0 0
      %3382 = vmatpush1.bf16.msra.mxu0 0
      %3383 = vmatprep.subr.bf16.mxu0 0
      %3384 = vmatpush1.bf16.msra.mxu0 0
      %3385 = vmatprep.subr.bf16.mxu0 0
      %3386 = vmatpush1.bf16.msra.mxu0 0
      %3387 = vmatprep.subr.bf16.mxu0 0
      %3388 = vmatpush1.bf16.msra.mxu0 %v1925
      %3389 = vmatprep.subr.bf16.mxu0 0
      %3390 = vmatpush1.bf16.msra.mxu0 %v1924
      %3391 = vmatprep.subr.bf16.mxu0 0
      %3392 = vmatpush2.bf16.msra.mxu0 0
      %3393 = vmatprep.subr.bf16.mxu0 0
      %3394 = vmatpush2.bf16.msra.mxu0 0
      %3395 = vmatprep.subr.bf16.mxu0 0
      %3396 = vmatpush2.bf16.msra.mxu0 0
      %3397 = vmatprep.subr.bf16.mxu0 0
      %3398 = vmatpush2.bf16.msra.mxu0 0
      %3399 = vmatprep.subr.bf16.mxu0 0
      %3400 = vmatpush2.bf16.msra.mxu0 0
      %3401 = vmatprep.subr.bf16.mxu0 0
      %3402 = vmatpush2.bf16.msra.mxu0 0
      %3403 = vmatprep.subr.bf16.mxu0 0
      %3404 = vmatpush2.bf16.msra.mxu0 0
      %3405 = vmatprep.subr.bf16.mxu0 0
      %3406 = vmatpush2.bf16.msra.mxu0 0
      %3407 = vmatprep.mubr.bf16.mxu0 0
      %3408 = vmatmul.mubr.bf16.gmra.mxu0 %v3373
      %v3409 = vpop.f32.mrf.mxu0
      %v3410 = vadd.f32 %v1914, %v3409
      %v3411 = vpop.f32.mrf.mxu0
      %v3412 = vpop.f32.mrf.mxu0
      %v3413 = vpop.f32.mrf.mxu0
      %3414 = vdwg.mxu0
      %3416 = vrot.lane.b32.xlu0 %v3410, 32
      %v3417 = vpop.permute.xlu0 %3416
      %v3419 = vadd.f32 %v1892, %v3417
      %v3420 = vadd.f32 %v1893, %v3417
      %v3421 = vadd.f32 %v1894, %v3417
      %v3422 = vadd.f32 %v1895, %v3417
      %v3423 = vadd.f32 %v1896, %v3417
      %v3424 = vadd.f32 %v1897, %v3417
      %v3425 = vadd.f32 %v1898, %v3417
      %v3426 = vadd.f32 %v1899, %v3417
      %v3427 = vtanh.pop %v3419
      %v3428 = vtanh.pop %v3420
      %v3429 = vtanh.pop %v3421
      %v3430 = vtanh.pop %v3422
      %v3431 = vtanh.pop %v3423
      %v3432 = vtanh.pop %v3424
      %v3433 = vtanh.pop %v3425
      %v3434 = vtanh.pop %v3426
      %v3435 = vmul.f32 %v3427, %v1995
      %v3436 = vmul.f32 %v3428, %v1995
      %v3437 = vmul.f32 %v3429, %v1995
      %v3438 = vmul.f32 %v3430, %v1995
      %v3439 = vmul.f32 %v3431, %v1995
      %v3440 = vmul.f32 %v3432, %v1995
      %v3441 = vmul.f32 %v3433, %v1995
      %v3442 = vmul.f32 %v3434, %v1995
      %v3443 = vsel %vm930, %v3435, 0.0
      %3444 = vadd.xlane.f32.xlu0 %v3443
      %v3445 = vpop.xlane.xlu0 %3444
      %v3446 = vsel %vm930, %v3436, 0.0
      %3447 = vadd.xlane.f32.xlu0 %v3446
      %v3448 = vpop.xlane.xlu0 %3447
      %v3449 = vsel %vm930, %v3437, 0.0
      %3450 = vadd.xlane.f32.xlu0 %v3449
      %v3451 = vpop.xlane.xlu0 %3450
      %v3452 = vsel %vm930, %v3438, 0.0
      %3453 = vadd.xlane.f32.xlu0 %v3452
      %v3454 = vpop.xlane.xlu0 %3453
      %v3455 = vsel %vm930, %v3439, 0.0
      %3456 = vadd.xlane.f32.xlu0 %v3455
      %v3457 = vpop.xlane.xlu0 %3456
      %v3458 = vsel %vm930, %v3440, 0.0
      %3459 = vadd.xlane.f32.xlu0 %v3458
      %v3460 = vpop.xlane.xlu0 %3459
      %v3461 = vsel %vm930, %v3441, 0.0
      %3462 = vadd.xlane.f32.xlu0 %v3461
      %v3463 = vpop.xlane.xlu0 %3462
      %v3464 = vsel %vm930, %v3442, 0.0
      %3465 = vadd.xlane.f32.xlu0 %v3464
      %v3466 = vpop.xlane.xlu0 %3465
      %v3467 = vmax.f32 %v3445, %v3457
      %v3468 = vmax.f32 %v3448, %v3460
      %v3469 = vmax.f32 %v3451, %v3463
      %v3470 = vmax.f32 %v3454, %v3466
      %v3471 = vmax.f32 %v3467, %v3468
      %v3472 = vmax.f32 %v3469, %v3470
      %v3473 = vmax.f32 %v3471, %v3472
      %v3474 = vsub.f32 %v3445, %v3473
      %v3475 = vsub.f32 %v3448, %v3473
      %v3476 = vsub.f32 %v3451, %v3473
      %v3477 = vsub.f32 %v3454, %v3473
      %v3478 = vsub.f32 %v3457, %v3473
      %v3479 = vsub.f32 %v3460, %v3473
      %v3480 = vsub.f32 %v3463, %v3473
      %v3481 = vsub.f32 %v3466, %v3473
      %v3482 = vmul.f32 %v3474, 1.442695
      %v3483 = vpow.pop %v3482
      %v3484 = vmul.f32 %v3475, 1.442695
      %v3485 = vpow.pop %v3484
      %v3486 = vmul.f32 %v3476, 1.442695
      %v3487 = vpow.pop %v3486
      %v3488 = vmul.f32 %v3477, 1.442695
      %v3489 = vpow.pop %v3488
      %v3490 = vmul.f32 %v3478, 1.442695
      %v3491 = vpow.pop %v3490
      %v3492 = vmul.f32 %v3479, 1.442695
      %v3493 = vpow.pop %v3492
      %v3494 = vmul.f32 %v3480, 1.442695
      %v3495 = vpow.pop %v3494
      %v3496 = vmul.f32 %v3481, 1.442695
      %v3497 = vpow.pop %v3496
      %v3498 = vadd.f32 %v3483, %v3485
      %v3499 = vadd.f32 %v3498, %v3487
      %v3500 = vadd.f32 %v3499, %v3489
      %v3501 = vadd.f32 %v3500, %v3491
      %v3502 = vadd.f32 %v3501, %v3493
      %v3503 = vadd.f32 %v3502, %v3495
      %v3504 = vadd.f32 %v3503, %v3497
      %v3505 = vrcp.pop %v3504
      %v3506 = vmul.f32 %v3483, %v3505
      %v3507 = vmul.f32 %v3485, %v3505
      %v3508 = vmul.f32 %v3487, %v3505
      %v3509 = vmul.f32 %v3489, %v3505
      %v3510 = vmul.f32 %v3491, %v3505
      %v3511 = vmul.f32 %v3493, %v3505
      %v3512 = vmul.f32 %v3495, %v3505
      %v3513 = vmul.f32 %v3497, %v3505
      %v3514 = vmul.f32 %v3506, %v1884
      %v3515 = vmul.f32 %v3507, %v1885
      %v3516 = vmul.f32 %v3508, %v1886
      %v3517 = vmul.f32 %v3509, %v1887
      %v3518 = vmul.f32 %v3510, %v1888
      %v3519 = vmul.f32 %v3511, %v1889
      %v3520 = vmul.f32 %v3512, %v1890
      %v3521 = vmul.f32 %v3513, %v1891
      %v3522 = vsel %vm712, %v3514, 0.0
      %v3523 = vsel %vm712, %v3515, 0.0
      %v3524 = vadd.f32 %v3522, %v3523
      %v3525 = vsel %vm712, %v3516, 0.0
      %v3526 = vadd.f32 %v3524, %v3525
      %v3527 = vsel %vm712, %v3517, 0.0
      %v3528 = vadd.f32 %v3526, %v3527
      %v3529 = vsel %vm712, %v3518, 0.0
      %v3530 = vadd.f32 %v3528, %v3529
      %v3531 = vsel %vm712, %v3519, 0.0
      %v3532 = vadd.f32 %v3530, %v3531
      %v3533 = vsel %vm712, %v3520, 0.0
      %v3534 = vadd.f32 %v3532, %v3533
      %v3535 = vsel %vm712, %v3521, 0.0
      %v3536 = vadd.f32 %v3534, %v3535
      %v3537 = vpack.c.bf16 %v3536, %v3536
      %v3539 = vsel %vm712, %v3537, 0
      %3541 = vmatprep.subr.bf16.mxu0 0
      %3542 = vmatpush1.bf16.msra.mxu0 0
      %3543 = vmatprep.subr.bf16.mxu0 0
      %3544 = vmatpush1.bf16.msra.mxu0 0
      %3545 = vmatprep.subr.bf16.mxu0 0
      %3546 = vmatpush1.bf16.msra.mxu0 0
      %3547 = vmatprep.subr.bf16.mxu0 0
      %3548 = vmatpush1.bf16.msra.mxu0 0
      %3549 = vmatprep.subr.bf16.mxu0 0
      %3550 = vmatpush1.bf16.msra.mxu0 0
      %3551 = vmatprep.subr.bf16.mxu0 0
      %3552 = vmatpush1.bf16.msra.mxu0 0
      %3553 = vmatprep.subr.bf16.mxu0 0
      %3554 = vmatpush1.bf16.msra.mxu0 0
      %3555 = vmatprep.subr.bf16.mxu0 0
      %3556 = vmatpush1.bf16.msra.mxu0 %v2104
      %3557 = vmatprep.subr.bf16.mxu0 0
      %3558 = vmatpush2.bf16.msra.mxu0 0
      %3559 = vmatprep.subr.bf16.mxu0 0
      %3560 = vmatpush2.bf16.msra.mxu0 0
      %3561 = vmatprep.subr.bf16.mxu0 0
      %3562 = vmatpush2.bf16.msra.mxu0 0
      %3563 = vmatprep.subr.bf16.mxu0 0
      %3564 = vmatpush2.bf16.msra.mxu0 0
      %3565 = vmatprep.subr.bf16.mxu0 0
      %3566 = vmatpush2.bf16.msra.mxu0 0
      %3567 = vmatprep.subr.bf16.mxu0 0
      %3568 = vmatpush2.bf16.msra.mxu0 0
      %3569 = vmatprep.subr.bf16.mxu0 0
      %3570 = vmatpush2.bf16.msra.mxu0 0
      %3571 = vmatprep.subr.bf16.mxu0 0
      %3572 = vmatpush2.bf16.msra.mxu0 0
      %3573 = vmatprep.mubr.bf16.mxu0 0
      %3574 = vmatmul.mubr.bf16.gmra.mxu0 %v3539
      %v3575 = vpop.f32.mrf.mxu0
      %v3576 = vadd.f32 %v681, %v3575
      %v3577 = vpop.f32.mrf.mxu0
      %v3578 = vpop.f32.mrf.mxu0
      %v3579 = vpop.f32.mrf.mxu0
      %3580 = vdwg.mxu0
      %v3581 = vadd.f32 %v3576, %v3410
      %v3582 = vxor.u32 %v3581, 2147483648
      %v3583 = vmul.f32 %v3582, 1.442695
      %v3584 = vpow.pop %v3583
      %v3585 = vadd.f32 %v3584, 1.0
      %v3586 = vrcp.pop %v3585
      %v3587 = vmul.f32 1.0, %v3586
      %3588 = vrot.lane.b32.xlu0 %v3410, 64
      %v3589 = vpop.permute.xlu0 %3588
      %v3591 = vmul.f32 %v3587, %v3589
      %3593 = vrot.lane.b32.xlu0 %v3591, 64
      %v3594 = vpop.permute.xlu0 %3593
      %v3596 = vadd.f32 %v3576, %v3594
      %v3597 = vtanh.pop %v3596
      %v3598 = vsub.f32 1.0, %v3587
      %3600 = vrot.lane.b32.xlu0 %v3597, 96
      %v3601 = vpop.permute.xlu0 %3600
      %v3603 = vmul.f32 %v3598, %v3601
      %v3604 = vmul.f32 %v3587, %v3367
      %v3605 = vadd.f32 %v3603, %v3604
      %v3606 = vpack.c.bf16 %v3605, %v3605
      %3608 = vrot.lane.b32.xlu0 %v3606, 96
      %v3609 = vpop.permute.xlu0 %3608
      %v3611 = vsel %vm930, %v3609, 0
      %3613 = vmatprep.subr.bf16.mxu0 0
      %3614 = vmatpush1.bf16.msra.mxu0 0
      %3615 = vmatprep.subr.bf16.mxu0 0
      %3616 = vmatpush1.bf16.msra.mxu0 0
      %3617 = vmatprep.subr.bf16.mxu0 0
      %3618 = vmatpush1.bf16.msra.mxu0 0
      %3619 = vmatprep.subr.bf16.mxu0 0
      %3620 = vmatpush1.bf16.msra.mxu0 0
      %3621 = vmatprep.subr.bf16.mxu0 0
      %3622 = vmatpush1.bf16.msra.mxu0 0
      %3623 = vmatprep.subr.bf16.mxu0 0
      %3624 = vmatpush1.bf16.msra.mxu0 0
      %3625 = vmatprep.subr.bf16.mxu0 0
      %3626 = vmatpush1.bf16.msra.mxu0 %v1925
      %3627 = vmatprep.subr.bf16.mxu0 0
      %3628 = vmatpush1.bf16.msra.mxu0 %v1924
      %3629 = vmatprep.subr.bf16.mxu0 0
      %3630 = vmatpush2.bf16.msra.mxu0 0
      %3631 = vmatprep.subr.bf16.mxu0 0
      %3632 = vmatpush2.bf16.msra.mxu0 0
      %3633 = vmatprep.subr.bf16.mxu0 0
      %3634 = vmatpush2.bf16.msra.mxu0 0
      %3635 = vmatprep.subr.bf16.mxu0 0
      %3636 = vmatpush2.bf16.msra.mxu0 0
      %3637 = vmatprep.subr.bf16.mxu0 0
      %3638 = vmatpush2.bf16.msra.mxu0 0
      %3639 = vmatprep.subr.bf16.mxu0 0
      %3640 = vmatpush2.bf16.msra.mxu0 0
      %3641 = vmatprep.subr.bf16.mxu0 0
      %3642 = vmatpush2.bf16.msra.mxu0 0
      %3643 = vmatprep.subr.bf16.mxu0 0
      %3644 = vmatpush2.bf16.msra.mxu0 0
      %3645 = vmatprep.mubr.bf16.mxu0 0
      %3646 = vmatmul.mubr.bf16.gmra.mxu0 %v3611
      %v3647 = vpop.f32.mrf.mxu0
      %v3648 = vadd.f32 %v1914, %v3647
      %v3649 = vpop.f32.mrf.mxu0
      %v3650 = vpop.f32.mrf.mxu0
      %v3651 = vpop.f32.mrf.mxu0
      %3652 = vdwg.mxu0
      %3654 = vrot.lane.b32.xlu0 %v3648, 32
      %v3655 = vpop.permute.xlu0 %3654
      %v3657 = vadd.f32 %v1892, %v3655
      %v3658 = vadd.f32 %v1893, %v3655
      %v3659 = vadd.f32 %v1894, %v3655
      %v3660 = vadd.f32 %v1895, %v3655
      %v3661 = vadd.f32 %v1896, %v3655
      %v3662 = vadd.f32 %v1897, %v3655
      %v3663 = vadd.f32 %v1898, %v3655
      %v3664 = vadd.f32 %v1899, %v3655
      %v3665 = vtanh.pop %v3657
      %v3666 = vtanh.pop %v3658
      %v3667 = vtanh.pop %v3659
      %v3668 = vtanh.pop %v3660
      %v3669 = vtanh.pop %v3661
      %v3670 = vtanh.pop %v3662
      %v3671 = vtanh.pop %v3663
      %v3672 = vtanh.pop %v3664
      %v3673 = vmul.f32 %v3665, %v1995
      %v3674 = vmul.f32 %v3666, %v1995
      %v3675 = vmul.f32 %v3667, %v1995
      %v3676 = vmul.f32 %v3668, %v1995
      %v3677 = vmul.f32 %v3669, %v1995
      %v3678 = vmul.f32 %v3670, %v1995
      %v3679 = vmul.f32 %v3671, %v1995
      %v3680 = vmul.f32 %v3672, %v1995
      %v3681 = vsel %vm930, %v3673, 0.0
      %3682 = vadd.xlane.f32.xlu0 %v3681
      %v3683 = vpop.xlane.xlu0 %3682
      %v3684 = vsel %vm930, %v3674, 0.0
      %3685 = vadd.xlane.f32.xlu0 %v3684
      %v3686 = vpop.xlane.xlu0 %3685
      %v3687 = vsel %vm930, %v3675, 0.0
      %3688 = vadd.xlane.f32.xlu0 %v3687
      %v3689 = vpop.xlane.xlu0 %3688
      %v3690 = vsel %vm930, %v3676, 0.0
      %3691 = vadd.xlane.f32.xlu0 %v3690
      %v3692 = vpop.xlane.xlu0 %3691
      %v3693 = vsel %vm930, %v3677, 0.0
      %3694 = vadd.xlane.f32.xlu0 %v3693
      %v3695 = vpop.xlane.xlu0 %3694
      %v3696 = vsel %vm930, %v3678, 0.0
      %3697 = vadd.xlane.f32.xlu0 %v3696
      %v3698 = vpop.xlane.xlu0 %3697
      %v3699 = vsel %vm930, %v3679, 0.0
      %3700 = vadd.xlane.f32.xlu0 %v3699
      %v3701 = vpop.xlane.xlu0 %3700
      %v3702 = vsel %vm930, %v3680, 0.0
      %3703 = vadd.xlane.f32.xlu0 %v3702
      %v3704 = vpop.xlane.xlu0 %3703
      %v3705 = vmax.f32 %v3683, %v3695
      %v3706 = vmax.f32 %v3686, %v3698
      %v3707 = vmax.f32 %v3689, %v3701
      %v3708 = vmax.f32 %v3692, %v3704
      %v3709 = vmax.f32 %v3705, %v3706
      %v3710 = vmax.f32 %v3707, %v3708
      %v3711 = vmax.f32 %v3709, %v3710
      %v3712 = vsub.f32 %v3683, %v3711
      %v3713 = vsub.f32 %v3686, %v3711
      %v3714 = vsub.f32 %v3689, %v3711
      %v3715 = vsub.f32 %v3692, %v3711
      %v3716 = vsub.f32 %v3695, %v3711
      %v3717 = vsub.f32 %v3698, %v3711
      %v3718 = vsub.f32 %v3701, %v3711
      %v3719 = vsub.f32 %v3704, %v3711
      %v3720 = vmul.f32 %v3712, 1.442695
      %v3721 = vpow.pop %v3720
      %v3722 = vmul.f32 %v3713, 1.442695
      %v3723 = vpow.pop %v3722
      %v3724 = vmul.f32 %v3714, 1.442695
      %v3725 = vpow.pop %v3724
      %v3726 = vmul.f32 %v3715, 1.442695
      %v3727 = vpow.pop %v3726
      %v3728 = vmul.f32 %v3716, 1.442695
      %v3729 = vpow.pop %v3728
      %v3730 = vmul.f32 %v3717, 1.442695
      %v3731 = vpow.pop %v3730
      %v3732 = vmul.f32 %v3718, 1.442695
      %v3733 = vpow.pop %v3732
      %v3734 = vmul.f32 %v3719, 1.442695
      %v3735 = vpow.pop %v3734
      %v3736 = vadd.f32 %v3721, %v3723
      %v3737 = vadd.f32 %v3736, %v3725
      %v3738 = vadd.f32 %v3737, %v3727
      %v3739 = vadd.f32 %v3738, %v3729
      %v3740 = vadd.f32 %v3739, %v3731
      %v3741 = vadd.f32 %v3740, %v3733
      %v3742 = vadd.f32 %v3741, %v3735
      %v3743 = vrcp.pop %v3742
      %v3744 = vmul.f32 %v3721, %v3743
      %v3745 = vmul.f32 %v3723, %v3743
      %v3746 = vmul.f32 %v3725, %v3743
      %v3747 = vmul.f32 %v3727, %v3743
      %v3748 = vmul.f32 %v3729, %v3743
      %v3749 = vmul.f32 %v3731, %v3743
      %v3750 = vmul.f32 %v3733, %v3743
      %v3751 = vmul.f32 %v3735, %v3743
      %v3752 = vmul.f32 %v3744, %v1884
      %v3753 = vmul.f32 %v3745, %v1885
      %v3754 = vmul.f32 %v3746, %v1886
      %v3755 = vmul.f32 %v3747, %v1887
      %v3756 = vmul.f32 %v3748, %v1888
      %v3757 = vmul.f32 %v3749, %v1889
      %v3758 = vmul.f32 %v3750, %v1890
      %v3759 = vmul.f32 %v3751, %v1891
      %v3760 = vsel %vm712, %v3752, 0.0
      %v3761 = vsel %vm712, %v3753, 0.0
      %v3762 = vadd.f32 %v3760, %v3761
      %v3763 = vsel %vm712, %v3754, 0.0
      %v3764 = vadd.f32 %v3762, %v3763
      %v3765 = vsel %vm712, %v3755, 0.0
      %v3766 = vadd.f32 %v3764, %v3765
      %v3767 = vsel %vm712, %v3756, 0.0
      %v3768 = vadd.f32 %v3766, %v3767
      %v3769 = vsel %vm712, %v3757, 0.0
      %v3770 = vadd.f32 %v3768, %v3769
      %v3771 = vsel %vm712, %v3758, 0.0
      %v3772 = vadd.f32 %v3770, %v3771
      %v3773 = vsel %vm712, %v3759, 0.0
      %v3774 = vadd.f32 %v3772, %v3773
      %v3775 = vpack.c.bf16 %v3774, %v3774
      %v3777 = vsel %vm712, %v3775, 0
      %3779 = vmatprep.subr.bf16.mxu0 0
      %3780 = vmatpush1.bf16.msra.mxu0 0
      %3781 = vmatprep.subr.bf16.mxu0 0
      %3782 = vmatpush1.bf16.msra.mxu0 0
      %3783 = vmatprep.subr.bf16.mxu0 0
      %3784 = vmatpush1.bf16.msra.mxu0 0
      %3785 = vmatprep.subr.bf16.mxu0 0
      %3786 = vmatpush1.bf16.msra.mxu0 0
      %3787 = vmatprep.subr.bf16.mxu0 0
      %3788 = vmatpush1.bf16.msra.mxu0 0
      %3789 = vmatprep.subr.bf16.mxu0 0
      %3790 = vmatpush1.bf16.msra.mxu0 0
      %3791 = vmatprep.subr.bf16.mxu0 0
      %3792 = vmatpush1.bf16.msra.mxu0 0
      %3793 = vmatprep.subr.bf16.mxu0 0
      %3794 = vmatpush1.bf16.msra.mxu0 %v2104
      %3795 = vmatprep.subr.bf16.mxu0 0
      %3796 = vmatpush2.bf16.msra.mxu0 0
      %3797 = vmatprep.subr.bf16.mxu0 0
      %3798 = vmatpush2.bf16.msra.mxu0 0
      %3799 = vmatprep.subr.bf16.mxu0 0
      %3800 = vmatpush2.bf16.msra.mxu0 0
      %3801 = vmatprep.subr.bf16.mxu0 0
      %3802 = vmatpush2.bf16.msra.mxu0 0
      %3803 = vmatprep.subr.bf16.mxu0 0
      %3804 = vmatpush2.bf16.msra.mxu0 0
      %3805 = vmatprep.subr.bf16.mxu0 0
      %3806 = vmatpush2.bf16.msra.mxu0 0
      %3807 = vmatprep.subr.bf16.mxu0 0
      %3808 = vmatpush2.bf16.msra.mxu0 0
      %3809 = vmatprep.subr.bf16.mxu0 0
      %3810 = vmatpush2.bf16.msra.mxu0 0
      %3811 = vmatprep.mubr.bf16.mxu0 0
      %3812 = vmatmul.mubr.bf16.gmra.mxu0 %v3777
      %v3813 = vpop.f32.mrf.mxu0
      %v3814 = vadd.f32 %v684, %v3813
      %v3815 = vpop.f32.mrf.mxu0
      %v3816 = vpop.f32.mrf.mxu0
      %v3817 = vpop.f32.mrf.mxu0
      %3818 = vdwg.mxu0
      %v3819 = vadd.f32 %v3814, %v3648
      %v3820 = vxor.u32 %v3819, 2147483648
      %v3821 = vmul.f32 %v3820, 1.442695
      %v3822 = vpow.pop %v3821
      %v3823 = vadd.f32 %v3822, 1.0
      %v3824 = vrcp.pop %v3823
      %v3825 = vmul.f32 1.0, %v3824
      %3826 = vrot.lane.b32.xlu0 %v3648, 64
      %v3827 = vpop.permute.xlu0 %3826
      %v3829 = vmul.f32 %v3825, %v3827
      %3831 = vrot.lane.b32.xlu0 %v3829, 64
      %v3832 = vpop.permute.xlu0 %3831
      %v3834 = vadd.f32 %v3814, %v3832
      %v3835 = vtanh.pop %v3834
      %v3836 = vsub.f32 1.0, %v3825
      %3838 = vrot.lane.b32.xlu0 %v3835, 96
      %v3839 = vpop.permute.xlu0 %3838
      %v3841 = vmul.f32 %v3836, %v3839
      %v3842 = vmul.f32 %v3825, %v3605
      %v3843 = vadd.f32 %v3841, %v3842
      %v3844 = vld [vmem:[%s15] sm:$0xf]
      %v3845 = vld [vmem:[%s15 + $0x4] sm:$0xf]
      %v3846 = vld [vmem:[%s15 + $0x8] sm:$0xf]
      %v3847 = vld [vmem:[%s15 + $0xc] sm:$0xf]
      %v3848 = vpack.c.bf16 %v3843, %v3843
      %v3849 = vld [vmem:[%s16] sm:$0x1]
      %v3851 = vlaneseq
      %v3852 = vshrl.u32 %v3851, 7
      %v3853 = vsub.s32 0, %v3852
      %v3854 = vrot.slane %v3849, %v3853
      %3857 = vrot.lane.b32.xlu0 %v3848, 96
      %v3858 = vpop.permute.xlu0 %3857
      %v3863 = vunpack.c.l.b16 %v3844
      %v3864 = vunpack.c.l.b16 %v3845
      %v3865 = vunpack.c.l.b16 %v3846
      %v3866 = vunpack.c.l.b16 %v3847
      %v3867 = vpack.c.b16 %v3864, %v3863
      %v3868 = vpack.c.b16 %v3866, %v3865
      %v3872 = vsel %vm930, %v3858, 0
      %3874 = vmatprep.subr.bf16.mxu0 0
      %3875 = vmatpush1.bf16.msra.mxu0 0
      %3876 = vmatprep.subr.bf16.mxu0 0
      %3877 = vmatpush1.bf16.msra.mxu0 0
      %3878 = vmatprep.subr.bf16.mxu0 0
      %3879 = vmatpush1.bf16.msra.mxu0 0
      %3880 = vmatprep.subr.bf16.mxu0 0
      %3881 = vmatpush1.bf16.msra.mxu0 0
      %3882 = vmatprep.subr.bf16.mxu0 0
      %3883 = vmatpush1.bf16.msra.mxu0 0
      %3884 = vmatprep.subr.bf16.mxu0 0
      %3885 = vmatpush1.bf16.msra.mxu0 0
      %3886 = vmatprep.subr.bf16.mxu0 0
      %3887 = vmatpush1.bf16.msra.mxu0 %v3868
      %3888 = vmatprep.subr.bf16.mxu0 0
      %3889 = vmatpush1.bf16.msra.mxu0 %v3867
      %3890 = vmatprep.subr.bf16.mxu0 0
      %3891 = vmatpush2.bf16.msra.mxu0 0
      %3892 = vmatprep.subr.bf16.mxu0 0
      %3893 = vmatpush2.bf16.msra.mxu0 0
      %3894 = vmatprep.subr.bf16.mxu0 0
      %3895 = vmatpush2.bf16.msra.mxu0 0
      %3896 = vmatprep.subr.bf16.mxu0 0
      %3897 = vmatpush2.bf16.msra.mxu0 0
      %3898 = vmatprep.subr.bf16.mxu0 0
      %3899 = vmatpush2.bf16.msra.mxu0 0
      %3900 = vmatprep.subr.bf16.mxu0 0
      %3901 = vmatpush2.bf16.msra.mxu0 0
      %3902 = vmatprep.subr.bf16.mxu0 0
      %3903 = vmatpush2.bf16.msra.mxu0 0
      %3904 = vmatprep.subr.bf16.mxu0 0
      %3905 = vmatpush2.bf16.msra.mxu0 0
      %3906 = vmatprep.mubr.bf16.mxu0 0
      %3907 = vmatmul.mubr.bf16.gmra.mxu0 %v3872
      %v3908 = vpop.f32.mrf.mxu0
      %v3909 = vadd.f32 %v3854, %v3908
      %v3910 = vpop.f32.mrf.mxu0
      %v3911 = vpop.f32.mrf.mxu0
      %v3912 = vpop.f32.mrf.mxu0
      %3913 = vdwg.mxu0
      %3914 = vst.msk [vmem:[%s580] sm:$0xff] %vm602, %v3909
      %p3915 = scmp.lt.s32.totalorder %s28, 1
      %s3916 = scalar_select %p3915, %s28, 1
      %s3917 = smul.addr %s3916, 8
      %s3918 = scalar_lea.vmem %s17, %s3917
      // Predicated region
      $region89: #{tpu_custom_call.1} parent=87 // pred_check
        %p3919 = pneg %p418
      $region90: #{tpu_custom_call.1} parent=87 // pred_check_branch
        %3921 = sbr.rel (%p3919) target = $region92
      $region91: #{tpu_custom_call.1} parent=87 // pred_region
        _
      $region92: #{tpu_custom_call.1} parent=87 // pred_fallthru
        _
    $region88: #{tpu_custom_call.1} parent=5 // pred_fallthru
      _
    %p3922 = scmp.le.s32.totalorder 2, %s23
    // Predicated region
    $region93: #{tpu_custom_call.1} parent=5 // pred_check
      %p3923 = pneg %p3922
    $region94: #{tpu_custom_call.1} parent=5 // pred_check_branch
      %3925 = sbr.rel (%p3923) target = $region96
    $region95: #{tpu_custom_call.1} parent=5 // pred_region
      %s3926 = ssub.s32 %s23, 2
      // Predicated region
      $region97: #{tpu_custom_call.1} parent=95 // pred_check
        %p3927 = pneg %p424
      $region98: #{tpu_custom_call.1} parent=95 // pred_check_branch
        %3929 = sbr.rel (%p3927) target = $region100
      $region99: #{tpu_custom_call.1} parent=95 // pred_region
        %p3930 = scmp.lt.s32.totalorder %s29, 1
        %s3931 = scalar_select %p3930, %s29, 1
        %s3932 = smul.addr %s3931, 8
        %s3933 = scalar_lea.vmem %s17, %s3932
      $region100: #{tpu_custom_call.1} parent=95 // pred_fallthru
        _
    $region96: #{tpu_custom_call.1} parent=5 // pred_fallthru
      _
  $region6: #{tpu_custom_call.1} parent=0 // loop_footer
    %s27 = sadd.s32 1, %s23
  $region7: #{tpu_custom_call.1} parent=0 // loop_footer_branch
    %22 = sbr.rel target = $region3
  $region8: #{tpu_custom_call.1} parent=0 // loop_exit
    _

</llo_original>
